<compile_context>
chip_gen: v5e
topology: v5e:2x2
jax: 0.10.0
libtpu: 0.0.40
codegen_flags: <defaults>
</compile_context>

<pallas_src>
import functools
import math

import jax
import jax.numpy as jnp
from jax import lax
from jax.experimental import pallas as pl
from jax.experimental.pallas import tpu as pltpu

EPS = 1e-5  # PyTorch nn.LayerNorm default eps


# ----------------------------------------------------------------------------
# In-kernel math helpers
# ----------------------------------------------------------------------------
def _gelu(x):
    # tanh-approximate GELU (PyTorch nn.GELU(approximate='tanh')): one EUP
    # tanh + ~5 VALU ops instead of the erf polynomial.
    # TODO(synk): reference nn.GELU() uses exact erf (differs at ~1e-3 level).
    c = 0.7978845608028654  # sqrt(2/pi)
    return 0.5 * x * (1.0 + jnp.tanh(c * (x + 0.044715 * x * x * x)))


def _layernorm(z, gamma, beta):
    mu = jnp.mean(z, axis=-1, keepdims=True)
    var = jnp.mean((z - mu) ** 2, axis=-1, keepdims=True)
    return (z - mu) * lax.rsqrt(var + EPS) * gamma + beta


def _bf16(x):
    return x.astype(jnp.bfloat16)


# ----------------------------------------------------------------------------
# Fused ViT kernel: one grid step = (one batch item, one encoder layer)
# ----------------------------------------------------------------------------
def _vit_kernel(xp_ref, wpat_ref, add_ref,
                g_ref, beta_ref, wqkv_ref, bqkv_ref, wo_ref, bo_ref,
                w1_ref, b1_ref, w2_ref, b2_ref,
                ng_ref, nb_ref, wh1_ref, bh1_ref, wh2_ref, bh2_ref,
                o_ref, y_scr, *, num_heads, hidden_chunk):
    layer = pl.program_id(1)
    num_layers = pl.num_programs(1)
    D = wpat_ref.shape[1]
    dh = D // num_heads

    # ---- Patch embedding (first layer step only). `add_ref` already folds
    #      conv bias + class token + position embedding; the class-token row
    #      of xp is zero. ----
    @pl.when(layer == 0)
    def _():
        y0 = jnp.dot(_bf16(xp_ref[0]), wpat_ref[...],
                     preferred_element_type=jnp.float32) + add_ref[0]
        y_scr[...] = y0

    y = y_scr[...]                       # (N, D) f32, carried across layers
    # The reference Encoder applies ONE shared nn.LayerNorm (self.norm) to
    # both the MSA and the MLP branch, so (g, beta) are reused below.
    g = g_ref[0]
    beta = beta_ref[0]

    # ---- MSA branch: y1 = MSA(LN(y)) + y ----
    xn = _layernorm(y, g, beta)
    # Fused QKV projection (scaling already folded into the Q weights/bias).
    qkv = (jnp.dot(_bf16(xn), wqkv_ref[0],
                   preferred_element_type=jnp.float32) + bqkv_ref[0])  # (N, 3D)
    heads = []
    for h in range(num_heads):
        qh = qkv[:, h * dh:(h + 1) * dh]
        kh = qkv[:, D + h * dh:D + (h + 1) * dh]
        vh = qkv[:, 2 * D + h * dh:2 * D + (h + 1) * dh]
        s = lax.dot_general(_bf16(qh), _bf16(kh), (((1,), (1,)), ((), ())),
                            preferred_element_type=jnp.float32)        # (N, N)
        s = s - jnp.max(s, axis=-1, keepdims=True)
        e = jnp.exp(s)
        att = e / jnp.sum(e, axis=-1, keepdims=True)   # exact divide (parity)
        heads.append(jnp.dot(_bf16(att), _bf16(vh),
                             preferred_element_type=jnp.float32))      # (N, dh)
    cat = jnp.concatenate(heads, axis=-1)                               # (N, D)
    y1 = (jnp.dot(_bf16(cat), wo_ref[0],
                  preferred_element_type=jnp.float32) + bo_ref[0] + y)

    # ---- MLP branch: y = MLP(LN(y1)) + y1 (hidden dim in aligned chunks) ----
    y2n = _bf16(_layernorm(y1, g, beta))
    henc = w1_ref.shape[-1]
    acc = jnp.zeros(y.shape, jnp.float32)
    for c in range(henc // hidden_chunk):
        c0 = c * hidden_chunk
        h1 = _gelu(jnp.dot(y2n, w1_ref[0, :, c0:c0 + hidden_chunk],
                           preferred_element_type=jnp.float32)
                   + b1_ref[0, :, c0:c0 + hidden_chunk])
        acc = acc + jnp.dot(_bf16(h1), w2_ref[0, c0:c0 + hidden_chunk, :],
                            preferred_element_type=jnp.float32)
    y_new = acc + b2_ref[0] + y1
    y_scr[...] = y_new

    # ---- final LayerNorm + MLP head on the class token (last layer only) ----
    @pl.when(layer == num_layers - 1)
    def _():
        cls = y_new[0:1, :]                                             # (1, D)
        cn = _layernorm(cls, ng_ref[...], nb_ref[...])
        hh = _gelu(jnp.dot(_bf16(cn), wh1_ref[...],
                           preferred_element_type=jnp.float32) + bh1_ref[...])
        o_ref[0] = (jnp.dot(_bf16(hh), wh2_ref[...],
                            preferred_element_type=jnp.float32) + bh2_ref[...])


# ----------------------------------------------------------------------------
# JAX glue: parameters, im2col, weight restructuring, full forward
# ----------------------------------------------------------------------------
def _linear_params(key, fan_in, fan_out):
    kw, kb = jax.random.split(key)
    bound = 1.0 / math.sqrt(fan_in)
    w = jax.random.uniform(kw, (fan_in, fan_out), jnp.float32, -bound, bound)
    b = jax.random.uniform(kb, (1, fan_out), jnp.float32, -bound, bound)
    return w, b


def init_params(key, *, num_classes, patch_size, dim, num_heads, mlp_ratio, layers):
    n = 32 * 32 // patch_size ** 2
    keys = jax.random.split(key, 5 + layers)
    params = {}
    # Conv2d(3, dim, k=p, s=p) as a linear over flattened (C, ph, pw) patches.
    params["w_patch"], params["b_patch"] = _linear_params(
        keys[0], 3 * patch_size * patch_size, dim)
    params["cls"] = 0.02 * jax.random.normal(keys[1], (1, 1, dim), jnp.float32)
    params["pos"] = 0.02 * jax.random.normal(keys[2], (1, n + 1, dim), jnp.float32)

    # NOTE: the reference module passes `dim * mlp_ratio` as the Encoder's
    # mlp_ratio, so the encoder MLP hidden size is (dim * mlp_ratio) * dim.
    enc_hidden = (dim * mlp_ratio) * dim
    lps = []
    for i in range(layers):
        lk = jax.random.split(keys[3 + i], 4)
        wqkv, bqkv = _linear_params(lk[0], dim, 3 * dim)
        wp, bp = _linear_params(lk[1], dim, dim)
        w1, b1 = _linear_params(lk[2], dim, enc_hidden)
        w2, b2 = _linear_params(lk[3], enc_hidden, dim)
        lps.append(dict(
            g=jnp.ones((1, dim), jnp.float32),
            beta=jnp.zeros((1, dim), jnp.float32),
            wqkv=wqkv, bqkv=bqkv, wp=wp, bp=bp, w1=w1, b1=b1, w2=w2, b2=b2,
        ))
    params["layers"] = lps

    params["norm_g"] = jnp.ones((1, dim), jnp.float32)
    params["norm_b"] = jnp.zeros((1, dim), jnp.float32)
    hk1, hk2 = jax.random.split(keys[3 + layers], 2)
    params["wh1"], params["bh1"] = _linear_params(hk1, dim, dim * mlp_ratio)
    params["wh2"], params["bh2"] = _linear_params(hk2, dim * mlp_ratio, num_classes)
    return params


def _extract_patches(x, p):
    # x: (B, C, H, W) NCHW -> (B, n_patches, C*p*p); (C, ph, pw) flattening
    # matches the Conv2d-as-linear weight layout, row-major patch order
    # matches .view(B, dim, -1).transpose(1, 2).
    B, C, H, W = x.shape
    xp = x.reshape(B, C, H // p, p, W // p, p)
    xp = xp.transpose(0, 2, 4, 1, 3, 5)
    return xp.reshape(B, (H // p) * (W // p), C * p * p)


def _stack_layers(lps, dim, num_heads):
    """Stack per-layer weights (trace-time, parameter-only):
       * fused Wqkv kept as (L, D, 3D) with the softmax scale folded into Q,
       * Wo kept as (L, D, D),
       * large matrices cast to bf16 (MXU operands, half the VMEM/DMA)."""
    dh = dim // num_heads
    qscale = jnp.concatenate([jnp.full((dim,), dh ** -0.5, jnp.float32),
                              jnp.ones((2 * dim,), jnp.float32)])
    wqkv = jnp.stack([p["wqkv"] for p in lps]) * qscale          # (L, D, 3D)
    bqkv = jnp.stack([p["bqkv"] for p in lps]) * qscale          # (L, 1, 3D)
    g = jnp.stack([p["g"] for p in lps])                         # (L, 1, D)
    beta = jnp.stack([p["beta"] for p in lps])
    wo = jnp.stack([p["wp"] for p in lps])                       # (L, D, D)
    bo = jnp.stack([p["bp"] for p in lps])                       # (L, 1, D)
    w1 = jnp.stack([p["w1"] for p in lps])                       # (L, D, Henc)
    b1 = jnp.stack([p["b1"] for p in lps])                       # (L, 1, Henc)
    w2 = jnp.stack([p["w2"] for p in lps])                       # (L, Henc, D)
    b2 = jnp.stack([p["b2"] for p in lps])                       # (L, 1, D)
    return (g, beta, wqkv.astype(jnp.bfloat16), bqkv, wo.astype(jnp.bfloat16),
            bo, w1.astype(jnp.bfloat16), b1, w2.astype(jnp.bfloat16), b2)


def _prep_inputs(x, params, *, patch_size):
    B = x.shape[0]
    patches = _extract_patches(x, patch_size)                  # (B, n, C*p*p)
    n = patches.shape[1]
    N = n + 1
    # Pad a zero "patch" row per batch for the class-token slot.
    pad = jnp.zeros((B, 1, patches.shape[-1]), jnp.float32)
    xp = jnp.concatenate([pad, patches], axis=1)                # (B, N, Cpp)

    # Additive term folding conv bias + class token + position embedding.
    row0 = params["cls"][0] + params["pos"][0, 0:1]             # (1, D)
    rows = params["b_patch"] + params["pos"][0, 1:]             # (n, D)
    addend = jnp.tile(jnp.concatenate([row0, rows], axis=0)[None], (B, 1, 1))
    return xp, addend, N


@functools.partial(jax.jit, static_argnames=("patch_size", "dim", "num_heads"))
def vit_forward(x, params, *, patch_size, dim, num_heads):
    B = x.shape[0]
    xp, addend, N = _prep_inputs(x, params, patch_size=patch_size)
    stacks = _stack_layers(params["layers"], dim, num_heads)
    num_layers = len(params["layers"])
    henc = params["layers"][0]["w1"].shape[1]
    # Sweepable; 512 keeps the per-chunk hidden activation at ~20 vregs.
    hidden_chunk = next((c for c in (512, 256, 128) if henc % c == 0), henc)
    num_classes = params["wh2"].shape[1]

    wpat = params["w_patch"].astype(jnp.bfloat16)
    wh1 = params["wh1"].astype(jnp.bfloat16)
    wh2 = params["wh2"].astype(jnp.bfloat16)

    args = (xp, wpat, addend, *stacks,
            params["norm_g"], params["norm_b"],
            wh1, params["bh1"], wh2, params["bh2"])

    def batch_spec(a):
        nd = a.ndim
        return pl.BlockSpec((1,) + a.shape[1:],
                            lambda b, l, _n=nd: (b,) + (0,) * (_n - 1))

    def layer_spec(a):
        nd = a.ndim
        return pl.BlockSpec((1,) + a.shape[1:],
                            lambda b, l, _n=nd: (l,) + (0,) * (_n - 1))

    def const_spec(a):
        nd = a.ndim
        return pl.BlockSpec(a.shape, lambda b, l, _n=nd: (0,) * _n)

    (g, beta, wqkv, bqkv, wo, bo, w1, b1, w2, b2) = stacks
    in_specs = [batch_spec(xp), const_spec(wpat), batch_spec(addend),
                layer_spec(g), layer_spec(beta), layer_spec(wqkv),
                layer_spec(bqkv), layer_spec(wo), layer_spec(bo),
                layer_spec(w1), layer_spec(b1), layer_spec(w2), layer_spec(b2),
                const_spec(params["norm_g"]), const_spec(params["norm_b"]),
                const_spec(wh1), const_spec(params["bh1"]),
                const_spec(wh2), const_spec(params["bh2"])]

    kernel = functools.partial(_vit_kernel, num_heads=num_heads,
                               hidden_chunk=hidden_chunk)

    # grid = (batch, layers): batch is "parallel" (maps onto both v7x TCs),
    # layers is "arbitrary" with the activation carried in VMEM scratch so
    # layer l+1 weights DMA behind layer l compute (peak VMEM ~2 layers).
    out = pl.pallas_call(
        kernel,
        out_shape=jax.ShapeDtypeStruct((B, 1, num_classes), jnp.float32),
        grid=(B, num_layers),
        in_specs=in_specs,
        out_specs=pl.BlockSpec((1, 1, num_classes), lambda b, l: (b, 0, 0)),
        scratch_shapes=[pltpu.VMEM((N, dim), jnp.float32)],
        compiler_params=pltpu.CompilerParams(
            dimension_semantics=("parallel", "arbitrary")),
    )(*args)
    return out.reshape(B, num_classes)


if __name__ == "__main__":
    num_classes, patch_size, dim, num_heads, mlp_ratio, layers = 10, 8, 32, 4, 2, 2

    key = jax.random.PRNGKey(0)
    kx, kp = jax.random.split(key)
    # Input must be 3-channel 32x32 (Conv2d(3,...) and fixed 32*32/p^2 pos-emb).
    x = jax.random.normal(kx, (2, 3, 32, 32), jnp.float32)
    params = init_params(
        kp, num_classes=num_classes, patch_size=patch_size, dim=dim,
        num_heads=num_heads, mlp_ratio=mlp_ratio, layers=layers,
    )

    out = vit_forward(x, params, patch_size=patch_size, dim=dim, num_heads=num_heads)
    out = jax.block_until_ready(out)
    assert out.shape == (2, num_classes), out.shape
    assert out.dtype == jnp.float32
    assert bool(jnp.all(jnp.isfinite(out)))
    print("KERNEL_OK")
</pallas_src>

<mosaic_0001>
module attributes {stable_mosaic.version = 11 : i64} {
  func.func @_vit_kernel(%arg0: i32, %arg1: i32, %arg2: memref<1x17x192xf32, #tpu.memory_space<vmem>>, %arg3: memref<192x32xbf16, #tpu.memory_space<vmem>>, %arg4: memref<1x17x32xf32, #tpu.memory_space<vmem>>, %arg5: memref<1x1x32xf32, #tpu.memory_space<vmem>>, %arg6: memref<1x1x32xf32, #tpu.memory_space<vmem>>, %arg7: memref<1x32x96xbf16, #tpu.memory_space<vmem>>, %arg8: memref<1x1x96xf32, #tpu.memory_space<vmem>>, %arg9: memref<1x32x32xbf16, #tpu.memory_space<vmem>>, %arg10: memref<1x1x32xf32, #tpu.memory_space<vmem>>, %arg11: memref<1x32x2048xbf16, #tpu.memory_space<vmem>>, %arg12: memref<1x1x2048xf32, #tpu.memory_space<vmem>>, %arg13: memref<1x2048x32xbf16, #tpu.memory_space<vmem>>, %arg14: memref<1x1x32xf32, #tpu.memory_space<vmem>>, %arg15: memref<1x32xf32, #tpu.memory_space<vmem>>, %arg16: memref<1x32xf32, #tpu.memory_space<vmem>>, %arg17: memref<32x64xbf16, #tpu.memory_space<vmem>>, %arg18: memref<1x64xf32, #tpu.memory_space<vmem>>, %arg19: memref<64x10xbf16, #tpu.memory_space<vmem>>, %arg20: memref<1x10xf32, #tpu.memory_space<vmem>>, %arg21: memref<1x1x10xf32, #tpu.memory_space<vmem>>, %arg22: memref<17x32xf32, #tpu.memory_space<vmem>>) attributes {dimension_semantics = [#tpu.dimension_semantics<parallel>, #tpu.dimension_semantics<arbitrary>], iteration_bounds = array<i64: 2, 2>, scalar_prefetch = 0 : i64, scratch_operands = 1 : i64, tpu.core_type = #tpu.core_type<tc>, window_params = [{transform_indices = @transform_0, window_bounds = array<i64: 1, 17, 192>}, {pipeline_mode = #tpu.pipeline_mode<synchronous>, transform_indices = @transform_1, window_bounds = array<i64: 192, 32>}, {transform_indices = @transform_2, window_bounds = array<i64: 1, 17, 32>}, {transform_indices = @transform_3, window_bounds = array<i64: 1, 1, 32>}, {transform_indices = @transform_4, window_bounds = array<i64: 1, 1, 32>}, {transform_indices = @transform_5, window_bounds = array<i64: 1, 32, 96>}, {transform_indices = @transform_6, window_bounds = array<i64: 1, 1, 96>}, {transform_indices = @transform_7, window_bounds = array<i64: 1, 32, 32>}, {transform_indices = @transform_8, window_bounds = array<i64: 1, 1, 32>}, {transform_indices = @transform_9, window_bounds = array<i64: 1, 32, 2048>}, {transform_indices = @transform_10, window_bounds = array<i64: 1, 1, 2048>}, {transform_indices = @transform_11, window_bounds = array<i64: 1, 2048, 32>}, {transform_indices = @transform_12, window_bounds = array<i64: 1, 1, 32>}, {pipeline_mode = #tpu.pipeline_mode<synchronous>, transform_indices = @transform_13, window_bounds = array<i64: 1, 32>}, {pipeline_mode = #tpu.pipeline_mode<synchronous>, transform_indices = @transform_14, window_bounds = array<i64: 1, 32>}, {pipeline_mode = #tpu.pipeline_mode<synchronous>, transform_indices = @transform_15, window_bounds = array<i64: 32, 64>}, {pipeline_mode = #tpu.pipeline_mode<synchronous>, transform_indices = @transform_16, window_bounds = array<i64: 1, 64>}, {pipeline_mode = #tpu.pipeline_mode<synchronous>, transform_indices = @transform_17, window_bounds = array<i64: 64, 10>}, {pipeline_mode = #tpu.pipeline_mode<synchronous>, transform_indices = @transform_18, window_bounds = array<i64: 1, 10>}, {transform_indices = @transform_19, window_bounds = array<i64: 1, 1, 10>}]} {
    %c0_i32 = arith.constant 0 : i32
    %0 = arith.cmpi eq, %arg1, %c0_i32 : i32
    %1 = arith.extui %0 : i1 to i32
    %c0_i32_0 = arith.constant 0 : i32
    %2 = arith.cmpi ne, %1, %c0_i32_0 : i32
    scf.if %2 {
      %c0_111 = arith.constant 0 : index
      %c0_112 = arith.constant 0 : index
      %c0_113 = arith.constant 0 : index
      %253 = vector.load %arg2[%c0_111, %c0_112, %c0_113] : memref<1x17x192xf32, #tpu.memory_space<vmem>>, vector<1x17x192xf32>
      %254 = vector.shape_cast %253 : vector<1x17x192xf32> to vector<17x192xf32>
      %255 = arith.truncf %254 : vector<17x192xf32> to vector<17x192xbf16>
      %c0_114 = arith.constant 0 : index
      %c0_115 = arith.constant 0 : index
      %256 = vector.load %arg3[%c0_114, %c0_115] : memref<192x32xbf16, #tpu.memory_space<vmem>>, vector<192x32xbf16>
      %cst_116 = arith.constant dense<0.000000e+00> : vector<17x32xf32>
      %257 = tpu.matmul %255, %256, %cst_116 {dimension_numbers = #tpu.dot_dimension_numbers<[1], [0], [0], [1], [0, 0, 1, 1], [], []>} : vector<17x192xbf16>, vector<192x32xbf16>, vector<17x32xf32> -> vector<17x32xf32>
      %c0_117 = arith.constant 0 : index
      %c0_118 = arith.constant 0 : index
      %c0_119 = arith.constant 0 : index
      %258 = vector.load %arg4[%c0_117, %c0_118, %c0_119] : memref<1x17x32xf32, #tpu.memory_space<vmem>>, vector<1x17x32xf32>
      %259 = vector.shape_cast %258 : vector<1x17x32xf32> to vector<17x32xf32>
      %260 = arith.addf %257, %259 : vector<17x32xf32>
      %c0_120 = arith.constant 0 : index
      %c0_121 = arith.constant 0 : index
      %261 = vector.load %arg22[%c0_120, %c0_121] : memref<17x32xf32, #tpu.memory_space<vmem>>, vector<17x32xf32>
      tpu.vector_store %arg22[%c0_120, %c0_121], %260 {strides = array<i32>} : memref<17x32xf32, #tpu.memory_space<vmem>>, vector<17x32xf32>,
    } else {
    }
    %c0 = arith.constant 0 : index
    %c0_1 = arith.constant 0 : index
    %3 = vector.load %arg22[%c0, %c0_1] : memref<17x32xf32, #tpu.memory_space<vmem>>, vector<17x32xf32>
    %c0_2 = arith.constant 0 : index
    %c0_3 = arith.constant 0 : index
    %c0_4 = arith.constant 0 : index
    %4 = vector.load %arg5[%c0_2, %c0_3, %c0_4] : memref<1x1x32xf32, #tpu.memory_space<vmem>>, vector<1x1x32xf32>
    %5 = vector.shape_cast %4 : vector<1x1x32xf32> to vector<1x32xf32>
    %c0_5 = arith.constant 0 : index
    %c0_6 = arith.constant 0 : index
    %c0_7 = arith.constant 0 : index
    %6 = vector.load %arg6[%c0_5, %c0_6, %c0_7] : memref<1x1x32xf32, #tpu.memory_space<vmem>>, vector<1x1x32xf32>
    %7 = vector.shape_cast %6 : vector<1x1x32xf32> to vector<1x32xf32>
    %cst = arith.constant dense<0.000000e+00> : vector<17xf32>
    %8 = vector.multi_reduction <add>, %3, %cst [1] : vector<17x32xf32> to vector<17xf32>
    %9 = vector.shape_cast %8 : vector<17xf32> to vector<17x1xf32>
    %cst_8 = arith.constant 3.200000e+01 : f32
    %10 = vector.broadcast %cst_8 : f32 to vector<17x1xf32>
    %11 = arith.divf %9, %10 : vector<17x1xf32>
    %12 = vector.broadcast %11 : vector<17x1xf32> to vector<17x32xf32>
    %13 = arith.subf %3, %12 : vector<17x32xf32>
    %14 = arith.mulf %13, %13 : vector<17x32xf32>
    %cst_9 = arith.constant dense<0.000000e+00> : vector<17xf32>
    %15 = vector.multi_reduction <add>, %14, %cst_9 [1] : vector<17x32xf32> to vector<17xf32>
    %16 = vector.shape_cast %15 : vector<17xf32> to vector<17x1xf32>
    %cst_10 = arith.constant 3.200000e+01 : f32
    %17 = vector.broadcast %cst_10 : f32 to vector<17x1xf32>
    %18 = arith.divf %16, %17 : vector<17x1xf32>
    %19 = vector.broadcast %11 : vector<17x1xf32> to vector<17x32xf32>
    %20 = arith.subf %3, %19 : vector<17x32xf32>
    %cst_11 = arith.constant 9.99999974E-6 : f32
    %21 = vector.broadcast %cst_11 : f32 to vector<17x1xf32>
    %22 = arith.addf %18, %21 : vector<17x1xf32>
    %23 = math.rsqrt %22 : vector<17x1xf32>
    %24 = vector.broadcast %23 : vector<17x1xf32> to vector<17x32xf32>
    %25 = arith.mulf %20, %24 : vector<17x32xf32>
    %26 = vector.broadcast %5 : vector<1x32xf32> to vector<17x32xf32>
    %27 = arith.mulf %25, %26 : vector<17x32xf32>
    %28 = vector.broadcast %7 : vector<1x32xf32> to vector<17x32xf32>
    %29 = arith.addf %27, %28 : vector<17x32xf32>
    %30 = arith.truncf %29 : vector<17x32xf32> to vector<17x32xbf16>
    %c0_12 = arith.constant 0 : index
    %c0_13 = arith.constant 0 : index
    %c0_14 = arith.constant 0 : index
    %31 = vector.load %arg7[%c0_12, %c0_13, %c0_14] : memref<1x32x96xbf16, #tpu.memory_space<vmem>>, vector<1x32x96xbf16>
    %32 = vector.shape_cast %31 : vector<1x32x96xbf16> to vector<32x96xbf16>
    %cst_15 = arith.constant dense<0.000000e+00> : vector<17x96xf32>
    %33 = tpu.matmul %30, %32, %cst_15 {dimension_numbers = #tpu.dot_dimension_numbers<[1], [0], [0], [1], [0, 0, 1, 1], [], []>} : vector<17x32xbf16>, vector<32x96xbf16>, vector<17x96xf32> -> vector<17x96xf32>
    %c0_16 = arith.constant 0 : index
    %c0_17 = arith.constant 0 : index
    %c0_18 = arith.constant 0 : index
    %34 = vector.load %arg8[%c0_16, %c0_17, %c0_18] : memref<1x1x96xf32, #tpu.memory_space<vmem>>, vector<1x1x96xf32>
    %35 = vector.shape_cast %34 : vector<1x1x96xf32> to vector<1x96xf32>
    %36 = vector.broadcast %35 : vector<1x96xf32> to vector<17x96xf32>
    %37 = arith.addf %33, %36 : vector<17x96xf32>
    %38 = vector.extract_strided_slice %37 {offsets = [0, 0], sizes = [17, 8], strides = [1, 1]} : vector<17x96xf32> to vector<17x8xf32>
    %39 = vector.extract_strided_slice %37 {offsets = [0, 32], sizes = [17, 8], strides = [1, 1]} : vector<17x96xf32> to vector<17x8xf32>
    %40 = vector.extract_strided_slice %37 {offsets = [0, 64], sizes = [17, 8], strides = [1, 1]} : vector<17x96xf32> to vector<17x8xf32>
    %41 = arith.truncf %38 : vector<17x8xf32> to vector<17x8xbf16>
    %42 = arith.truncf %39 : vector<17x8xf32> to vector<17x8xbf16>
    %cst_19 = arith.constant dense<0.000000e+00> : vector<17x17xf32>
    %43 = tpu.matmul %41, %42, %cst_19 {dimension_numbers = #tpu.dot_dimension_numbers<[1], [1], [0], [0], [0, 0, 1, 0], [], []>} : vector<17x8xbf16>, vector<17x8xbf16>, vector<17x17xf32> -> vector<17x17xf32>
    %cst_20 = arith.constant dense<0xFF800000> : vector<17xf32>
    %44 = vector.multi_reduction <maximumf>, %43, %cst_20 [1] : vector<17x17xf32> to vector<17xf32>
    %45 = vector.shape_cast %44 : vector<17xf32> to vector<17x1xf32>
    %46 = vector.broadcast %45 : vector<17x1xf32> to vector<17x17xf32>
    %47 = arith.subf %43, %46 : vector<17x17xf32>
    %48 = math.exp %47 : vector<17x17xf32>
    %cst_21 = arith.constant dense<0.000000e+00> : vector<17xf32>
    %49 = vector.multi_reduction <add>, %48, %cst_21 [1] : vector<17x17xf32> to vector<17xf32>
    %50 = vector.shape_cast %49 : vector<17xf32> to vector<17x1xf32>
    %51 = vector.broadcast %50 : vector<17x1xf32> to vector<17x17xf32>
    %52 = arith.divf %48, %51 : vector<17x17xf32>
    %53 = arith.truncf %52 : vector<17x17xf32> to vector<17x17xbf16>
    %54 = arith.truncf %40 : vector<17x8xf32> to vector<17x8xbf16>
    %cst_22 = arith.constant dense<0.000000e+00> : vector<17x8xf32>
    %55 = tpu.matmul %53, %54, %cst_22 {dimension_numbers = #tpu.dot_dimension_numbers<[1], [0], [0], [1], [0, 0, 1, 1], [], []>} : vector<17x17xbf16>, vector<17x8xbf16>, vector<17x8xf32> -> vector<17x8xf32>
    %56 = vector.extract_strided_slice %37 {offsets = [0, 8], sizes = [17, 8], strides = [1, 1]} : vector<17x96xf32> to vector<17x8xf32>
    %57 = vector.extract_strided_slice %37 {offsets = [0, 40], sizes = [17, 8], strides = [1, 1]} : vector<17x96xf32> to vector<17x8xf32>
    %58 = vector.extract_strided_slice %37 {offsets = [0, 72], sizes = [17, 8], strides = [1, 1]} : vector<17x96xf32> to vector<17x8xf32>
    %59 = arith.truncf %56 : vector<17x8xf32> to vector<17x8xbf16>
    %60 = arith.truncf %57 : vector<17x8xf32> to vector<17x8xbf16>
    %cst_23 = arith.constant dense<0.000000e+00> : vector<17x17xf32>
    %61 = tpu.matmul %59, %60, %cst_23 {dimension_numbers = #tpu.dot_dimension_numbers<[1], [1], [0], [0], [0, 0, 1, 0], [], []>} : vector<17x8xbf16>, vector<17x8xbf16>, vector<17x17xf32> -> vector<17x17xf32>
    %cst_24 = arith.constant dense<0xFF800000> : vector<17xf32>
    %62 = vector.multi_reduction <maximumf>, %61, %cst_24 [1] : vector<17x17xf32> to vector<17xf32>
    %63 = vector.shape_cast %62 : vector<17xf32> to vector<17x1xf32>
    %64 = vector.broadcast %63 : vector<17x1xf32> to vector<17x17xf32>
    %65 = arith.subf %61, %64 : vector<17x17xf32>
    %66 = math.exp %65 : vector<17x17xf32>
    %cst_25 = arith.constant dense<0.000000e+00> : vector<17xf32>
    %67 = vector.multi_reduction <add>, %66, %cst_25 [1] : vector<17x17xf32> to vector<17xf32>
    %68 = vector.shape_cast %67 : vector<17xf32> to vector<17x1xf32>
    %69 = vector.broadcast %68 : vector<17x1xf32> to vector<17x17xf32>
    %70 = arith.divf %66, %69 : vector<17x17xf32>
    %71 = arith.truncf %70 : vector<17x17xf32> to vector<17x17xbf16>
    %72 = arith.truncf %58 : vector<17x8xf32> to vector<17x8xbf16>
    %cst_26 = arith.constant dense<0.000000e+00> : vector<17x8xf32>
    %73 = tpu.matmul %71, %72, %cst_26 {dimension_numbers = #tpu.dot_dimension_numbers<[1], [0], [0], [1], [0, 0, 1, 1], [], []>} : vector<17x17xbf16>, vector<17x8xbf16>, vector<17x8xf32> -> vector<17x8xf32>
    %74 = vector.extract_strided_slice %37 {offsets = [0, 16], sizes = [17, 8], strides = [1, 1]} : vector<17x96xf32> to vector<17x8xf32>
    %75 = vector.extract_strided_slice %37 {offsets = [0, 48], sizes = [17, 8], strides = [1, 1]} : vector<17x96xf32> to vector<17x8xf32>
    %76 = vector.extract_strided_slice %37 {offsets = [0, 80], sizes = [17, 8], strides = [1, 1]} : vector<17x96xf32> to vector<17x8xf32>
    %77 = arith.truncf %74 : vector<17x8xf32> to vector<17x8xbf16>
    %78 = arith.truncf %75 : vector<17x8xf32> to vector<17x8xbf16>
    %cst_27 = arith.constant dense<0.000000e+00> : vector<17x17xf32>
    %79 = tpu.matmul %77, %78, %cst_27 {dimension_numbers = #tpu.dot_dimension_numbers<[1], [1], [0], [0], [0, 0, 1, 0], [], []>} : vector<17x8xbf16>, vector<17x8xbf16>, vector<17x17xf32> -> vector<17x17xf32>
    %cst_28 = arith.constant dense<0xFF800000> : vector<17xf32>
    %80 = vector.multi_reduction <maximumf>, %79, %cst_28 [1] : vector<17x17xf32> to vector<17xf32>
    %81 = vector.shape_cast %80 : vector<17xf32> to vector<17x1xf32>
    %82 = vector.broadcast %81 : vector<17x1xf32> to vector<17x17xf32>
    %83 = arith.subf %79, %82 : vector<17x17xf32>
    %84 = math.exp %83 : vector<17x17xf32>
    %cst_29 = arith.constant dense<0.000000e+00> : vector<17xf32>
    %85 = vector.multi_reduction <add>, %84, %cst_29 [1] : vector<17x17xf32> to vector<17xf32>
    %86 = vector.shape_cast %85 : vector<17xf32> to vector<17x1xf32>
    %87 = vector.broadcast %86 : vector<17x1xf32> to vector<17x17xf32>
    %88 = arith.divf %84, %87 : vector<17x17xf32>
    %89 = arith.truncf %88 : vector<17x17xf32> to vector<17x17xbf16>
    %90 = arith.truncf %76 : vector<17x8xf32> to vector<17x8xbf16>
    %cst_30 = arith.constant dense<0.000000e+00> : vector<17x8xf32>
    %91 = tpu.matmul %89, %90, %cst_30 {dimension_numbers = #tpu.dot_dimension_numbers<[1], [0], [0], [1], [0, 0, 1, 1], [], []>} : vector<17x17xbf16>, vector<17x8xbf16>, vector<17x8xf32> -> vector<17x8xf32>
    %92 = vector.extract_strided_slice %37 {offsets = [0, 24], sizes = [17, 8], strides = [1, 1]} : vector<17x96xf32> to vector<17x8xf32>
    %93 = vector.extract_strided_slice %37 {offsets = [0, 56], sizes = [17, 8], strides = [1, 1]} : vector<17x96xf32> to vector<17x8xf32>
    %94 = vector.extract_strided_slice %37 {offsets = [0, 88], sizes = [17, 8], strides = [1, 1]} : vector<17x96xf32> to vector<17x8xf32>
    %95 = arith.truncf %92 : vector<17x8xf32> to vector<17x8xbf16>
    %96 = arith.truncf %93 : vector<17x8xf32> to vector<17x8xbf16>
    %cst_31 = arith.constant dense<0.000000e+00> : vector<17x17xf32>
    %97 = tpu.matmul %95, %96, %cst_31 {dimension_numbers = #tpu.dot_dimension_numbers<[1], [1], [0], [0], [0, 0, 1, 0], [], []>} : vector<17x8xbf16>, vector<17x8xbf16>, vector<17x17xf32> -> vector<17x17xf32>
    %cst_32 = arith.constant dense<0xFF800000> : vector<17xf32>
    %98 = vector.multi_reduction <maximumf>, %97, %cst_32 [1] : vector<17x17xf32> to vector<17xf32>
    %99 = vector.shape_cast %98 : vector<17xf32> to vector<17x1xf32>
    %100 = vector.broadcast %99 : vector<17x1xf32> to vector<17x17xf32>
    %101 = arith.subf %97, %100 : vector<17x17xf32>
    %102 = math.exp %101 : vector<17x17xf32>
    %cst_33 = arith.constant dense<0.000000e+00> : vector<17xf32>
    %103 = vector.multi_reduction <add>, %102, %cst_33 [1] : vector<17x17xf32> to vector<17xf32>
    %104 = vector.shape_cast %103 : vector<17xf32> to vector<17x1xf32>
    %105 = vector.broadcast %104 : vector<17x1xf32> to vector<17x17xf32>
    %106 = arith.divf %102, %105 : vector<17x17xf32>
    %107 = arith.truncf %106 : vector<17x17xf32> to vector<17x17xbf16>
    %108 = arith.truncf %94 : vector<17x8xf32> to vector<17x8xbf16>
    %cst_34 = arith.constant dense<0.000000e+00> : vector<17x8xf32>
    %109 = tpu.matmul %107, %108, %cst_34 {dimension_numbers = #tpu.dot_dimension_numbers<[1], [0], [0], [1], [0, 0, 1, 1], [], []>} : vector<17x17xbf16>, vector<17x8xbf16>, vector<17x8xf32> -> vector<17x8xf32>
    %110 = tpu.concatenate %55, %73, %91, %109 in 1 : vector<17x8xf32>, vector<17x8xf32>, vector<17x8xf32>, vector<17x8xf32> -> vector<17x32xf32>
    %111 = arith.truncf %110 : vector<17x32xf32> to vector<17x32xbf16>
    %c0_35 = arith.constant 0 : index
    %c0_36 = arith.constant 0 : index
    %c0_37 = arith.constant 0 : index
    %112 = vector.load %arg9[%c0_35, %c0_36, %c0_37] : memref<1x32x32xbf16, #tpu.memory_space<vmem>>, vector<1x32x32xbf16>
    %113 = vector.shape_cast %112 : vector<1x32x32xbf16> to vector<32x32xbf16>
    %cst_38 = arith.constant dense<0.000000e+00> : vector<17x32xf32>
    %114 = tpu.matmul %111, %113, %cst_38 {dimension_numbers = #tpu.dot_dimension_numbers<[1], [0], [0], [1], [0, 0, 1, 1], [], []>} : vector<17x32xbf16>, vector<32x32xbf16>, vector<17x32xf32> -> vector<17x32xf32>
    %c0_39 = arith.constant 0 : index
    %c0_40 = arith.constant 0 : index
    %c0_41 = arith.constant 0 : index
    %115 = vector.load %arg10[%c0_39, %c0_40, %c0_41] : memref<1x1x32xf32, #tpu.memory_space<vmem>>, vector<1x1x32xf32>
    %116 = vector.shape_cast %115 : vector<1x1x32xf32> to vector<1x32xf32>
    %117 = vector.broadcast %116 : vector<1x32xf32> to vector<17x32xf32>
    %118 = arith.addf %114, %117 : vector<17x32xf32>
    %119 = arith.addf %118, %3 : vector<17x32xf32>
    %cst_42 = arith.constant dense<0.000000e+00> : vector<17xf32>
    %120 = vector.multi_reduction <add>, %119, %cst_42 [1] : vector<17x32xf32> to vector<17xf32>
    %121 = vector.shape_cast %120 : vector<17xf32> to vector<17x1xf32>
    %cst_43 = arith.constant 3.200000e+01 : f32
    %122 = vector.broadcast %cst_43 : f32 to vector<17x1xf32>
    %123 = arith.divf %121, %122 : vector<17x1xf32>
    %124 = vector.broadcast %123 : vector<17x1xf32> to vector<17x32xf32>
    %125 = arith.subf %119, %124 : vector<17x32xf32>
    %126 = arith.mulf %125, %125 : vector<17x32xf32>
    %cst_44 = arith.constant dense<0.000000e+00> : vector<17xf32>
    %127 = vector.multi_reduction <add>, %126, %cst_44 [1] : vector<17x32xf32> to vector<17xf32>
    %128 = vector.shape_cast %127 : vector<17xf32> to vector<17x1xf32>
    %cst_45 = arith.constant 3.200000e+01 : f32
    %129 = vector.broadcast %cst_45 : f32 to vector<17x1xf32>
    %130 = arith.divf %128, %129 : vector<17x1xf32>
    %131 = vector.broadcast %123 : vector<17x1xf32> to vector<17x32xf32>
    %132 = arith.subf %119, %131 : vector<17x32xf32>
    %cst_46 = arith.constant 9.99999974E-6 : f32
    %133 = vector.broadcast %cst_46 : f32 to vector<17x1xf32>
    %134 = arith.addf %130, %133 : vector<17x1xf32>
    %135 = math.rsqrt %134 : vector<17x1xf32>
    %136 = vector.broadcast %135 : vector<17x1xf32> to vector<17x32xf32>
    %137 = arith.mulf %132, %136 : vector<17x32xf32>
    %138 = vector.broadcast %5 : vector<1x32xf32> to vector<17x32xf32>
    %139 = arith.mulf %137, %138 : vector<17x32xf32>
    %140 = vector.broadcast %7 : vector<1x32xf32> to vector<17x32xf32>
    %141 = arith.addf %139, %140 : vector<17x32xf32>
    %142 = arith.truncf %141 : vector<17x32xf32> to vector<17x32xbf16>
    %cst_47 = arith.constant 0.000000e+00 : f32
    %143 = vector.broadcast %cst_47 : f32 to vector<17x32xf32>
    %c0_48 = arith.constant 0 : index
    %c0_49 = arith.constant 0 : index
    %c0_50 = arith.constant 0 : index
    %144 = vector.load %arg11[%c0_48, %c0_49, %c0_50] : memref<1x32x2048xbf16, #tpu.memory_space<vmem>>, vector<1x32x512xbf16>
    %145 = vector.shape_cast %144 : vector<1x32x512xbf16> to vector<32x512xbf16>
    %cst_51 = arith.constant dense<0.000000e+00> : vector<17x512xf32>
    %146 = tpu.matmul %142, %145, %cst_51 {dimension_numbers = #tpu.dot_dimension_numbers<[1], [0], [0], [1], [0, 0, 1, 1], [], []>} : vector<17x32xbf16>, vector<32x512xbf16>, vector<17x512xf32> -> vector<17x512xf32>
    %c0_52 = arith.constant 0 : index
    %c0_53 = arith.constant 0 : index
    %c0_54 = arith.constant 0 : index
    %147 = vector.load %arg12[%c0_52, %c0_53, %c0_54] : memref<1x1x2048xf32, #tpu.memory_space<vmem>>, vector<1x1x512xf32>
    %148 = vector.shape_cast %147 : vector<1x1x512xf32> to vector<1x512xf32>
    %149 = vector.broadcast %148 : vector<1x512xf32> to vector<17x512xf32>
    %150 = arith.addf %146, %149 : vector<17x512xf32>
    %cst_55 = arith.constant 5.000000e-01 : f32
    %151 = vector.broadcast %cst_55 : f32 to vector<17x512xf32>
    %152 = arith.mulf %151, %150 : vector<17x512xf32>
    %cst_56 = arith.constant 4.471500e-02 : f32
    %153 = vector.broadcast %cst_56 : f32 to vector<17x512xf32>
    %154 = arith.mulf %153, %150 : vector<17x512xf32>
    %155 = arith.mulf %154, %150 : vector<17x512xf32>
    %156 = arith.mulf %155, %150 : vector<17x512xf32>
    %157 = arith.addf %150, %156 : vector<17x512xf32>
    %cst_57 = arith.constant 0.797884583 : f32
    %158 = vector.broadcast %cst_57 : f32 to vector<17x512xf32>
    %159 = arith.mulf %158, %157 : vector<17x512xf32>
    %160 = math.tanh %159 : vector<17x512xf32>
    %cst_58 = arith.constant 1.000000e+00 : f32
    %161 = vector.broadcast %cst_58 : f32 to vector<17x512xf32>
    %162 = arith.addf %161, %160 : vector<17x512xf32>
    %163 = arith.mulf %152, %162 : vector<17x512xf32>
    %164 = arith.truncf %163 : vector<17x512xf32> to vector<17x512xbf16>
    %c0_59 = arith.constant 0 : index
    %c0_60 = arith.constant 0 : index
    %c0_61 = arith.constant 0 : index
    %165 = vector.load %arg13[%c0_59, %c0_60, %c0_61] : memref<1x2048x32xbf16, #tpu.memory_space<vmem>>, vector<1x512x32xbf16>
    %166 = vector.shape_cast %165 : vector<1x512x32xbf16> to vector<512x32xbf16>
    %cst_62 = arith.constant dense<0.000000e+00> : vector<17x32xf32>
    %167 = tpu.matmul %164, %166, %cst_62 {dimension_numbers = #tpu.dot_dimension_numbers<[1], [0], [0], [1], [0, 0, 1, 1], [], []>} : vector<17x512xbf16>, vector<512x32xbf16>, vector<17x32xf32> -> vector<17x32xf32>
    %168 = arith.addf %143, %167 : vector<17x32xf32>
    %c0_63 = arith.constant 0 : index
    %c0_64 = arith.constant 0 : index
    %c512 = arith.constant 512 : index
    %169 = vector.load %arg11[%c0_63, %c0_64, %c512] : memref<1x32x2048xbf16, #tpu.memory_space<vmem>>, vector<1x32x512xbf16>
    %170 = vector.shape_cast %169 : vector<1x32x512xbf16> to vector<32x512xbf16>
    %cst_65 = arith.constant dense<0.000000e+00> : vector<17x512xf32>
    %171 = tpu.matmul %142, %170, %cst_65 {dimension_numbers = #tpu.dot_dimension_numbers<[1], [0], [0], [1], [0, 0, 1, 1], [], []>} : vector<17x32xbf16>, vector<32x512xbf16>, vector<17x512xf32> -> vector<17x512xf32>
    %c0_66 = arith.constant 0 : index
    %c0_67 = arith.constant 0 : index
    %c512_68 = arith.constant 512 : index
    %172 = vector.load %arg12[%c0_66, %c0_67, %c512_68] : memref<1x1x2048xf32, #tpu.memory_space<vmem>>, vector<1x1x512xf32>
    %173 = vector.shape_cast %172 : vector<1x1x512xf32> to vector<1x512xf32>
    %174 = vector.broadcast %173 : vector<1x512xf32> to vector<17x512xf32>
    %175 = arith.addf %171, %174 : vector<17x512xf32>
    %cst_69 = arith.constant 5.000000e-01 : f32
    %176 = vector.broadcast %cst_69 : f32 to vector<17x512xf32>
    %177 = arith.mulf %176, %175 : vector<17x512xf32>
    %cst_70 = arith.constant 4.471500e-02 : f32
    %178 = vector.broadcast %cst_70 : f32 to vector<17x512xf32>
    %179 = arith.mulf %178, %175 : vector<17x512xf32>
    %180 = arith.mulf %179, %175 : vector<17x512xf32>
    %181 = arith.mulf %180, %175 : vector<17x512xf32>
    %182 = arith.addf %175, %181 : vector<17x512xf32>
    %cst_71 = arith.constant 0.797884583 : f32
    %183 = vector.broadcast %cst_71 : f32 to vector<17x512xf32>
    %184 = arith.mulf %183, %182 : vector<17x512xf32>
    %185 = math.tanh %184 : vector<17x512xf32>
    %cst_72 = arith.constant 1.000000e+00 : f32
    %186 = vector.broadcast %cst_72 : f32 to vector<17x512xf32>
    %187 = arith.addf %186, %185 : vector<17x512xf32>
    %188 = arith.mulf %177, %187 : vector<17x512xf32>
    %189 = arith.truncf %188 : vector<17x512xf32> to vector<17x512xbf16>
    %c0_73 = arith.constant 0 : index
    %c512_74 = arith.constant 512 : index
    %c0_75 = arith.constant 0 : index
    %190 = vector.load %arg13[%c0_73, %c512_74, %c0_75] : memref<1x2048x32xbf16, #tpu.memory_space<vmem>>, vector<1x512x32xbf16>
    %191 = vector.shape_cast %190 : vector<1x512x32xbf16> to vector<512x32xbf16>
    %cst_76 = arith.constant dense<0.000000e+00> : vector<17x32xf32>
    %192 = tpu.matmul %189, %191, %cst_76 {dimension_numbers = #tpu.dot_dimension_numbers<[1], [0], [0], [1], [0, 0, 1, 1], [], []>} : vector<17x512xbf16>, vector<512x32xbf16>, vector<17x32xf32> -> vector<17x32xf32>
    %193 = arith.addf %168, %192 : vector<17x32xf32>
    %c0_77 = arith.constant 0 : index
    %c0_78 = arith.constant 0 : index
    %c1024 = arith.constant 1024 : index
    %194 = vector.load %arg11[%c0_77, %c0_78, %c1024] : memref<1x32x2048xbf16, #tpu.memory_space<vmem>>, vector<1x32x512xbf16>
    %195 = vector.shape_cast %194 : vector<1x32x512xbf16> to vector<32x512xbf16>
    %cst_79 = arith.constant dense<0.000000e+00> : vector<17x512xf32>
    %196 = tpu.matmul %142, %195, %cst_79 {dimension_numbers = #tpu.dot_dimension_numbers<[1], [0], [0], [1], [0, 0, 1, 1], [], []>} : vector<17x32xbf16>, vector<32x512xbf16>, vector<17x512xf32> -> vector<17x512xf32>
    %c0_80 = arith.constant 0 : index
    %c0_81 = arith.constant 0 : index
    %c1024_82 = arith.constant 1024 : index
    %197 = vector.load %arg12[%c0_80, %c0_81, %c1024_82] : memref<1x1x2048xf32, #tpu.memory_space<vmem>>, vector<1x1x512xf32>
    %198 = vector.shape_cast %197 : vector<1x1x512xf32> to vector<1x512xf32>
    %199 = vector.broadcast %198 : vector<1x512xf32> to vector<17x512xf32>
    %200 = arith.addf %196, %199 : vector<17x512xf32>
    %cst_83 = arith.constant 5.000000e-01 : f32
    %201 = vector.broadcast %cst_83 : f32 to vector<17x512xf32>
    %202 = arith.mulf %201, %200 : vector<17x512xf32>
    %cst_84 = arith.constant 4.471500e-02 : f32
    %203 = vector.broadcast %cst_84 : f32 to vector<17x512xf32>
    %204 = arith.mulf %203, %200 : vector<17x512xf32>
    %205 = arith.mulf %204, %200 : vector<17x512xf32>
    %206 = arith.mulf %205, %200 : vector<17x512xf32>
    %207 = arith.addf %200, %206 : vector<17x512xf32>
    %cst_85 = arith.constant 0.797884583 : f32
    %208 = vector.broadcast %cst_85 : f32 to vector<17x512xf32>
    %209 = arith.mulf %208, %207 : vector<17x512xf32>
    %210 = math.tanh %209 : vector<17x512xf32>
    %cst_86 = arith.constant 1.000000e+00 : f32
    %211 = vector.broadcast %cst_86 : f32 to vector<17x512xf32>
    %212 = arith.addf %211, %210 : vector<17x512xf32>
    %213 = arith.mulf %202, %212 : vector<17x512xf32>
    %214 = arith.truncf %213 : vector<17x512xf32> to vector<17x512xbf16>
    %c0_87 = arith.constant 0 : index
    %c1024_88 = arith.constant 1024 : index
    %c0_89 = arith.constant 0 : index
    %215 = vector.load %arg13[%c0_87, %c1024_88, %c0_89] : memref<1x2048x32xbf16, #tpu.memory_space<vmem>>, vector<1x512x32xbf16>
    %216 = vector.shape_cast %215 : vector<1x512x32xbf16> to vector<512x32xbf16>
    %cst_90 = arith.constant dense<0.000000e+00> : vector<17x32xf32>
    %217 = tpu.matmul %214, %216, %cst_90 {dimension_numbers = #tpu.dot_dimension_numbers<[1], [0], [0], [1], [0, 0, 1, 1], [], []>} : vector<17x512xbf16>, vector<512x32xbf16>, vector<17x32xf32> -> vector<17x32xf32>
    %218 = arith.addf %193, %217 : vector<17x32xf32>
    %c0_91 = arith.constant 0 : index
    %c0_92 = arith.constant 0 : index
    %c1536 = arith.constant 1536 : index
    %219 = vector.load %arg11[%c0_91, %c0_92, %c1536] : memref<1x32x2048xbf16, #tpu.memory_space<vmem>>, vector<1x32x512xbf16>
    %220 = vector.shape_cast %219 : vector<1x32x512xbf16> to vector<32x512xbf16>
    %cst_93 = arith.constant dense<0.000000e+00> : vector<17x512xf32>
    %221 = tpu.matmul %142, %220, %cst_93 {dimension_numbers = #tpu.dot_dimension_numbers<[1], [0], [0], [1], [0, 0, 1, 1], [], []>} : vector<17x32xbf16>, vector<32x512xbf16>, vector<17x512xf32> -> vector<17x512xf32>
    %c0_94 = arith.constant 0 : index
    %c0_95 = arith.constant 0 : index
    %c1536_96 = arith.constant 1536 : index
    %222 = vector.load %arg12[%c0_94, %c0_95, %c1536_96] : memref<1x1x2048xf32, #tpu.memory_space<vmem>>, vector<1x1x512xf32>
    %223 = vector.shape_cast %222 : vector<1x1x512xf32> to vector<1x512xf32>
    %224 = vector.broadcast %223 : vector<1x512xf32> to vector<17x512xf32>
    %225 = arith.addf %221, %224 : vector<17x512xf32>
    %cst_97 = arith.constant 5.000000e-01 : f32
    %226 = vector.broadcast %cst_97 : f32 to vector<17x512xf32>
    %227 = arith.mulf %226, %225 : vector<17x512xf32>
    %cst_98 = arith.constant 4.471500e-02 : f32
    %228 = vector.broadcast %cst_98 : f32 to vector<17x512xf32>
    %229 = arith.mulf %228, %225 : vector<17x512xf32>
    %230 = arith.mulf %229, %225 : vector<17x512xf32>
    %231 = arith.mulf %230, %225 : vector<17x512xf32>
    %232 = arith.addf %225, %231 : vector<17x512xf32>
    %cst_99 = arith.constant 0.797884583 : f32
    %233 = vector.broadcast %cst_99 : f32 to vector<17x512xf32>
    %234 = arith.mulf %233, %232 : vector<17x512xf32>
    %235 = math.tanh %234 : vector<17x512xf32>
    %cst_100 = arith.constant 1.000000e+00 : f32
    %236 = vector.broadcast %cst_100 : f32 to vector<17x512xf32>
    %237 = arith.addf %236, %235 : vector<17x512xf32>
    %238 = arith.mulf %227, %237 : vector<17x512xf32>
    %239 = arith.truncf %238 : vector<17x512xf32> to vector<17x512xbf16>
    %c0_101 = arith.constant 0 : index
    %c1536_102 = arith.constant 1536 : index
    %c0_103 = arith.constant 0 : index
    %240 = vector.load %arg13[%c0_101, %c1536_102, %c0_103] : memref<1x2048x32xbf16, #tpu.memory_space<vmem>>, vector<1x512x32xbf16>
    %241 = vector.shape_cast %240 : vector<1x512x32xbf16> to vector<512x32xbf16>
    %cst_104 = arith.constant dense<0.000000e+00> : vector<17x32xf32>
    %242 = tpu.matmul %239, %241, %cst_104 {dimension_numbers = #tpu.dot_dimension_numbers<[1], [0], [0], [1], [0, 0, 1, 1], [], []>} : vector<17x512xbf16>, vector<512x32xbf16>, vector<17x32xf32> -> vector<17x32xf32>
    %243 = arith.addf %218, %242 : vector<17x32xf32>
    %c0_105 = arith.constant 0 : index
    %c0_106 = arith.constant 0 : index
    %c0_107 = arith.constant 0 : index
    %244 = vector.load %arg14[%c0_105, %c0_106, %c0_107] : memref<1x1x32xf32, #tpu.memory_space<vmem>>, vector<1x1x32xf32>
    %245 = vector.shape_cast %244 : vector<1x1x32xf32> to vector<1x32xf32>
    %246 = vector.broadcast %245 : vector<1x32xf32> to vector<17x32xf32>
    %247 = arith.addf %243, %246 : vector<17x32xf32>
    %248 = arith.addf %247, %119 : vector<17x32xf32>
    %c0_108 = arith.constant 0 : index
    %c0_109 = arith.constant 0 : index
    %249 = vector.load %arg22[%c0_108, %c0_109] : memref<17x32xf32, #tpu.memory_space<vmem>>, vector<17x32xf32>
    tpu.vector_store %arg22[%c0_108, %c0_109], %248 {strides = array<i32>} : memref<17x32xf32, #tpu.memory_space<vmem>>, vector<17x32xf32>,
    %c1_i32 = arith.constant 1 : i32
    %250 = arith.cmpi eq, %arg1, %c1_i32 : i32
    %251 = arith.extui %250 : i1 to i32
    %c0_i32_110 = arith.constant 0 : i32
    %252 = arith.cmpi ne, %251, %c0_i32_110 : i32
    scf.if %252 {
      %253 = vector.extract_strided_slice %248 {offsets = [0, 0], sizes = [1, 32], strides = [1, 1]} : vector<17x32xf32> to vector<1x32xf32>
      %c0_111 = arith.constant 0 : index
      %c0_112 = arith.constant 0 : index
      %254 = vector.load %arg15[%c0_111, %c0_112] : memref<1x32xf32, #tpu.memory_space<vmem>>, vector<1x32xf32>
      %c0_113 = arith.constant 0 : index
      %c0_114 = arith.constant 0 : index
      %255 = vector.load %arg16[%c0_113, %c0_114] : memref<1x32xf32, #tpu.memory_space<vmem>>, vector<1x32xf32>
      %cst_115 = arith.constant dense<0.000000e+00> : vector<1xf32>
      %256 = vector.multi_reduction <add>, %253, %cst_115 [1] : vector<1x32xf32> to vector<1xf32>
      %257 = vector.shape_cast %256 : vector<1xf32> to vector<1x1xf32>
      %cst_116 = arith.constant 3.200000e+01 : f32
      %258 = vector.broadcast %cst_116 : f32 to vector<1x1xf32>
      %259 = arith.divf %257, %258 : vector<1x1xf32>
      %260 = vector.broadcast %259 : vector<1x1xf32> to vector<1x32xf32>
      %261 = arith.subf %253, %260 : vector<1x32xf32>
      %262 = arith.mulf %261, %261 : vector<1x32xf32>
      %cst_117 = arith.constant dense<0.000000e+00> : vector<1xf32>
      %263 = vector.multi_reduction <add>, %262, %cst_117 [1] : vector<1x32xf32> to vector<1xf32>
      %264 = vector.shape_cast %263 : vector<1xf32> to vector<1x1xf32>
      %cst_118 = arith.constant 3.200000e+01 : f32
      %265 = vector.broadcast %cst_118 : f32 to vector<1x1xf32>
      %266 = arith.divf %264, %265 : vector<1x1xf32>
      %267 = vector.broadcast %259 : vector<1x1xf32> to vector<1x32xf32>
      %268 = arith.subf %253, %267 : vector<1x32xf32>
      %cst_119 = arith.constant 9.99999974E-6 : f32
      %269 = vector.broadcast %cst_119 : f32 to vector<1x1xf32>
      %270 = arith.addf %266, %269 : vector<1x1xf32>
      %271 = math.rsqrt %270 : vector<1x1xf32>
      %272 = vector.broadcast %271 : vector<1x1xf32> to vector<1x32xf32>
      %273 = arith.mulf %268, %272 : vector<1x32xf32>
      %274 = arith.mulf %273, %254 : vector<1x32xf32>
      %275 = arith.addf %274, %255 : vector<1x32xf32>
      %276 = arith.truncf %275 : vector<1x32xf32> to vector<1x32xbf16>
      %c0_120 = arith.constant 0 : index
      %c0_121 = arith.constant 0 : index
      %277 = vector.load %arg17[%c0_120, %c0_121] : memref<32x64xbf16, #tpu.memory_space<vmem>>, vector<32x64xbf16>
      %cst_122 = arith.constant dense<0.000000e+00> : vector<1x64xf32>
      %278 = tpu.matmul %276, %277, %cst_122 {dimension_numbers = #tpu.dot_dimension_numbers<[1], [0], [0], [1], [0, 0, 1, 1], [], []>} : vector<1x32xbf16>, vector<32x64xbf16>, vector<1x64xf32> -> vector<1x64xf32>
      %c0_123 = arith.constant 0 : index
      %c0_124 = arith.constant 0 : index
      %279 = vector.load %arg18[%c0_123, %c0_124] : memref<1x64xf32, #tpu.memory_space<vmem>>, vector<1x64xf32>
      %280 = arith.addf %278, %279 : vector<1x64xf32>
      %cst_125 = arith.constant 5.000000e-01 : f32
      %281 = vector.broadcast %cst_125 : f32 to vector<1x64xf32>
      %282 = arith.mulf %281, %280 : vector<1x64xf32>
      %cst_126 = arith.constant 4.471500e-02 : f32
      %283 = vector.broadcast %cst_126 : f32 to vector<1x64xf32>
      %284 = arith.mulf %283, %280 : vector<1x64xf32>
      %285 = arith.mulf %284, %280 : vector<1x64xf32>
      %286 = arith.mulf %285, %280 : vector<1x64xf32>
      %287 = arith.addf %280, %286 : vector<1x64xf32>
      %cst_127 = arith.constant 0.797884583 : f32
      %288 = vector.broadcast %cst_127 : f32 to vector<1x64xf32>
      %289 = arith.mulf %288, %287 : vector<1x64xf32>
      %290 = math.tanh %289 : vector<1x64xf32>
      %cst_128 = arith.constant 1.000000e+00 : f32
      %291 = vector.broadcast %cst_128 : f32 to vector<1x64xf32>
      %292 = arith.addf %291, %290 : vector<1x64xf32>
      %293 = arith.mulf %282, %292 : vector<1x64xf32>
      %294 = arith.truncf %293 : vector<1x64xf32> to vector<1x64xbf16>
      %c0_129 = arith.constant 0 : index
      %c0_130 = arith.constant 0 : index
      %295 = vector.load %arg19[%c0_129, %c0_130] : memref<64x10xbf16, #tpu.memory_space<vmem>>, vector<64x10xbf16>
      %cst_131 = arith.constant dense<0.000000e+00> : vector<1x10xf32>
      %296 = tpu.matmul %294, %295, %cst_131 {dimension_numbers = #tpu.dot_dimension_numbers<[1], [0], [0], [1], [0, 0, 1, 1], [], []>} : vector<1x64xbf16>, vector<64x10xbf16>, vector<1x10xf32> -> vector<1x10xf32>
      %c0_132 = arith.constant 0 : index
      %c0_133 = arith.constant 0 : index
      %297 = vector.load %arg20[%c0_132, %c0_133] : memref<1x10xf32, #tpu.memory_space<vmem>>, vector<1x10xf32>
      %298 = arith.addf %296, %297 : vector<1x10xf32>
      %c0_134 = arith.constant 0 : index
      %c0_135 = arith.constant 0 : index
      %c0_136 = arith.constant 0 : index
      %299 = vector.load %arg21[%c0_134, %c0_135, %c0_136] : memref<1x1x10xf32, #tpu.memory_space<vmem>>, vector<1x1x10xf32>
      %300 = vector.shape_cast %299 : vector<1x1x10xf32> to vector<1x10xf32>
      %301 = vector.shape_cast %298 : vector<1x10xf32> to vector<1x1x10xf32>
      tpu.vector_store %arg21[%c0_134, %c0_135, %c0_136], %301 {strides = array<i32>} : memref<1x1x10xf32, #tpu.memory_space<vmem>>, vector<1x1x10xf32>,
    } else {
    }
    return
  }
  func.func @transform_0(%arg0: i32, %arg1: i32) -> (i32, i32, i32) {
    %c0_i32 = arith.constant 0 : i32
    %c0_i32_0 = arith.constant 0 : i32
    %c0_i32_1 = arith.constant 0 : i32
    return %arg0, %c0_i32, %c0_i32_0 : i32, i32, i32
  }
  func.func @transform_1(%arg0: i32, %arg1: i32) -> (i32, i32) {
    %c0_i32 = arith.constant 0 : i32
    %c0_i32_0 = arith.constant 0 : i32
    %c0_i32_1 = arith.constant 0 : i32
    return %c0_i32, %c0_i32_0 : i32, i32
  }
  func.func @transform_2(%arg0: i32, %arg1: i32) -> (i32, i32, i32) {
    %c0_i32 = arith.constant 0 : i32
    %c0_i32_0 = arith.constant 0 : i32
    %c0_i32_1 = arith.constant 0 : i32
    return %arg0, %c0_i32, %c0_i32_0 : i32, i32, i32
  }
  func.func @transform_3(%arg0: i32, %arg1: i32) -> (i32, i32, i32) {
    %c0_i32 = arith.constant 0 : i32
    %c0_i32_0 = arith.constant 0 : i32
    %c0_i32_1 = arith.constant 0 : i32
    return %arg1, %c0_i32, %c0_i32_0 : i32, i32, i32
  }
  func.func @transform_4(%arg0: i32, %arg1: i32) -> (i32, i32, i32) {
    %c0_i32 = arith.constant 0 : i32
    %c0_i32_0 = arith.constant 0 : i32
    %c0_i32_1 = arith.constant 0 : i32
    return %arg1, %c0_i32, %c0_i32_0 : i32, i32, i32
  }
  func.func @transform_5(%arg0: i32, %arg1: i32) -> (i32, i32, i32) {
    %c0_i32 = arith.constant 0 : i32
    %c0_i32_0 = arith.constant 0 : i32
    %c0_i32_1 = arith.constant 0 : i32
    return %arg1, %c0_i32, %c0_i32_0 : i32, i32, i32
  }
  func.func @transform_6(%arg0: i32, %arg1: i32) -> (i32, i32, i32) {
    %c0_i32 = arith.constant 0 : i32
    %c0_i32_0 = arith.constant 0 : i32
    %c0_i32_1 = arith.constant 0 : i32
    return %arg1, %c0_i32, %c0_i32_0 : i32, i32, i32
  }
  func.func @transform_7(%arg0: i32, %arg1: i32) -> (i32, i32, i32) {
    %c0_i32 = arith.constant 0 : i32
    %c0_i32_0 = arith.constant 0 : i32
    %c0_i32_1 = arith.constant 0 : i32
    return %arg1, %c0_i32, %c0_i32_0 : i32, i32, i32
  }
  func.func @transform_8(%arg0: i32, %arg1: i32) -> (i32, i32, i32) {
    %c0_i32 = arith.constant 0 : i32
    %c0_i32_0 = arith.constant 0 : i32
    %c0_i32_1 = arith.constant 0 : i32
    return %arg1, %c0_i32, %c0_i32_0 : i32, i32, i32
  }
  func.func @transform_9(%arg0: i32, %arg1: i32) -> (i32, i32, i32) {
    %c0_i32 = arith.constant 0 : i32
    %c0_i32_0 = arith.constant 0 : i32
    %c0_i32_1 = arith.constant 0 : i32
    return %arg1, %c0_i32, %c0_i32_0 : i32, i32, i32
  }
  func.func @transform_10(%arg0: i32, %arg1: i32) -> (i32, i32, i32) {
    %c0_i32 = arith.constant 0 : i32
    %c0_i32_0 = arith.constant 0 : i32
    %c0_i32_1 = arith.constant 0 : i32
    return %arg1, %c0_i32, %c0_i32_0 : i32, i32, i32
  }
  func.func @transform_11(%arg0: i32, %arg1: i32) -> (i32, i32, i32) {
    %c0_i32 = arith.constant 0 : i32
    %c0_i32_0 = arith.constant 0 : i32
    %c0_i32_1 = arith.constant 0 : i32
    return %arg1, %c0_i32, %c0_i32_0 : i32, i32, i32
  }
  func.func @transform_12(%arg0: i32, %arg1: i32) -> (i32, i32, i32) {
    %c0_i32 = arith.constant 0 : i32
    %c0_i32_0 = arith.constant 0 : i32
    %c0_i32_1 = arith.constant 0 : i32
    return %arg1, %c0_i32, %c0_i32_0 : i32, i32, i32
  }
  func.func @transform_13(%arg0: i32, %arg1: i32) -> (i32, i32) {
    %c0_i32 = arith.constant 0 : i32
    %c0_i32_0 = arith.constant 0 : i32
    %c0_i32_1 = arith.constant 0 : i32
    return %c0_i32, %c0_i32_0 : i32, i32
  }
  func.func @transform_14(%arg0: i32, %arg1: i32) -> (i32, i32) {
    %c0_i32 = arith.constant 0 : i32
    %c0_i32_0 = arith.constant 0 : i32
    %c0_i32_1 = arith.constant 0 : i32
    return %c0_i32, %c0_i32_0 : i32, i32
  }
  func.func @transform_15(%arg0: i32, %arg1: i32) -> (i32, i32) {
    %c0_i32 = arith.constant 0 : i32
    %c0_i32_0 = arith.constant 0 : i32
    %c0_i32_1 = arith.constant 0 : i32
    return %c0_i32, %c0_i32_0 : i32, i32
  }
  func.func @transform_16(%arg0: i32, %arg1: i32) -> (i32, i32) {
    %c0_i32 = arith.constant 0 : i32
    %c0_i32_0 = arith.constant 0 : i32
    %c0_i32_1 = arith.constant 0 : i32
    return %c0_i32, %c0_i32_0 : i32, i32
  }
  func.func @transform_17(%arg0: i32, %arg1: i32) -> (i32, i32) {
    %c0_i32 = arith.constant 0 : i32
    %c0_i32_0 = arith.constant 0 : i32
    %c0_i32_1 = arith.constant 0 : i32
    return %c0_i32, %c0_i32_0 : i32, i32
  }
  func.func @transform_18(%arg0: i32, %arg1: i32) -> (i32, i32) {
    %c0_i32 = arith.constant 0 : i32
    %c0_i32_0 = arith.constant 0 : i32
    %c0_i32_1 = arith.constant 0 : i32
    return %c0_i32, %c0_i32_0 : i32, i32
  }
  func.func @transform_19(%arg0: i32, %arg1: i32) -> (i32, i32, i32) {
    %c0_i32 = arith.constant 0 : i32
    %c0_i32_0 = arith.constant 0 : i32
    %c0_i32_1 = arith.constant 0 : i32
    return %arg0, %c0_i32, %c0_i32_0 : i32, i32, i32
  }
}

</mosaic_0001>

<llo_original>
// kernel: vit_forward.1
$region0: #{vit_forward.1}
  #allocation0 [shape = 'u32[]', space=smem, size = 0x4, offset = 0x4, fixed_abs, tag = 'smem constant byte address 0x4 - core index']
  #allocation1 [shape = 'u32[72,128]{1,0:T(1,128)}', space=vmem, size = 0x9000, scoped, tag = 'internal scratch']
  #allocation2 [shape = 'f32[17,32]{1,0:T(8,128)}', space=vmem, size = 0x3000, scoped, tag = 'scratch operand']
  %s0 = inlined_call_operand.vmem [shape: f32[2,17,192], index: 0, kind: input, shape index: {}]
  %s1 = inlined_call_operand.vmem [shape: bf16[192,32], index: 1, kind: input, shape index: {}]
  %s2 = inlined_call_operand.vmem [shape: f32[2,17,32], index: 2, kind: input, shape index: {}]
  %s3 = inlined_call_operand.vmem [shape: f32[2,1,32], index: 3, kind: input, shape index: {}]
  %s4 = inlined_call_operand.vmem [shape: f32[2,1,32], index: 4, kind: input, shape index: {}]
  %s5 = inlined_call_operand.vmem [shape: bf16[2,32,96], index: 5, kind: input, shape index: {}]
  %s6 = inlined_call_operand.vmem [shape: f32[2,1,96], index: 6, kind: input, shape index: {}]
  %s7 = inlined_call_operand.vmem [shape: bf16[2,32,32], index: 7, kind: input, shape index: {}]
  %s8 = inlined_call_operand.vmem [shape: f32[2,1,32], index: 8, kind: input, shape index: {}]
  %s9 = inlined_call_operand.vmem [shape: bf16[2,32,2048], index: 9, kind: input, shape index: {}]
  %s10 = inlined_call_operand.vmem [shape: f32[2,1,2048], index: 10, kind: input, shape index: {}]
  %s11 = inlined_call_operand.vmem [shape: bf16[2,2048,32], index: 11, kind: input, shape index: {}]
  %s12 = inlined_call_operand.vmem [shape: f32[2,1,32], index: 12, kind: input, shape index: {}]
  %s13 = inlined_call_operand.vmem [shape: f32[1,32], index: 13, kind: input, shape index: {}]
  %s14 = inlined_call_operand.vmem [shape: f32[1,32], index: 14, kind: input, shape index: {}]
  %s15 = inlined_call_operand.vmem [shape: bf16[32,64], index: 15, kind: input, shape index: {}]
  %s16 = inlined_call_operand.vmem [shape: f32[1,64], index: 16, kind: input, shape index: {}]
  %s17 = inlined_call_operand.vmem [shape: bf16[64,10], index: 17, kind: input, shape index: {}]
  %s18 = inlined_call_operand.vmem [shape: f32[1,10], index: 18, kind: input, shape index: {}]
  %s19 = inlined_call_operand.hbm [shape: f32[2,1,10], index: 19, kind: output, shape index: {}]
  %s20 = sld [smem:[#allocation0]]
  $region117: #{vit_forward.1} parent=0
    _
  %s22 = ssub.s32 1, %s20
  %s23 = scalar_select 0, %s22, %s20
  $region1: #{vit_forward.1} parent=0
    #allocation3 [shape = 'u8[1024]{0}', space=vmem, size = 0x400, scoped, tag = 'output window, operand 0']
    #allocation4 [shape = 's32[2]{0}', space=sflag, size = 0x8, scoped, tag = 'scoped memory for vit_forward.1']
    %24 = vsyncpa [#allocation4], 0
    %s25 = scalar_lea.sflag [#allocation4], 1
    %26 = vsyncpa %s25, 0
    loop: start=0, step=1, limit=6
    $region2: #{vit_forward.1} parent=1 // loop_pre_header
      _
    $region3: #{vit_forward.1} parent=1 // loop_header
      %s28 = sphi 0, %s32
      %p29 = scmp.ge.s32.totalorder %s28, 6
      %s35 = sphi 0, %s47
      %s36 = sphi 0, %s43
      %s37 = sphi 0, %s35
      %s38 = sphi 0, %s36
      %s39 = sphi 0, %s37
      %s40 = sphi 0, %s38
      %s50 = sphi 0, %s52
      %s53 = sphi 0, %s50
      %s54 = sphi 0, %s53
      %s70 = sphi 0, %s54
      %s74 = sphi 0, %s74
      %s76 = sphi 0, %s74
      %s77 = sphi 0, %s76
      %s91 = sphi 0, %s77
      %s97 = sphi 0, %s99
      %s100 = sphi 0, %s97
      %s101 = sphi 0, %s100
      %s117 = sphi 0, %s101
      %s123 = sphi 0, %s125
      %s126 = sphi 0, %s123
      %s127 = sphi 0, %s126
      %s143 = sphi 0, %s127
      %s149 = sphi 0, %s151
      %s152 = sphi 0, %s149
      %s153 = sphi 0, %s152
      %s169 = sphi 0, %s153
      %s175 = sphi 0, %s177
      %s178 = sphi 0, %s175
      %s179 = sphi 0, %s178
      %s195 = sphi 0, %s179
      %s201 = sphi 0, %s203
      %s204 = sphi 0, %s201
      %s205 = sphi 0, %s204
      %s221 = sphi 0, %s205
      %s227 = sphi 0, %s229
      %s230 = sphi 0, %s227
      %s231 = sphi 0, %s230
      %s247 = sphi 0, %s231
      %s253 = sphi 0, %s255
      %s256 = sphi 0, %s253
      %s257 = sphi 0, %s256
      %s273 = sphi 0, %s257
      %s279 = sphi 0, %s281
      %s282 = sphi 0, %s279
      %s283 = sphi 0, %s282
      %s299 = sphi 0, %s283
      %s305 = sphi 0, %s307
      %s308 = sphi 0, %s305
      %s309 = sphi 0, %s308
      %s325 = sphi 0, %s309
      %s331 = sphi 0, %s333
      %s334 = sphi 0, %s331
      %s335 = sphi 0, %s334
      %s351 = sphi 0, %s335
      %s357 = sphi 0, %s359
      %s360 = sphi 0, %s357
      %s361 = sphi 0, %s360
      %s377 = sphi 0, %s361
      %s381 = sphi 0, %s381
      %s383 = sphi 0, %s381
      %s384 = sphi 0, %s383
      %s398 = sphi 0, %s384
      %s402 = sphi 0, %s402
      %s404 = sphi 0, %s402
      %s405 = sphi 0, %s404
      %s419 = sphi 0, %s405
      %s423 = sphi 0, %s423
      %s425 = sphi 0, %s423
      %s426 = sphi 0, %s425
      %s440 = sphi 0, %s426
      %s444 = sphi 0, %s444
      %s446 = sphi 0, %s444
      %s447 = sphi 0, %s446
      %s461 = sphi 0, %s447
      %s465 = sphi 0, %s465
      %s467 = sphi 0, %s465
      %s468 = sphi 0, %s467
      %s482 = sphi 0, %s468
      %s486 = sphi 0, %s486
      %s488 = sphi 0, %s486
      %s489 = sphi 0, %s488
      %s503 = sphi 0, %s489
      %s509 = sphi 0, %s511
      %s512 = sphi 0, %s509
      %s513 = sphi 0, %s512
      %s529 = sphi 0, %s513
    $region4: #{vit_forward.1} parent=1 // loop_header_branch
      %31 = sbr.rel (%p29) target = $region8
    $region5: #{vit_forward.1} parent=1 // loop_body
      %s33 = ssub.s32 %s28, 1
      %s34 = ssub.s32 %s28, 2
      %s41 = sadd.s32 1, %s36
      %p42 = scmp.ge.s32.totalorder %s41, 2
      %s43 = scalar_select %p42, 0, %s41
      %s44 = sadd.s32 1, %s35
      %s45 = scalar_select %p42, %s44, %s35
      %p46 = scmp.ge.s32.totalorder %s45, 2
      %s47 = scalar_select %p46, 0, %s45
      %s48 = ssub.s32 %s35, %s47
      %p49 = scmp.eq.s32.totalorder %s48, 0
      %s51 = sadd.s32 %s50, 1
      %s52 = scalar_select %p49, %s50, %s51
      %p55 = pneg %p49
      %p56 = scmp.eq.s32.totalorder %s28, 3
      %p57 = por %p55, %p56
      %p58 = scmp.ne.s32.totalorder %s50, %s53
      %p59 = scmp.eq.s32.totalorder %s28, 0
      %p60 = por %p58, %p59
      %p61 = scmp.ne.s32.totalorder %s50, %s53
      %p62 = scmp.eq.s32.totalorder %s33, 3
      %p63 = por %p61, %p62
      %p64 = scmp.ne.s32.totalorder %s53, %s54
      %p65 = scmp.eq.s32.totalorder %s33, 0
      %p66 = por %p64, %p65
      %p67 = scmp.ne.s32.totalorder %s53, %s54
      %p68 = scmp.eq.s32.totalorder %s34, 3
      %p69 = por %p67, %p68
      %p71 = scmp.ne.s32.totalorder %s54, %s70
      %p72 = scmp.eq.s32.totalorder %s34, 0
      %p73 = por %p71, %p72
      %s75 = sadd.s32 %s74, 1
      %p78 = scmp.eq.s32.totalorder %s28, 3
      %p79 = scmp.ne.s32.totalorder %s74, %s76
      %p80 = scmp.eq.s32.totalorder %s28, 0
      %p81 = por %p79, %p80
      %p82 = scmp.ne.s32.totalorder %s74, %s76
      %p83 = scmp.eq.s32.totalorder %s33, 3
      %p84 = por %p82, %p83
      %p85 = scmp.ne.s32.totalorder %s76, %s77
      %p86 = scmp.eq.s32.totalorder %s33, 0
      %p87 = por %p85, %p86
      %p88 = scmp.ne.s32.totalorder %s76, %s77
      %p89 = scmp.eq.s32.totalorder %s34, 3
      %p90 = por %p88, %p89
      %p92 = scmp.ne.s32.totalorder %s77, %s91
      %p93 = scmp.eq.s32.totalorder %s34, 0
      %p94 = por %p92, %p93
      %s95 = ssub.s32 %s35, %s47
      %p96 = scmp.eq.s32.totalorder %s95, 0
      %s98 = sadd.s32 %s97, 1
      %s99 = scalar_select %p96, %s97, %s98
      %p102 = pneg %p96
      %p103 = scmp.eq.s32.totalorder %s28, 3
      %p104 = por %p102, %p103
      %p105 = scmp.ne.s32.totalorder %s97, %s100
      %p106 = scmp.eq.s32.totalorder %s28, 0
      %p107 = por %p105, %p106
      %p108 = scmp.ne.s32.totalorder %s97, %s100
      %p109 = scmp.eq.s32.totalorder %s33, 3
      %p110 = por %p108, %p109
      %p111 = scmp.ne.s32.totalorder %s100, %s101
      %p112 = scmp.eq.s32.totalorder %s33, 0
      %p113 = por %p111, %p112
      %p114 = scmp.ne.s32.totalorder %s100, %s101
      %p115 = scmp.eq.s32.totalorder %s34, 3
      %p116 = por %p114, %p115
      %p118 = scmp.ne.s32.totalorder %s101, %s117
      %p119 = scmp.eq.s32.totalorder %s34, 0
      %p120 = por %p118, %p119
      %s121 = ssub.s32 %s36, %s43
      %p122 = scmp.eq.s32.totalorder %s121, 0
      %s124 = sadd.s32 %s123, 1
      %s125 = scalar_select %p122, %s123, %s124
      %p128 = pneg %p122
      %p129 = scmp.eq.s32.totalorder %s28, 3
      %p130 = por %p128, %p129
      %p131 = scmp.ne.s32.totalorder %s123, %s126
      %p132 = scmp.eq.s32.totalorder %s28, 0
      %p133 = por %p131, %p132
      %p134 = scmp.ne.s32.totalorder %s123, %s126
      %p135 = scmp.eq.s32.totalorder %s33, 3
      %p136 = por %p134, %p135
      %p137 = scmp.ne.s32.totalorder %s126, %s127
      %p138 = scmp.eq.s32.totalorder %s33, 0
      %p139 = por %p137, %p138
      %p140 = scmp.ne.s32.totalorder %s126, %s127
      %p141 = scmp.eq.s32.totalorder %s34, 3
      %p142 = por %p140, %p141
      %p144 = scmp.ne.s32.totalorder %s127, %s143
      %p145 = scmp.eq.s32.totalorder %s34, 0
      %p146 = por %p144, %p145
      %s147 = ssub.s32 %s36, %s43
      %p148 = scmp.eq.s32.totalorder %s147, 0
      %s150 = sadd.s32 %s149, 1
      %s151 = scalar_select %p148, %s149, %s150
      %p154 = pneg %p148
      %p155 = scmp.eq.s32.totalorder %s28, 3
      %p156 = por %p154, %p155
      %p157 = scmp.ne.s32.totalorder %s149, %s152
      %p158 = scmp.eq.s32.totalorder %s28, 0
      %p159 = por %p157, %p158
      %p160 = scmp.ne.s32.totalorder %s149, %s152
      %p161 = scmp.eq.s32.totalorder %s33, 3
      %p162 = por %p160, %p161
      %p163 = scmp.ne.s32.totalorder %s152, %s153
      %p164 = scmp.eq.s32.totalorder %s33, 0
      %p165 = por %p163, %p164
      %p166 = scmp.ne.s32.totalorder %s152, %s153
      %p167 = scmp.eq.s32.totalorder %s34, 3
      %p168 = por %p166, %p167
      %p170 = scmp.ne.s32.totalorder %s153, %s169
      %p171 = scmp.eq.s32.totalorder %s34, 0
      %p172 = por %p170, %p171
      %s173 = ssub.s32 %s36, %s43
      %p174 = scmp.eq.s32.totalorder %s173, 0
      %s176 = sadd.s32 %s175, 1
      %s177 = scalar_select %p174, %s175, %s176
      %p180 = pneg %p174
      %p181 = scmp.eq.s32.totalorder %s28, 3
      %p182 = por %p180, %p181
      %p183 = scmp.ne.s32.totalorder %s175, %s178
      %p184 = scmp.eq.s32.totalorder %s28, 0
      %p185 = por %p183, %p184
      %p186 = scmp.ne.s32.totalorder %s175, %s178
      %p187 = scmp.eq.s32.totalorder %s33, 3
      %p188 = por %p186, %p187
      %p189 = scmp.ne.s32.totalorder %s178, %s179
      %p190 = scmp.eq.s32.totalorder %s33, 0
      %p191 = por %p189, %p190
      %p192 = scmp.ne.s32.totalorder %s178, %s179
      %p193 = scmp.eq.s32.totalorder %s34, 3
      %p194 = por %p192, %p193
      %p196 = scmp.ne.s32.totalorder %s179, %s195
      %p197 = scmp.eq.s32.totalorder %s34, 0
      %p198 = por %p196, %p197
      %s199 = ssub.s32 %s36, %s43
      %p200 = scmp.eq.s32.totalorder %s199, 0
      %s202 = sadd.s32 %s201, 1
      %s203 = scalar_select %p200, %s201, %s202
      %p206 = pneg %p200
      %p207 = scmp.eq.s32.totalorder %s28, 3
      %p208 = por %p206, %p207
      %p209 = scmp.ne.s32.totalorder %s201, %s204
      %p210 = scmp.eq.s32.totalorder %s28, 0
      %p211 = por %p209, %p210
      %p212 = scmp.ne.s32.totalorder %s201, %s204
      %p213 = scmp.eq.s32.totalorder %s33, 3
      %p214 = por %p212, %p213
      %p215 = scmp.ne.s32.totalorder %s204, %s205
      %p216 = scmp.eq.s32.totalorder %s33, 0
      %p217 = por %p215, %p216
      %p218 = scmp.ne.s32.totalorder %s204, %s205
      %p219 = scmp.eq.s32.totalorder %s34, 3
      %p220 = por %p218, %p219
      %p222 = scmp.ne.s32.totalorder %s205, %s221
      %p223 = scmp.eq.s32.totalorder %s34, 0
      %p224 = por %p222, %p223
      %s225 = ssub.s32 %s36, %s43
      %p226 = scmp.eq.s32.totalorder %s225, 0
      %s228 = sadd.s32 %s227, 1
      %s229 = scalar_select %p226, %s227, %s228
      %p232 = pneg %p226
      %p233 = scmp.eq.s32.totalorder %s28, 3
      %p234 = por %p232, %p233
      %p235 = scmp.ne.s32.totalorder %s227, %s230
      %p236 = scmp.eq.s32.totalorder %s28, 0
      %p237 = por %p235, %p236
      %p238 = scmp.ne.s32.totalorder %s227, %s230
      %p239 = scmp.eq.s32.totalorder %s33, 3
      %p240 = por %p238, %p239
      %p241 = scmp.ne.s32.totalorder %s230, %s231
      %p242 = scmp.eq.s32.totalorder %s33, 0
      %p243 = por %p241, %p242
      %p244 = scmp.ne.s32.totalorder %s230, %s231
      %p245 = scmp.eq.s32.totalorder %s34, 3
      %p246 = por %p244, %p245
      %p248 = scmp.ne.s32.totalorder %s231, %s247
      %p249 = scmp.eq.s32.totalorder %s34, 0
      %p250 = por %p248, %p249
      %s251 = ssub.s32 %s36, %s43
      %p252 = scmp.eq.s32.totalorder %s251, 0
      %s254 = sadd.s32 %s253, 1
      %s255 = scalar_select %p252, %s253, %s254
      %p258 = pneg %p252
      %p259 = scmp.eq.s32.totalorder %s28, 3
      %p260 = por %p258, %p259
      %p261 = scmp.ne.s32.totalorder %s253, %s256
      %p262 = scmp.eq.s32.totalorder %s28, 0
      %p263 = por %p261, %p262
      %p264 = scmp.ne.s32.totalorder %s253, %s256
      %p265 = scmp.eq.s32.totalorder %s33, 3
      %p266 = por %p264, %p265
      %p267 = scmp.ne.s32.totalorder %s256, %s257
      %p268 = scmp.eq.s32.totalorder %s33, 0
      %p269 = por %p267, %p268
      %p270 = scmp.ne.s32.totalorder %s256, %s257
      %p271 = scmp.eq.s32.totalorder %s34, 3
      %p272 = por %p270, %p271
      %p274 = scmp.ne.s32.totalorder %s257, %s273
      %p275 = scmp.eq.s32.totalorder %s34, 0
      %p276 = por %p274, %p275
      %s277 = ssub.s32 %s36, %s43
      %p278 = scmp.eq.s32.totalorder %s277, 0
      %s280 = sadd.s32 %s279, 1
      %s281 = scalar_select %p278, %s279, %s280
      %p284 = pneg %p278
      %p285 = scmp.eq.s32.totalorder %s28, 3
      %p286 = por %p284, %p285
      %p287 = scmp.ne.s32.totalorder %s279, %s282
      %p288 = scmp.eq.s32.totalorder %s28, 0
      %p289 = por %p287, %p288
      %p290 = scmp.ne.s32.totalorder %s279, %s282
      %p291 = scmp.eq.s32.totalorder %s33, 3
      %p292 = por %p290, %p291
      %p293 = scmp.ne.s32.totalorder %s282, %s283
      %p294 = scmp.eq.s32.totalorder %s33, 0
      %p295 = por %p293, %p294
      %p296 = scmp.ne.s32.totalorder %s282, %s283
      %p297 = scmp.eq.s32.totalorder %s34, 3
      %p298 = por %p296, %p297
      %p300 = scmp.ne.s32.totalorder %s283, %s299
      %p301 = scmp.eq.s32.totalorder %s34, 0
      %p302 = por %p300, %p301
      %s303 = ssub.s32 %s36, %s43
      %p304 = scmp.eq.s32.totalorder %s303, 0
      %s306 = sadd.s32 %s305, 1
      %s307 = scalar_select %p304, %s305, %s306
      %p310 = pneg %p304
      %p311 = scmp.eq.s32.totalorder %s28, 3
      %p312 = por %p310, %p311
      %p313 = scmp.ne.s32.totalorder %s305, %s308
      %p314 = scmp.eq.s32.totalorder %s28, 0
      %p315 = por %p313, %p314
      %p316 = scmp.ne.s32.totalorder %s305, %s308
      %p317 = scmp.eq.s32.totalorder %s33, 3
      %p318 = por %p316, %p317
      %p319 = scmp.ne.s32.totalorder %s308, %s309
      %p320 = scmp.eq.s32.totalorder %s33, 0
      %p321 = por %p319, %p320
      %p322 = scmp.ne.s32.totalorder %s308, %s309
      %p323 = scmp.eq.s32.totalorder %s34, 3
      %p324 = por %p322, %p323
      %p326 = scmp.ne.s32.totalorder %s309, %s325
      %p327 = scmp.eq.s32.totalorder %s34, 0
      %p328 = por %p326, %p327
      %s329 = ssub.s32 %s36, %s43
      %p330 = scmp.eq.s32.totalorder %s329, 0
      %s332 = sadd.s32 %s331, 1
      %s333 = scalar_select %p330, %s331, %s332
      %p336 = pneg %p330
      %p337 = scmp.eq.s32.totalorder %s28, 3
      %p338 = por %p336, %p337
      %p339 = scmp.ne.s32.totalorder %s331, %s334
      %p340 = scmp.eq.s32.totalorder %s28, 0
      %p341 = por %p339, %p340
      %p342 = scmp.ne.s32.totalorder %s331, %s334
      %p343 = scmp.eq.s32.totalorder %s33, 3
      %p344 = por %p342, %p343
      %p345 = scmp.ne.s32.totalorder %s334, %s335
      %p346 = scmp.eq.s32.totalorder %s33, 0
      %p347 = por %p345, %p346
      %p348 = scmp.ne.s32.totalorder %s334, %s335
      %p349 = scmp.eq.s32.totalorder %s34, 3
      %p350 = por %p348, %p349
      %p352 = scmp.ne.s32.totalorder %s335, %s351
      %p353 = scmp.eq.s32.totalorder %s34, 0
      %p354 = por %p352, %p353
      %s355 = ssub.s32 %s36, %s43
      %p356 = scmp.eq.s32.totalorder %s355, 0
      %s358 = sadd.s32 %s357, 1
      %s359 = scalar_select %p356, %s357, %s358
      %p362 = pneg %p356
      %p363 = scmp.eq.s32.totalorder %s28, 3
      %p364 = por %p362, %p363
      %p365 = scmp.ne.s32.totalorder %s357, %s360
      %p366 = scmp.eq.s32.totalorder %s28, 0
      %p367 = por %p365, %p366
      %p368 = scmp.ne.s32.totalorder %s357, %s360
      %p369 = scmp.eq.s32.totalorder %s33, 3
      %p370 = por %p368, %p369
      %p371 = scmp.ne.s32.totalorder %s360, %s361
      %p372 = scmp.eq.s32.totalorder %s33, 0
      %p373 = por %p371, %p372
      %p374 = scmp.ne.s32.totalorder %s360, %s361
      %p375 = scmp.eq.s32.totalorder %s34, 3
      %p376 = por %p374, %p375
      %p378 = scmp.ne.s32.totalorder %s361, %s377
      %p379 = scmp.eq.s32.totalorder %s34, 0
      %p380 = por %p378, %p379
      %s382 = sadd.s32 %s381, 1
      %p385 = scmp.eq.s32.totalorder %s28, 3
      %p386 = scmp.ne.s32.totalorder %s381, %s383
      %p387 = scmp.eq.s32.totalorder %s28, 0
      %p388 = por %p386, %p387
      %p389 = scmp.ne.s32.totalorder %s381, %s383
      %p390 = scmp.eq.s32.totalorder %s33, 3
      %p391 = por %p389, %p390
      %p392 = scmp.ne.s32.totalorder %s383, %s384
      %p393 = scmp.eq.s32.totalorder %s33, 0
      %p394 = por %p392, %p393
      %p395 = scmp.ne.s32.totalorder %s383, %s384
      %p396 = scmp.eq.s32.totalorder %s34, 3
      %p397 = por %p395, %p396
      %p399 = scmp.ne.s32.totalorder %s384, %s398
      %p400 = scmp.eq.s32.totalorder %s34, 0
      %p401 = por %p399, %p400
      %s403 = sadd.s32 %s402, 1
      %p406 = scmp.eq.s32.totalorder %s28, 3
      %p407 = scmp.ne.s32.totalorder %s402, %s404
      %p408 = scmp.eq.s32.totalorder %s28, 0
      %p409 = por %p407, %p408
      %p410 = scmp.ne.s32.totalorder %s402, %s404
      %p411 = scmp.eq.s32.totalorder %s33, 3
      %p412 = por %p410, %p411
      %p413 = scmp.ne.s32.totalorder %s404, %s405
      %p414 = scmp.eq.s32.totalorder %s33, 0
      %p415 = por %p413, %p414
      %p416 = scmp.ne.s32.totalorder %s404, %s405
      %p417 = scmp.eq.s32.totalorder %s34, 3
      %p418 = por %p416, %p417
      %p420 = scmp.ne.s32.totalorder %s405, %s419
      %p421 = scmp.eq.s32.totalorder %s34, 0
      %p422 = por %p420, %p421
      %s424 = sadd.s32 %s423, 1
      %p427 = scmp.eq.s32.totalorder %s28, 3
      %p428 = scmp.ne.s32.totalorder %s423, %s425
      %p429 = scmp.eq.s32.totalorder %s28, 0
      %p430 = por %p428, %p429
      %p431 = scmp.ne.s32.totalorder %s423, %s425
      %p432 = scmp.eq.s32.totalorder %s33, 3
      %p433 = por %p431, %p432
      %p434 = scmp.ne.s32.totalorder %s425, %s426
      %p435 = scmp.eq.s32.totalorder %s33, 0
      %p436 = por %p434, %p435
      %p437 = scmp.ne.s32.totalorder %s425, %s426
      %p438 = scmp.eq.s32.totalorder %s34, 3
      %p439 = por %p437, %p438
      %p441 = scmp.ne.s32.totalorder %s426, %s440
      %p442 = scmp.eq.s32.totalorder %s34, 0
      %p443 = por %p441, %p442
      %s445 = sadd.s32 %s444, 1
      %p448 = scmp.eq.s32.totalorder %s28, 3
      %p449 = scmp.ne.s32.totalorder %s444, %s446
      %p450 = scmp.eq.s32.totalorder %s28, 0
      %p451 = por %p449, %p450
      %p452 = scmp.ne.s32.totalorder %s444, %s446
      %p453 = scmp.eq.s32.totalorder %s33, 3
      %p454 = por %p452, %p453
      %p455 = scmp.ne.s32.totalorder %s446, %s447
      %p456 = scmp.eq.s32.totalorder %s33, 0
      %p457 = por %p455, %p456
      %p458 = scmp.ne.s32.totalorder %s446, %s447
      %p459 = scmp.eq.s32.totalorder %s34, 3
      %p460 = por %p458, %p459
      %p462 = scmp.ne.s32.totalorder %s447, %s461
      %p463 = scmp.eq.s32.totalorder %s34, 0
      %p464 = por %p462, %p463
      %s466 = sadd.s32 %s465, 1
      %p469 = scmp.eq.s32.totalorder %s28, 3
      %p470 = scmp.ne.s32.totalorder %s465, %s467
      %p471 = scmp.eq.s32.totalorder %s28, 0
      %p472 = por %p470, %p471
      %p473 = scmp.ne.s32.totalorder %s465, %s467
      %p474 = scmp.eq.s32.totalorder %s33, 3
      %p475 = por %p473, %p474
      %p476 = scmp.ne.s32.totalorder %s467, %s468
      %p477 = scmp.eq.s32.totalorder %s33, 0
      %p478 = por %p476, %p477
      %p479 = scmp.ne.s32.totalorder %s467, %s468
      %p480 = scmp.eq.s32.totalorder %s34, 3
      %p481 = por %p479, %p480
      %p483 = scmp.ne.s32.totalorder %s468, %s482
      %p484 = scmp.eq.s32.totalorder %s34, 0
      %p485 = por %p483, %p484
      %s487 = sadd.s32 %s486, 1
      %p490 = scmp.eq.s32.totalorder %s28, 3
      %p491 = scmp.ne.s32.totalorder %s486, %s488
      %p492 = scmp.eq.s32.totalorder %s28, 0
      %p493 = por %p491, %p492
      %p494 = scmp.ne.s32.totalorder %s486, %s488
      %p495 = scmp.eq.s32.totalorder %s33, 3
      %p496 = por %p494, %p495
      %p497 = scmp.ne.s32.totalorder %s488, %s489
      %p498 = scmp.eq.s32.totalorder %s33, 0
      %p499 = por %p497, %p498
      %p500 = scmp.ne.s32.totalorder %s488, %s489
      %p501 = scmp.eq.s32.totalorder %s34, 3
      %p502 = por %p500, %p501
      %p504 = scmp.ne.s32.totalorder %s489, %s503
      %p505 = scmp.eq.s32.totalorder %s34, 0
      %p506 = por %p504, %p505
      %s507 = ssub.s32 %s35, %s47
      %p508 = scmp.eq.s32.totalorder %s507, 0
      %s510 = sadd.s32 %s509, 1
      %s511 = scalar_select %p508, %s509, %s510
      %p514 = pneg %p508
      %p515 = scmp.eq.s32.totalorder %s28, 3
      %p516 = por %p514, %p515
      %p517 = scmp.ne.s32.totalorder %s509, %s512
      %p518 = scmp.eq.s32.totalorder %s28, 0
      %p519 = por %p517, %p518
      %p520 = scmp.ne.s32.totalorder %s509, %s512
      %p521 = scmp.eq.s32.totalorder %s33, 3
      %p522 = por %p520, %p521
      %p523 = scmp.ne.s32.totalorder %s512, %s513
      %p524 = scmp.eq.s32.totalorder %s33, 0
      %p525 = por %p523, %p524
      %p526 = scmp.ne.s32.totalorder %s512, %s513
      %p527 = scmp.eq.s32.totalorder %s34, 3
      %p528 = por %p526, %p527
      %p530 = scmp.ne.s32.totalorder %s513, %s529
      %p531 = scmp.eq.s32.totalorder %s34, 0
      %p532 = por %p530, %p531
      %p533 = scmp.le.s32.totalorder 1, %s28
      %p534 = scmp.lt.s32.totalorder %s28, 5
      %p535 = pnand %p533, %p534
      %p536 = pneg %p535
      // Predicated region
      $region9: #{vit_forward.1} parent=5 // pred_check
        _
      $region10: #{vit_forward.1} parent=5 // pred_check_branch
        %538 = sbr.rel (%p535) target = $region12
      $region11: #{vit_forward.1} parent=5 // pred_region
        %s539 = ssub.s32 %s28, 1
        // Predicated region
        $region13: #{vit_forward.1} parent=11 // pred_check
          %p540 = pneg %p87
        $region14: #{vit_forward.1} parent=11 // pred_check_branch
          %542 = sbr.rel (%p540) target = $region16
        $region15: #{vit_forward.1} parent=11 // pred_region
          _
        $region16: #{vit_forward.1} parent=11 // pred_fallthru
          _
        // Predicated region
        $region17: #{vit_forward.1} parent=11 // pred_check
          %p543 = pneg %p394
        $region18: #{vit_forward.1} parent=11 // pred_check_branch
          %545 = sbr.rel (%p543) target = $region20
        $region19: #{vit_forward.1} parent=11 // pred_region
          _
        $region20: #{vit_forward.1} parent=11 // pred_fallthru
          _
        // Predicated region
        $region21: #{vit_forward.1} parent=11 // pred_check
          %p546 = pneg %p415
        $region22: #{vit_forward.1} parent=11 // pred_check_branch
          %548 = sbr.rel (%p546) target = $region24
        $region23: #{vit_forward.1} parent=11 // pred_region
          _
        $region24: #{vit_forward.1} parent=11 // pred_fallthru
          _
        // Predicated region
        $region25: #{vit_forward.1} parent=11 // pred_check
          %p549 = pneg %p436
        $region26: #{vit_forward.1} parent=11 // pred_check_branch
          %551 = sbr.rel (%p549) target = $region28
        $region27: #{vit_forward.1} parent=11 // pred_region
          _
        $region28: #{vit_forward.1} parent=11 // pred_fallthru
          _
        // Predicated region
        $region29: #{vit_forward.1} parent=11 // pred_check
          %p552 = pneg %p457
        $region30: #{vit_forward.1} parent=11 // pred_check_branch
          %554 = sbr.rel (%p552) target = $region32
        $region31: #{vit_forward.1} parent=11 // pred_region
          _
        $region32: #{vit_forward.1} parent=11 // pred_fallthru
          _
        // Predicated region
        $region33: #{vit_forward.1} parent=11 // pred_check
          %p555 = pneg %p478
        $region34: #{vit_forward.1} parent=11 // pred_check_branch
          %557 = sbr.rel (%p555) target = $region36
        $region35: #{vit_forward.1} parent=11 // pred_region
          _
        $region36: #{vit_forward.1} parent=11 // pred_fallthru
          _
        // Predicated region
        $region37: #{vit_forward.1} parent=11 // pred_check
          %p558 = pneg %p499
        $region38: #{vit_forward.1} parent=11 // pred_check_branch
          %560 = sbr.rel (%p558) target = $region40
        $region39: #{vit_forward.1} parent=11 // pred_region
          _
        $region40: #{vit_forward.1} parent=11 // pred_fallthru
          _
      $region12: #{vit_forward.1} parent=5 // pred_fallthru
        _
      %p561 = scmp.lt.s32.totalorder %s28, 4
      // Predicated region
      $region41: #{vit_forward.1} parent=5 // pred_check
        %p562 = pneg %p561
      $region42: #{vit_forward.1} parent=5 // pred_check_branch
        %564 = sbr.rel (%p562) target = $region44
      $region43: #{vit_forward.1} parent=5 // pred_region
        // Predicated region
        $region45: #{vit_forward.1} parent=43 // pred_check
          %p565 = pneg %p60
        $region46: #{vit_forward.1} parent=43 // pred_check_branch
          %567 = sbr.rel (%p565) target = $region48
        $region47: #{vit_forward.1} parent=43 // pred_region
          %p568 = scmp.lt.s32.totalorder %s35, 1
          %s569 = scalar_select %p568, %s35, 1
          %s570 = smul.addr %s569, 6
          %s571 = smul.addr %s570, 8
          %s572 = scalar_lea.vmem %s0, %s571
        $region48: #{vit_forward.1} parent=43 // pred_fallthru
          _
        // Predicated region
        $region49: #{vit_forward.1} parent=43 // pred_check
          %p573 = pneg %p107
        $region50: #{vit_forward.1} parent=43 // pred_check_branch
          %575 = sbr.rel (%p573) target = $region52
        $region51: #{vit_forward.1} parent=43 // pred_region
          %p576 = scmp.lt.s32.totalorder %s35, 1
          %s577 = scalar_select %p576, %s35, 1
          %s578 = smul.addr %s577, 3
          %s579 = smul.addr %s578, 8
          %s580 = scalar_lea.vmem %s2, %s579
        $region52: #{vit_forward.1} parent=43 // pred_fallthru
          _
        // Predicated region
        $region53: #{vit_forward.1} parent=43 // pred_check
          %p581 = pneg %p133
        $region54: #{vit_forward.1} parent=43 // pred_check_branch
          %583 = sbr.rel (%p581) target = $region56
        $region55: #{vit_forward.1} parent=43 // pred_region
          %p584 = scmp.lt.s32.totalorder %s36, 1
          %s585 = scalar_select %p584, %s36, 1
          %s586 = scalar_lea.vmem %s3, %s585
        $region56: #{vit_forward.1} parent=43 // pred_fallthru
          _
        // Predicated region
        $region57: #{vit_forward.1} parent=43 // pred_check
          %p587 = pneg %p159
        $region58: #{vit_forward.1} parent=43 // pred_check_branch
          %589 = sbr.rel (%p587) target = $region60
        $region59: #{vit_forward.1} parent=43 // pred_region
          %p590 = scmp.lt.s32.totalorder %s36, 1
          %s591 = scalar_select %p590, %s36, 1
          %s592 = scalar_lea.vmem %s4, %s591
        $region60: #{vit_forward.1} parent=43 // pred_fallthru
          _
        // Predicated region
        $region61: #{vit_forward.1} parent=43 // pred_check
          %p593 = pneg %p185
        $region62: #{vit_forward.1} parent=43 // pred_check_branch
          %595 = sbr.rel (%p593) target = $region64
        $region63: #{vit_forward.1} parent=43 // pred_region
          %p596 = scmp.lt.s32.totalorder %s36, 1
          %s597 = scalar_select %p596, %s36, 1
          %s598 = smul.addr %s597, 4
          %s599 = smul.addr %s598, 4
          %s600 = scalar_lea.vmem %s5, %s599
        $region64: #{vit_forward.1} parent=43 // pred_fallthru
          _
        // Predicated region
        $region65: #{vit_forward.1} parent=43 // pred_check
          %p601 = pneg %p211
        $region66: #{vit_forward.1} parent=43 // pred_check_branch
          %603 = sbr.rel (%p601) target = $region68
        $region67: #{vit_forward.1} parent=43 // pred_region
          %p604 = scmp.lt.s32.totalorder %s36, 1
          %s605 = scalar_select %p604, %s36, 1
          %s606 = scalar_lea.vmem %s6, %s605
        $region68: #{vit_forward.1} parent=43 // pred_fallthru
          _
        // Predicated region
        $region69: #{vit_forward.1} parent=43 // pred_check
          %p607 = pneg %p237
        $region70: #{vit_forward.1} parent=43 // pred_check_branch
          %609 = sbr.rel (%p607) target = $region72
        $region71: #{vit_forward.1} parent=43 // pred_region
          %p610 = scmp.lt.s32.totalorder %s36, 1
          %s611 = scalar_select %p610, %s36, 1
          %s612 = smul.addr %s611, 4
          %s613 = smul.addr %s612, 4
          %s614 = scalar_lea.vmem %s7, %s613
        $region72: #{vit_forward.1} parent=43 // pred_fallthru
          _
        // Predicated region
        $region73: #{vit_forward.1} parent=43 // pred_check
          %p615 = pneg %p263
        $region74: #{vit_forward.1} parent=43 // pred_check_branch
          %617 = sbr.rel (%p615) target = $region76
        $region75: #{vit_forward.1} parent=43 // pred_region
          %p618 = scmp.lt.s32.totalorder %s36, 1
          %s619 = scalar_select %p618, %s36, 1
          %s620 = scalar_lea.vmem %s8, %s619
        $region76: #{vit_forward.1} parent=43 // pred_fallthru
          _
        // Predicated region
        $region77: #{vit_forward.1} parent=43 // pred_check
          %p621 = pneg %p289
        $region78: #{vit_forward.1} parent=43 // pred_check_branch
          %623 = sbr.rel (%p621) target = $region80
        $region79: #{vit_forward.1} parent=43 // pred_region
          %p624 = scmp.lt.s32.totalorder %s36, 1
          %s625 = scalar_select %p624, %s36, 1
          %s626 = smul.addr %s625, 64
          %s627 = smul.addr %s626, 4
          %s628 = scalar_lea.vmem %s9, %s627
        $region80: #{vit_forward.1} parent=43 // pred_fallthru
          _
        // Predicated region
        $region81: #{vit_forward.1} parent=43 // pred_check
          %p629 = pneg %p315
        $region82: #{vit_forward.1} parent=43 // pred_check_branch
          %631 = sbr.rel (%p629) target = $region84
        $region83: #{vit_forward.1} parent=43 // pred_region
          %p632 = scmp.lt.s32.totalorder %s36, 1
          %s633 = scalar_select %p632, %s36, 1
          %s634 = smul.addr %s633, 16
          %s635 = scalar_lea.vmem %s10, %s634
        $region84: #{vit_forward.1} parent=43 // pred_fallthru
          _
        // Predicated region
        $region85: #{vit_forward.1} parent=43 // pred_check
          %p636 = pneg %p341
        $region86: #{vit_forward.1} parent=43 // pred_check_branch
          %638 = sbr.rel (%p636) target = $region88
        $region87: #{vit_forward.1} parent=43 // pred_region
          %p639 = scmp.lt.s32.totalorder %s36, 1
          %s640 = scalar_select %p639, %s36, 1
          %s641 = smul.addr %s640, 256
          %s642 = smul.addr %s641, 4
          %s643 = scalar_lea.vmem %s11, %s642
        $region88: #{vit_forward.1} parent=43 // pred_fallthru
          _
        // Predicated region
        $region89: #{vit_forward.1} parent=43 // pred_check
          %p644 = pneg %p367
        $region90: #{vit_forward.1} parent=43 // pred_check_branch
          %646 = sbr.rel (%p644) target = $region92
        $region91: #{vit_forward.1} parent=43 // pred_region
          %p647 = scmp.lt.s32.totalorder %s36, 1
          %s648 = scalar_select %p647, %s36, 1
          %s649 = scalar_lea.vmem %s12, %s648
        $region92: #{vit_forward.1} parent=43 // pred_fallthru
          _
      $region44: #{vit_forward.1} parent=5 // pred_fallthru
        _
      %p650 = scmp.le.s32.totalorder 1, %s28
      %p651 = scmp.lt.s32.totalorder %s28, 5
      %p652 = pnand %p650, %p651
      %p653 = pneg %p652
      // Predicated region
      $region93: #{vit_forward.1} parent=5 // pred_check
        _
      $region94: #{vit_forward.1} parent=5 // pred_check_branch
        %655 = sbr.rel (%p652) target = $region96
      $region95: #{vit_forward.1} parent=5 // pred_region
        %s656 = ssub.s32 %s28, 1
        %p657 = scmp.lt.s32.totalorder %s37, 1
        %s658 = scalar_select %p657, %s37, 1
        %s659 = smul.addr %s658, 6
        %s660 = smul.addr %s659, 8
        %s661 = scalar_lea.vmem %s0, %s660
        %p662 = pneg %p66
        %p663 = pneg %p63
        %p664 = pneg %p87
        %p665 = pneg %p84
        %p666 = scmp.lt.s32.totalorder %s37, 1
        %s667 = scalar_select %p666, %s37, 1
        %s668 = smul.addr %s667, 3
        %s669 = smul.addr %s668, 8
        %s670 = scalar_lea.vmem %s2, %s669
        %p671 = pneg %p113
        %p672 = pneg %p110
        %p673 = scmp.lt.s32.totalorder %s38, 1
        %s674 = scalar_select %p673, %s38, 1
        %s675 = scalar_lea.vmem %s3, %s674
        %p676 = pneg %p139
        %p677 = pneg %p136
        %p678 = scmp.lt.s32.totalorder %s38, 1
        %s679 = scalar_select %p678, %s38, 1
        %s680 = scalar_lea.vmem %s4, %s679
        %p681 = pneg %p165
        %p682 = pneg %p162
        %p683 = scmp.lt.s32.totalorder %s38, 1
        %s684 = scalar_select %p683, %s38, 1
        %s685 = smul.addr %s684, 4
        %s686 = smul.addr %s685, 4
        %s687 = scalar_lea.vmem %s5, %s686
        %p688 = pneg %p191
        %p689 = pneg %p188
        %p690 = scmp.lt.s32.totalorder %s38, 1
        %s691 = scalar_select %p690, %s38, 1
        %s692 = scalar_lea.vmem %s6, %s691
        %p693 = pneg %p217
        %p694 = pneg %p214
        %p695 = scmp.lt.s32.totalorder %s38, 1
        %s696 = scalar_select %p695, %s38, 1
        %s697 = smul.addr %s696, 4
        %s698 = smul.addr %s697, 4
        %s699 = scalar_lea.vmem %s7, %s698
        %p700 = pneg %p243
        %p701 = pneg %p240
        %p702 = scmp.lt.s32.totalorder %s38, 1
        %s703 = scalar_select %p702, %s38, 1
        %s704 = scalar_lea.vmem %s8, %s703
        %p705 = pneg %p269
        %p706 = pneg %p266
        %p707 = scmp.lt.s32.totalorder %s38, 1
        %s708 = scalar_select %p707, %s38, 1
        %s709 = smul.addr %s708, 64
        %s710 = smul.addr %s709, 4
        %s711 = scalar_lea.vmem %s9, %s710
        %p712 = pneg %p295
        %p713 = pneg %p292
        %p714 = scmp.lt.s32.totalorder %s38, 1
        %s715 = scalar_select %p714, %s38, 1
        %s716 = smul.addr %s715, 16
        %s717 = scalar_lea.vmem %s10, %s716
        %p718 = pneg %p321
        %p719 = pneg %p318
        %p720 = scmp.lt.s32.totalorder %s38, 1
        %s721 = scalar_select %p720, %s38, 1
        %s722 = smul.addr %s721, 256
        %s723 = smul.addr %s722, 4
        %s724 = scalar_lea.vmem %s11, %s723
        %p725 = pneg %p347
        %p726 = pneg %p344
        %p727 = scmp.lt.s32.totalorder %s38, 1
        %s728 = scalar_select %p727, %s38, 1
        %s729 = scalar_lea.vmem %s12, %s728
        %p730 = pneg %p373
        %p731 = pneg %p370
        %p732 = pneg %p394
        %p733 = pneg %p391
        %p734 = pneg %p415
        %p735 = pneg %p412
        %p736 = pneg %p436
        %p737 = pneg %p433
        %p738 = pneg %p457
        %p739 = pneg %p454
        %p740 = pneg %p478
        %p741 = pneg %p475
        %p742 = pneg %p499
        %p743 = pneg %p496
        %p744 = pneg %p525
        %p745 = pneg %p522
        %s746 = sand.u32 %s512, 1
        %s747 = scalar_lea.sflag [#allocation4], %s746
        %s748 = sand.u32 %s512, 1
        %s749 = scalar_lea.vmem [#allocation3], %s748
        %p750 = scmp.lt.s32.totalorder %s37, 1
        %s751 = scalar_select %p750, %s37, 1
        %s752 = smul.addr %s751, 6
        %s753 = smul.addr %s752, 8
        %s754 = scalar_lea.vmem %s0, %s753
        %p755 = scmp.lt.s32.totalorder %s37, 1
        %s756 = scalar_select %p755, %s37, 1
        %s757 = smul.addr %s756, 3
        %s758 = smul.addr %s757, 8
        %s759 = scalar_lea.vmem %s2, %s758
        %p760 = scmp.lt.s32.totalorder %s38, 1
        %s761 = scalar_select %p760, %s38, 1
        %s762 = scalar_lea.vmem %s3, %s761
        %p763 = scmp.lt.s32.totalorder %s38, 1
        %s764 = scalar_select %p763, %s38, 1
        %s765 = scalar_lea.vmem %s4, %s764
        %p766 = scmp.lt.s32.totalorder %s38, 1
        %s767 = scalar_select %p766, %s38, 1
        %s768 = smul.addr %s767, 4
        %s769 = smul.addr %s768, 4
        %s770 = scalar_lea.vmem %s5, %s769
        %p771 = scmp.lt.s32.totalorder %s38, 1
        %s772 = scalar_select %p771, %s38, 1
        %s773 = scalar_lea.vmem %s6, %s772
        %p774 = scmp.lt.s32.totalorder %s38, 1
        %s775 = scalar_select %p774, %s38, 1
        %s776 = smul.addr %s775, 4
        %s777 = smul.addr %s776, 4
        %s778 = scalar_lea.vmem %s7, %s777
        %p779 = scmp.lt.s32.totalorder %s38, 1
        %s780 = scalar_select %p779, %s38, 1
        %s781 = scalar_lea.vmem %s8, %s780
        %p782 = scmp.lt.s32.totalorder %s38, 1
        %s783 = scalar_select %p782, %s38, 1
        %s784 = smul.addr %s783, 64
        %s785 = smul.addr %s784, 4
        %s786 = scalar_lea.vmem %s9, %s785
        %p787 = scmp.lt.s32.totalorder %s38, 1
        %s788 = scalar_select %p787, %s38, 1
        %s789 = smul.addr %s788, 16
        %s790 = scalar_lea.vmem %s10, %s789
        %p791 = scmp.lt.s32.totalorder %s38, 1
        %s792 = scalar_select %p791, %s38, 1
        %s793 = smul.addr %s792, 256
        %s794 = smul.addr %s793, 4
        %s795 = scalar_lea.vmem %s11, %s794
        %p796 = scmp.lt.s32.totalorder %s38, 1
        %s797 = scalar_select %p796, %s38, 1
        %s798 = scalar_lea.vmem %s12, %s797
        %p800 = scmp.eq.s32.totalorder %s38, 0
        // Predicated region
        $region97: #{vit_forward.1} parent=95 // pred_check
          %p801 = pneg %p800
        $region98: #{vit_forward.1} parent=95 // pred_check_branch
          %803 = sbr.rel (%p801) target = $region100
        $region99: #{vit_forward.1} parent=95 // pred_region
          %v804 = vld [vmem:[%s754] sm:$0xff]
          %v805 = vld [vmem:[%s754 + $0x8] sm:$0xff]
          %v806 = vld [vmem:[%s754 + $0x10] sm:$0xff]
          %v807 = vld [vmem:[%s754 + $0x18] sm:$0xff]
          %v808 = vld [vmem:[%s754 + $0x20] sm:$0x1]
          %v809 = vld [vmem:[%s754 + $0x28] sm:$0x1]
          %v810 = vpack.c.bf16 %v806, %v804
          %v811 = vpack.c.bf16 %v807, %v805
          %v812 = vpack.c.bf16 %v808, %v808
          %v813 = vpack.c.bf16 %v809, %v809
          %v814 = vld [vmem:[%s1] sm:$0xf]
          %v815 = vld [vmem:[%s1 + $0x4] sm:$0xf]
          %v816 = vld [vmem:[%s1 + $0x8] sm:$0xf]
          %v817 = vld [vmem:[%s1 + $0xc] sm:$0xf]
          %v818 = vld [vmem:[%s1 + $0x10] sm:$0xf]
          %v819 = vld [vmem:[%s1 + $0x14] sm:$0xf]
          %v820 = vld [vmem:[%s1 + $0x18] sm:$0xf]
          %v821 = vld [vmem:[%s1 + $0x1c] sm:$0xf]
          %v822 = vld [vmem:[%s1 + $0x20] sm:$0xf]
          %v823 = vld [vmem:[%s1 + $0x24] sm:$0xf]
          %v824 = vld [vmem:[%s1 + $0x28] sm:$0xf]
          %v825 = vld [vmem:[%s1 + $0x2c] sm:$0xf]
          %v826 = vld [vmem:[%s1 + $0x30] sm:$0xf]
          %v827 = vld [vmem:[%s1 + $0x34] sm:$0xf]
          %v828 = vld [vmem:[%s1 + $0x38] sm:$0xf]
          %v829 = vld [vmem:[%s1 + $0x3c] sm:$0xf]
          %v830 = vld [vmem:[%s1 + $0x40] sm:$0xf]
          %v831 = vld [vmem:[%s1 + $0x44] sm:$0xf]
          %v832 = vld [vmem:[%s1 + $0x48] sm:$0xf]
          %v833 = vld [vmem:[%s1 + $0x4c] sm:$0xf]
          %v834 = vld [vmem:[%s1 + $0x50] sm:$0xf]
          %v835 = vld [vmem:[%s1 + $0x54] sm:$0xf]
          %v836 = vld [vmem:[%s1 + $0x58] sm:$0xf]
          %v837 = vld [vmem:[%s1 + $0x5c] sm:$0xf]
          %v838 = vld [vmem:[%s759] sm:$0xff]
          %v839 = vld [vmem:[%s759 + $0x8] sm:$0xff]
          %v840 = vld [vmem:[%s759 + $0x10] sm:$0x1]
          %v865 = vunpack.c.l.b16 %v814
          %v866 = vunpack.c.l.b16 %v815
          %v867 = vunpack.c.l.b16 %v816
          %v868 = vunpack.c.l.b16 %v817
          %v869 = vunpack.c.l.b16 %v818
          %v870 = vunpack.c.l.b16 %v819
          %v871 = vunpack.c.l.b16 %v820
          %v872 = vunpack.c.l.b16 %v821
          %v873 = vunpack.c.l.b16 %v822
          %v874 = vunpack.c.l.b16 %v823
          %v875 = vunpack.c.l.b16 %v824
          %v876 = vunpack.c.l.b16 %v825
          %v877 = vunpack.c.l.b16 %v826
          %v878 = vunpack.c.l.b16 %v827
          %v879 = vunpack.c.l.b16 %v828
          %v880 = vunpack.c.l.b16 %v829
          %v881 = vunpack.c.l.b16 %v830
          %v882 = vunpack.c.l.b16 %v831
          %v883 = vunpack.c.l.b16 %v832
          %v884 = vunpack.c.l.b16 %v833
          %v885 = vunpack.c.l.b16 %v834
          %v886 = vunpack.c.l.b16 %v835
          %v887 = vunpack.c.l.b16 %v836
          %v888 = vunpack.c.l.b16 %v837
          %v889 = vpack.c.b16 %v866, %v865
          %v890 = vpack.c.b16 %v868, %v867
          %v891 = vpack.c.b16 %v870, %v869
          %v892 = vpack.c.b16 %v872, %v871
          %v893 = vpack.c.b16 %v874, %v873
          %v894 = vpack.c.b16 %v876, %v875
          %v895 = vpack.c.b16 %v878, %v877
          %v896 = vpack.c.b16 %v880, %v879
          %v897 = vpack.c.b16 %v882, %v881
          %v898 = vpack.c.b16 %v884, %v883
          %v899 = vpack.c.b16 %v886, %v885
          %v900 = vpack.c.b16 %v888, %v887
          %vm913 = vcmask 523264
          %v915 = vsel %vm913, %v811, 0
          %v918 = vsel %vm913, %v813, 0
          %920 = vmatpush.bf16.msra.mxu0 %v896
          %921 = vmatpush.bf16.msra.mxu0 %v895
          %922 = vmatpush.bf16.msra.mxu0 %v894
          %923 = vmatpush.bf16.msra.mxu0 %v893
          %924 = vmatpush.bf16.msra.mxu0 %v892
          %925 = vmatpush.bf16.msra.mxu0 %v891
          %926 = vmatpush.bf16.msra.mxu0 %v890
          %927 = vmatpush.bf16.msra.mxu0 %v889
          %928 = vmatmul.bf16.gmra.mxu0 %v810
          %v929 = vpop.f32.mrf.mxu0
          %v930 = vadd.f32 %v838, %v929
          %v931 = vpop.f32.mrf.mxu0
          %v932 = vadd.f32 %v839, %v931
          %933 = vmatmul.bf16.gmra.mxu0 %v812
          %v934 = vpop.f32.mrf.mxu0
          %v935 = vadd.f32 %v840, %v934
          %v936 = vpop.f32.mrf.mxu0
          %937 = vdwg.mxu0
          %938 = vmatpush.bf16.msra.mxu0 0
          %939 = vmatpush.bf16.msra.mxu0 0
          %940 = vmatpush.bf16.msra.mxu0 0
          %941 = vmatpush.bf16.msra.mxu0 0
          %942 = vmatpush.bf16.msra.mxu0 %v900
          %943 = vmatpush.bf16.msra.mxu0 %v899
          %944 = vmatpush.bf16.msra.mxu0 %v898
          %945 = vmatpush.bf16.msra.mxu0 %v897
          %946 = vmatmul.bf16.gmra.mxu0 %v915
          %v947 = vpop.f32.mrf.mxu0
          %v948 = vadd.f32 %v930, %v947
          %v949 = vpop.f32.mrf.mxu0
          %v950 = vadd.f32 %v932, %v949
          %951 = vmatmul.bf16.gmra.mxu0 %v918
          %v952 = vpop.f32.mrf.mxu0
          %v953 = vadd.f32 %v935, %v952
          %v954 = vpop.f32.mrf.mxu0
          %955 = vdwg.mxu0
          %vm956 = vcmask 261120
          %957 = vst.msk [vmem:[#allocation2] sm:$0xff] %vm956, %v948
          %958 = vst.msk [vmem:[#allocation2 + $0x8] sm:$0xff] %vm956, %v950
          %vm959 = vcmask 253952
          %960 = vst.msk [vmem:[#allocation2 + $0x10] sm:$0x1] %vm959, %v953
        $region100: #{vit_forward.1} parent=95 // pred_fallthru
          _
        %v961 = vld [vmem:[#allocation2] sm:$0xff]
        %v962 = vld [vmem:[#allocation2 + $0x8] sm:$0xff]
        %v963 = vld [vmem:[#allocation2 + $0x10] sm:$0x1]
        %v964 = vld [vmem:[%s762] sm:$0x1]
        %v965 = vld [vmem:[%s765] sm:$0x1]
        %vm966 = vcmask 261120
        %v967 = vsel %vm966, %v961, 0.0
        %968 = vadd.xlane.f32.xlu0 %v967
        %v969 = vpop.xlane.xlu0 %968
        %v970 = vsel %vm966, %v962, 0.0
        %971 = vadd.xlane.f32.xlu0 %v970
        %v972 = vpop.xlane.xlu0 %971
        %vm973 = vcmask 253952
        %v974 = vsel %vm973, %v963, 0.0
        %975 = vadd.xlane.f32.xlu0 %v974
        %v976 = vpop.xlane.xlu0 %975
        %v977 = vrcp.pop 32.0
        %v978 = vmul.f32 32.0, %v977
        %v979 = vsub.f32 1.0, %v978
        %v980 = vmul.f32 %v977, %v979
        %v981 = vadd.f32 %v977, %v980
        %vm982 = vweird.f32 %v977
        %v983 = vsel %vm982, %v977, %v981
        %v984 = vmul.f32 %v969, %v983
        %v985 = vmul.f32 %v972, %v983
        %v986 = vmul.f32 %v976, %v983
        %v987 = vsub.f32 %v961, %v984
        %v988 = vsub.f32 %v962, %v985
        %v989 = vsub.f32 %v963, %v986
        %v990 = vmul.f32 %v987, %v987
        %v991 = vmul.f32 %v988, %v988
        %v992 = vmul.f32 %v989, %v989
        %v993 = vsel %vm966, %v990, 0.0
        %994 = vadd.xlane.f32.xlu0 %v993
        %v995 = vpop.xlane.xlu0 %994
        %v996 = vsel %vm966, %v991, 0.0
        %997 = vadd.xlane.f32.xlu0 %v996
        %v998 = vpop.xlane.xlu0 %997
        %v999 = vsel %vm973, %v992, 0.0
        %1000 = vadd.xlane.f32.xlu0 %v999
        %v1001 = vpop.xlane.xlu0 %1000
        %v1002 = vmul.f32 %v995, %v983
        %v1003 = vmul.f32 %v998, %v983
        %v1004 = vmul.f32 %v1001, %v983
        %v1005 = vadd.f32 %v1002, 1e-05
        %v1006 = vadd.f32 %v1003, 1e-05
        %v1007 = vadd.f32 %v1004, 1e-05
        %v1008 = vrsqrt.pop %v1005
        %v1009 = vmul.f32 %v1008, %v1005
        %v1010 = vmul.f32 %v1009, %v1008
        %v1011 = vmul.f32 0.5, %v1010
        %v1012 = vsub.f32 1.5, %v1011
        %v1013 = vmul.f32 %v1008, %v1012
        %vm1014 = vweird.f32 %v1005
        %vm1015 = vweird.f32 %v1008
        %vm1016 = vmor %vm1014, %vm1015
        %v1017 = vsel %vm1016, %v1008, %v1013
        %v1018 = vrsqrt.pop %v1006
        %v1019 = vmul.f32 %v1018, %v1006
        %v1020 = vmul.f32 %v1019, %v1018
        %v1021 = vmul.f32 0.5, %v1020
        %v1022 = vsub.f32 1.5, %v1021
        %v1023 = vmul.f32 %v1018, %v1022
        %vm1024 = vweird.f32 %v1006
        %vm1025 = vweird.f32 %v1018
        %vm1026 = vmor %vm1024, %vm1025
        %v1027 = vsel %vm1026, %v1018, %v1023
        %v1028 = vrsqrt.pop %v1007
        %v1029 = vmul.f32 %v1028, %v1007
        %v1030 = vmul.f32 %v1029, %v1028
        %v1031 = vmul.f32 0.5, %v1030
        %v1032 = vsub.f32 1.5, %v1031
        %v1033 = vmul.f32 %v1028, %v1032
        %vm1034 = vweird.f32 %v1007
        %vm1035 = vweird.f32 %v1028
        %vm1036 = vmor %vm1034, %vm1035
        %v1037 = vsel %vm1036, %v1028, %v1033
        %v1038 = vmul.f32 %v987, %v1017
        %v1039 = vmul.f32 %v988, %v1027
        %v1040 = vmul.f32 %v989, %v1037
        %v1042 = vperm.slane %v964, 0
        %v1044 = vmul.f32 %v1038, %v1042
        %v1045 = vmul.f32 %v1039, %v1042
        %v1046 = vmul.f32 %v1040, %v1042
        %v1048 = vperm.slane %v965, 0
        %v1050 = vadd.f32 %v1044, %v1048
        %v1051 = vadd.f32 %v1045, %v1048
        %v1052 = vadd.f32 %v1046, %v1048
        %v1053 = vpack.c.bf16 %v1051, %v1050
        %v1054 = vpack.c.bf16 %v1052, %v1052
        %v1055 = vld [vmem:[%s770] sm:$0xf]
        %v1056 = vld [vmem:[%s770 + $0x4] sm:$0xf]
        %v1057 = vld [vmem:[%s770 + $0x8] sm:$0xf]
        %v1058 = vld [vmem:[%s770 + $0xc] sm:$0xf]
        %v1059 = vld [vmem:[%s773] sm:$0x1]
        %v1061 = vperm.slane %v1059, 0
        %v1067 = vunpack.c.l.b16 %v1055
        %v1068 = vunpack.c.l.b16 %v1056
        %v1069 = vunpack.c.l.b16 %v1057
        %v1070 = vunpack.c.l.b16 %v1058
        %v1071 = vpack.c.b16 %v1068, %v1067
        %v1072 = vpack.c.b16 %v1070, %v1069
        %v1076 = vsel %vm966, %v1053, 0
        %v1079 = vsel %vm966, %v1054, 0
        %1081 = vmatpush.bf16.msra.mxu0 0
        %1082 = vmatpush.bf16.msra.mxu0 0
        %1083 = vmatpush.bf16.msra.mxu0 0
        %1084 = vmatpush.bf16.msra.mxu0 0
        %1085 = vmatpush.bf16.msra.mxu0 0
        %1086 = vmatpush.bf16.msra.mxu0 0
        %1087 = vmatpush.bf16.msra.mxu0 %v1072
        %1088 = vmatpush.bf16.msra.mxu0 %v1071
        %1089 = vmatmul.bf16.gmra.mxu0 %v1076
        %v1090 = vpop.f32.mrf.mxu0
        %v1091 = vadd.f32 %v1061, %v1090
        %v1092 = vpop.f32.mrf.mxu0
        %v1093 = vadd.f32 %v1061, %v1092
        %1094 = vmatmul.bf16.gmra.mxu0 %v1079
        %v1095 = vpop.f32.mrf.mxu0
        %v1096 = vadd.f32 %v1061, %v1095
        %v1097 = vpop.f32.mrf.mxu0
        %1098 = vdwg.mxu0
        %v1099 = vpack.c.bf16 %v1093, %v1091
        %v1100 = vpack.c.bf16 %v1096, %v1096
        %1103 = vrot.lane.b32.xlu0 %v1099, 96
        %v1104 = vpop.permute.xlu0 %1103
        %1105 = vrot.lane.b32.xlu0 %v1100, 96
        %v1106 = vpop.permute.xlu0 %1105
        %vm1107 = vcmask 64512
        %v1109 = vsel %vm1107, %v1099, 0
        %v1112 = vsel %vm1107, %v1100, 0
        %v1115 = vsel %vm1107, %v1104, 0
        %v1118 = vsel %vm1107, %v1106, 0
        %1120 = vmatpush.bf16.xpose.msra.mxu0 0
        %1121 = vmatpush.bf16.xpose.msra.mxu0 0
        %1122 = vmatpush.bf16.xpose.msra.mxu0 0
        %1123 = vmatpush.bf16.xpose.msra.mxu0 0
        %1124 = vmatpush.bf16.xpose.msra.mxu0 0
        %1125 = vmatpush.bf16.xpose.msra.mxu0 0
        %1126 = vmatpush.bf16.xpose.msra.mxu0 %v1118
        %1127 = vmatpush.bf16.xpose.msra.mxu0 %v1115
        %1128 = vmatmul.bf16.gmra.mxu0 %v1109
        %v1129 = vpop.f32.mrf.mxu0
        %v1130 = vadd.f32 0.0, %v1129
        %v1131 = vpop.f32.mrf.mxu0
        %v1132 = vadd.f32 0.0, %v1131
        %1133 = vmatmul.bf16.gmra.mxu0 %v1112
        %v1134 = vpop.f32.mrf.mxu0
        %v1135 = vadd.f32 0.0, %v1134
        %v1136 = vpop.f32.mrf.mxu0
        %1137 = vdwg.mxu0
        %vm1138 = vcmask 138240
        %v1139 = vsel %vm1138, %v1130, -inf
        %1140 = vmax.xlane.f32.xlu0 %v1139
        %v1141 = vpop.xlane.xlu0 %1140
        %v1142 = vsel %vm1138, %v1132, -inf
        %1143 = vmax.xlane.f32.xlu0 %v1142
        %v1144 = vpop.xlane.xlu0 %1143
        %vm1145 = vcmask 131072
        %v1146 = vsel %vm1145, %v1135, -inf
        %1147 = vmax.xlane.f32.xlu0 %v1146
        %v1148 = vpop.xlane.xlu0 %1147
        %v1149 = vsub.f32 %v1130, %v1141
        %v1150 = vsub.f32 %v1132, %v1144
        %v1151 = vsub.f32 %v1135, %v1148
        %v1152 = vmul.f32 %v1149, 1.442695
        %v1153 = vpow.pop %v1152
        %v1154 = vmul.f32 %v1150, 1.442695
        %v1155 = vpow.pop %v1154
        %v1156 = vmul.f32 %v1151, 1.442695
        %v1157 = vpow.pop %v1156
        %v1158 = vsel %vm1138, %v1153, 0.0
        %1159 = vadd.xlane.f32.xlu0 %v1158
        %v1160 = vpop.xlane.xlu0 %1159
        %v1161 = vsel %vm1138, %v1155, 0.0
        %1162 = vadd.xlane.f32.xlu0 %v1161
        %v1163 = vpop.xlane.xlu0 %1162
        %v1164 = vsel %vm1145, %v1157, 0.0
        %1165 = vadd.xlane.f32.xlu0 %v1164
        %v1166 = vpop.xlane.xlu0 %1165
        %v1167 = vrcp.pop %v1160
        %v1168 = vmul.f32 %v1160, %v1167
        %v1169 = vsub.f32 1.0, %v1168
        %v1170 = vmul.f32 %v1167, %v1169
        %v1171 = vadd.f32 %v1167, %v1170
        %vm1172 = vweird.f32 %v1160
        %vm1173 = vweird.f32 %v1167
        %vm1174 = vmor %vm1172, %vm1173
        %v1175 = vsel %vm1174, %v1167, %v1171
        %v1176 = vand.u32 2147483647, %v1160
        %vm1177 = vcmp.eq.f32.partialorder %v1176, 8.507059e+37
        %v1178 = vand.u32 %v1160, 2147483648
        %v1179 = vor.u32 1.1754944e-38, %v1178
        %v1180 = vsel %vm1177, %v1179, %v1175
        %v1181 = vmul.f32 %v1153, %v1180
        %v1182 = vrcp.pop %v1163
        %v1183 = vmul.f32 %v1163, %v1182
        %v1184 = vsub.f32 1.0, %v1183
        %v1185 = vmul.f32 %v1182, %v1184
        %v1186 = vadd.f32 %v1182, %v1185
        %vm1187 = vweird.f32 %v1163
        %vm1188 = vweird.f32 %v1182
        %vm1189 = vmor %vm1187, %vm1188
        %v1190 = vsel %vm1189, %v1182, %v1186
        %v1191 = vand.u32 2147483647, %v1163
        %vm1192 = vcmp.eq.f32.partialorder %v1191, 8.507059e+37
        %v1193 = vand.u32 %v1163, 2147483648
        %v1194 = vor.u32 1.1754944e-38, %v1193
        %v1195 = vsel %vm1192, %v1194, %v1190
        %v1196 = vmul.f32 %v1155, %v1195
        %v1197 = vrcp.pop %v1166
        %v1198 = vmul.f32 %v1166, %v1197
        %v1199 = vsub.f32 1.0, %v1198
        %v1200 = vmul.f32 %v1197, %v1199
        %v1201 = vadd.f32 %v1197, %v1200
        %vm1202 = vweird.f32 %v1166
        %vm1203 = vweird.f32 %v1197
        %vm1204 = vmor %vm1202, %vm1203
        %v1205 = vsel %vm1204, %v1197, %v1201
        %v1206 = vand.u32 2147483647, %v1166
        %vm1207 = vcmp.eq.f32.partialorder %v1206, 8.507059e+37
        %v1208 = vand.u32 %v1166, 2147483648
        %v1209 = vor.u32 1.1754944e-38, %v1208
        %v1210 = vsel %vm1207, %v1209, %v1205
        %v1211 = vmul.f32 %v1157, %v1210
        %v1212 = vpack.c.bf16 %v1196, %v1181
        %v1213 = vpack.c.bf16 %v1211, %v1211
        %1214 = vrot.lane.b32.xlu0 %v1099, 64
        %v1215 = vpop.permute.xlu0 %1214
        %1216 = vrot.lane.b32.xlu0 %v1100, 64
        %v1217 = vpop.permute.xlu0 %1216
        %v1220 = vsel %vm1138, %v1212, 0
        %v1223 = vsel %vm1138, %v1213, 0
        %vm1225 = vcmask 1040384
        %v1226 = vsel 0, 4294967295, 65535
        %v1227 = vsel %vm1225, %v1226, 0
        %v1229 = vand.u32 %v1217, %v1227
        %1231 = vmatpush.bf16.msra.mxu0 0
        %1232 = vmatpush.bf16.msra.mxu0 0
        %1233 = vmatpush.bf16.msra.mxu0 0
        %1234 = vmatpush.bf16.msra.mxu0 0
        %1235 = vmatpush.bf16.msra.mxu0 0
        %1236 = vmatpush.bf16.msra.mxu0 0
        %1237 = vmatpush.bf16.msra.mxu0 %v1229
        %1238 = vmatpush.bf16.msra.mxu0 %v1215
        %1239 = vmatmul.bf16.gmra.mxu0 %v1220
        %v1240 = vpop.f32.mrf.mxu0
        %v1241 = vadd.f32 0.0, %v1240
        %v1242 = vpop.f32.mrf.mxu0
        %v1243 = vadd.f32 0.0, %v1242
        %1244 = vmatmul.bf16.gmra.mxu0 %v1223
        %v1245 = vpop.f32.mrf.mxu0
        %v1246 = vadd.f32 0.0, %v1245
        %v1247 = vpop.f32.mrf.mxu0
        %1248 = vdwg.mxu0
        %1249 = vrot.lane.b32.xlu0 %v1099, 120
        %v1250 = vpop.permute.xlu0 %1249
        %1251 = vrot.lane.b32.xlu0 %v1100, 120
        %v1252 = vpop.permute.xlu0 %1251
        %1253 = vrot.lane.b32.xlu0 %v1099, 88
        %v1254 = vpop.permute.xlu0 %1253
        %1255 = vrot.lane.b32.xlu0 %v1100, 88
        %v1256 = vpop.permute.xlu0 %1255
        %v1258 = vsel %vm1107, %v1250, 0
        %v1261 = vsel %vm1107, %v1252, 0
        %v1264 = vsel %vm1107, %v1254, 0
        %v1267 = vsel %vm1107, %v1256, 0
        %1269 = vmatpush.bf16.xpose.msra.mxu0 0
        %1270 = vmatpush.bf16.xpose.msra.mxu0 0
        %1271 = vmatpush.bf16.xpose.msra.mxu0 0
        %1272 = vmatpush.bf16.xpose.msra.mxu0 0
        %1273 = vmatpush.bf16.xpose.msra.mxu0 0
        %1274 = vmatpush.bf16.xpose.msra.mxu0 0
        %1275 = vmatpush.bf16.xpose.msra.mxu0 %v1267
        %1276 = vmatpush.bf16.xpose.msra.mxu0 %v1264
        %1277 = vmatmul.bf16.gmra.mxu0 %v1258
        %v1278 = vpop.f32.mrf.mxu0
        %v1279 = vadd.f32 0.0, %v1278
        %v1280 = vpop.f32.mrf.mxu0
        %v1281 = vadd.f32 0.0, %v1280
        %1282 = vmatmul.bf16.gmra.mxu0 %v1261
        %v1283 = vpop.f32.mrf.mxu0
        %v1284 = vadd.f32 0.0, %v1283
        %v1285 = vpop.f32.mrf.mxu0
        %1286 = vdwg.mxu0
        %v1287 = vsel %vm1138, %v1279, -inf
        %1288 = vmax.xlane.f32.xlu0 %v1287
        %v1289 = vpop.xlane.xlu0 %1288
        %v1290 = vsel %vm1138, %v1281, -inf
        %1291 = vmax.xlane.f32.xlu0 %v1290
        %v1292 = vpop.xlane.xlu0 %1291
        %v1293 = vsel %vm1145, %v1284, -inf
        %1294 = vmax.xlane.f32.xlu0 %v1293
        %v1295 = vpop.xlane.xlu0 %1294
        %v1296 = vsub.f32 %v1279, %v1289
        %v1297 = vsub.f32 %v1281, %v1292
        %v1298 = vsub.f32 %v1284, %v1295
        %v1299 = vmul.f32 %v1296, 1.442695
        %v1300 = vpow.pop %v1299
        %v1301 = vmul.f32 %v1297, 1.442695
        %v1302 = vpow.pop %v1301
        %v1303 = vmul.f32 %v1298, 1.442695
        %v1304 = vpow.pop %v1303
        %v1305 = vsel %vm1138, %v1300, 0.0
        %1306 = vadd.xlane.f32.xlu0 %v1305
        %v1307 = vpop.xlane.xlu0 %1306
        %v1308 = vsel %vm1138, %v1302, 0.0
        %1309 = vadd.xlane.f32.xlu0 %v1308
        %v1310 = vpop.xlane.xlu0 %1309
        %v1311 = vsel %vm1145, %v1304, 0.0
        %1312 = vadd.xlane.f32.xlu0 %v1311
        %v1313 = vpop.xlane.xlu0 %1312
        %v1314 = vrcp.pop %v1307
        %v1315 = vmul.f32 %v1307, %v1314
        %v1316 = vsub.f32 1.0, %v1315
        %v1317 = vmul.f32 %v1314, %v1316
        %v1318 = vadd.f32 %v1314, %v1317
        %vm1319 = vweird.f32 %v1307
        %vm1320 = vweird.f32 %v1314
        %vm1321 = vmor %vm1319, %vm1320
        %v1322 = vsel %vm1321, %v1314, %v1318
        %v1323 = vand.u32 2147483647, %v1307
        %vm1324 = vcmp.eq.f32.partialorder %v1323, 8.507059e+37
        %v1325 = vand.u32 %v1307, 2147483648
        %v1326 = vor.u32 1.1754944e-38, %v1325
        %v1327 = vsel %vm1324, %v1326, %v1322
        %v1328 = vmul.f32 %v1300, %v1327
        %v1329 = vrcp.pop %v1310
        %v1330 = vmul.f32 %v1310, %v1329
        %v1331 = vsub.f32 1.0, %v1330
        %v1332 = vmul.f32 %v1329, %v1331
        %v1333 = vadd.f32 %v1329, %v1332
        %vm1334 = vweird.f32 %v1310
        %vm1335 = vweird.f32 %v1329
        %vm1336 = vmor %vm1334, %vm1335
        %v1337 = vsel %vm1336, %v1329, %v1333
        %v1338 = vand.u32 2147483647, %v1310
        %vm1339 = vcmp.eq.f32.partialorder %v1338, 8.507059e+37
        %v1340 = vand.u32 %v1310, 2147483648
        %v1341 = vor.u32 1.1754944e-38, %v1340
        %v1342 = vsel %vm1339, %v1341, %v1337
        %v1343 = vmul.f32 %v1302, %v1342
        %v1344 = vrcp.pop %v1313
        %v1345 = vmul.f32 %v1313, %v1344
        %v1346 = vsub.f32 1.0, %v1345
        %v1347 = vmul.f32 %v1344, %v1346
        %v1348 = vadd.f32 %v1344, %v1347
        %vm1349 = vweird.f32 %v1313
        %vm1350 = vweird.f32 %v1344
        %vm1351 = vmor %vm1349, %vm1350
        %v1352 = vsel %vm1351, %v1344, %v1348
        %v1353 = vand.u32 2147483647, %v1313
        %vm1354 = vcmp.eq.f32.partialorder %v1353, 8.507059e+37
        %v1355 = vand.u32 %v1313, 2147483648
        %v1356 = vor.u32 1.1754944e-38, %v1355
        %v1357 = vsel %vm1354, %v1356, %v1352
        %v1358 = vmul.f32 %v1304, %v1357
        %v1359 = vpack.c.bf16 %v1343, %v1328
        %v1360 = vpack.c.bf16 %v1358, %v1358
        %1361 = vrot.lane.b32.xlu0 %v1099, 56
        %v1362 = vpop.permute.xlu0 %1361
        %1363 = vrot.lane.b32.xlu0 %v1100, 56
        %v1364 = vpop.permute.xlu0 %1363
        %v1367 = vsel %vm1138, %v1359, 0
        %v1370 = vsel %vm1138, %v1360, 0
        %v1373 = vand.u32 %v1364, %v1227
        %1375 = vmatpush.bf16.msra.mxu0 0
        %1376 = vmatpush.bf16.msra.mxu0 0
        %1377 = vmatpush.bf16.msra.mxu0 0
        %1378 = vmatpush.bf16.msra.mxu0 0
        %1379 = vmatpush.bf16.msra.mxu0 0
        %1380 = vmatpush.bf16.msra.mxu0 0
        %1381 = vmatpush.bf16.msra.mxu0 %v1373
        %1382 = vmatpush.bf16.msra.mxu0 %v1362
        %1383 = vmatmul.bf16.gmra.mxu0 %v1367
        %v1384 = vpop.f32.mrf.mxu0
        %v1385 = vadd.f32 0.0, %v1384
        %v1386 = vpop.f32.mrf.mxu0
        %v1387 = vadd.f32 0.0, %v1386
        %1388 = vmatmul.bf16.gmra.mxu0 %v1370
        %v1389 = vpop.f32.mrf.mxu0
        %v1390 = vadd.f32 0.0, %v1389
        %v1391 = vpop.f32.mrf.mxu0
        %1392 = vdwg.mxu0
        %1393 = vrot.lane.b32.xlu0 %v1099, 112
        %v1394 = vpop.permute.xlu0 %1393
        %1395 = vrot.lane.b32.xlu0 %v1100, 112
        %v1396 = vpop.permute.xlu0 %1395
        %1397 = vrot.lane.b32.xlu0 %v1099, 80
        %v1398 = vpop.permute.xlu0 %1397
        %1399 = vrot.lane.b32.xlu0 %v1100, 80
        %v1400 = vpop.permute.xlu0 %1399
        %v1402 = vsel %vm1107, %v1394, 0
        %v1405 = vsel %vm1107, %v1396, 0
        %v1408 = vsel %vm1107, %v1398, 0
        %v1411 = vsel %vm1107, %v1400, 0
        %1413 = vmatpush.bf16.xpose.msra.mxu0 0
        %1414 = vmatpush.bf16.xpose.msra.mxu0 0
        %1415 = vmatpush.bf16.xpose.msra.mxu0 0
        %1416 = vmatpush.bf16.xpose.msra.mxu0 0
        %1417 = vmatpush.bf16.xpose.msra.mxu0 0
        %1418 = vmatpush.bf16.xpose.msra.mxu0 0
        %1419 = vmatpush.bf16.xpose.msra.mxu0 %v1411
        %1420 = vmatpush.bf16.xpose.msra.mxu0 %v1408
        %1421 = vmatmul.bf16.gmra.mxu0 %v1402
        %v1422 = vpop.f32.mrf.mxu0
        %v1423 = vadd.f32 0.0, %v1422
        %v1424 = vpop.f32.mrf.mxu0
        %v1425 = vadd.f32 0.0, %v1424
        %1426 = vmatmul.bf16.gmra.mxu0 %v1405
        %v1427 = vpop.f32.mrf.mxu0
        %v1428 = vadd.f32 0.0, %v1427
        %v1429 = vpop.f32.mrf.mxu0
        %1430 = vdwg.mxu0
        %v1431 = vsel %vm1138, %v1423, -inf
        %1432 = vmax.xlane.f32.xlu0 %v1431
        %v1433 = vpop.xlane.xlu0 %1432
        %v1434 = vsel %vm1138, %v1425, -inf
        %1435 = vmax.xlane.f32.xlu0 %v1434
        %v1436 = vpop.xlane.xlu0 %1435
        %v1437 = vsel %vm1145, %v1428, -inf
        %1438 = vmax.xlane.f32.xlu0 %v1437
        %v1439 = vpop.xlane.xlu0 %1438
        %v1440 = vsub.f32 %v1423, %v1433
        %v1441 = vsub.f32 %v1425, %v1436
        %v1442 = vsub.f32 %v1428, %v1439
        %v1443 = vmul.f32 %v1440, 1.442695
        %v1444 = vpow.pop %v1443
        %v1445 = vmul.f32 %v1441, 1.442695
        %v1446 = vpow.pop %v1445
        %v1447 = vmul.f32 %v1442, 1.442695
        %v1448 = vpow.pop %v1447
        %v1449 = vsel %vm1138, %v1444, 0.0
        %1450 = vadd.xlane.f32.xlu0 %v1449
        %v1451 = vpop.xlane.xlu0 %1450
        %v1452 = vsel %vm1138, %v1446, 0.0
        %1453 = vadd.xlane.f32.xlu0 %v1452
        %v1454 = vpop.xlane.xlu0 %1453
        %v1455 = vsel %vm1145, %v1448, 0.0
        %1456 = vadd.xlane.f32.xlu0 %v1455
        %v1457 = vpop.xlane.xlu0 %1456
        %v1458 = vrcp.pop %v1451
        %v1459 = vmul.f32 %v1451, %v1458
        %v1460 = vsub.f32 1.0, %v1459
        %v1461 = vmul.f32 %v1458, %v1460
        %v1462 = vadd.f32 %v1458, %v1461
        %vm1463 = vweird.f32 %v1451
        %vm1464 = vweird.f32 %v1458
        %vm1465 = vmor %vm1463, %vm1464
        %v1466 = vsel %vm1465, %v1458, %v1462
        %v1467 = vand.u32 2147483647, %v1451
        %vm1468 = vcmp.eq.f32.partialorder %v1467, 8.507059e+37
        %v1469 = vand.u32 %v1451, 2147483648
        %v1470 = vor.u32 1.1754944e-38, %v1469
        %v1471 = vsel %vm1468, %v1470, %v1466
        %v1472 = vmul.f32 %v1444, %v1471
        %v1473 = vrcp.pop %v1454
        %v1474 = vmul.f32 %v1454, %v1473
        %v1475 = vsub.f32 1.0, %v1474
        %v1476 = vmul.f32 %v1473, %v1475
        %v1477 = vadd.f32 %v1473, %v1476
        %vm1478 = vweird.f32 %v1454
        %vm1479 = vweird.f32 %v1473
        %vm1480 = vmor %vm1478, %vm1479
        %v1481 = vsel %vm1480, %v1473, %v1477
        %v1482 = vand.u32 2147483647, %v1454
        %vm1483 = vcmp.eq.f32.partialorder %v1482, 8.507059e+37
        %v1484 = vand.u32 %v1454, 2147483648
        %v1485 = vor.u32 1.1754944e-38, %v1484
        %v1486 = vsel %vm1483, %v1485, %v1481
        %v1487 = vmul.f32 %v1446, %v1486
        %v1488 = vrcp.pop %v1457
        %v1489 = vmul.f32 %v1457, %v1488
        %v1490 = vsub.f32 1.0, %v1489
        %v1491 = vmul.f32 %v1488, %v1490
        %v1492 = vadd.f32 %v1488, %v1491
        %vm1493 = vweird.f32 %v1457
        %vm1494 = vweird.f32 %v1488
        %vm1495 = vmor %vm1493, %vm1494
        %v1496 = vsel %vm1495, %v1488, %v1492
        %v1497 = vand.u32 2147483647, %v1457
        %vm1498 = vcmp.eq.f32.partialorder %v1497, 8.507059e+37
        %v1499 = vand.u32 %v1457, 2147483648
        %v1500 = vor.u32 1.1754944e-38, %v1499
        %v1501 = vsel %vm1498, %v1500, %v1496
        %v1502 = vmul.f32 %v1448, %v1501
        %v1503 = vpack.c.bf16 %v1487, %v1472
        %v1504 = vpack.c.bf16 %v1502, %v1502
        %1505 = vrot.lane.b32.xlu0 %v1099, 48
        %v1506 = vpop.permute.xlu0 %1505
        %1507 = vrot.lane.b32.xlu0 %v1100, 48
        %v1508 = vpop.permute.xlu0 %1507
        %v1511 = vsel %vm1138, %v1503, 0
        %v1514 = vsel %vm1138, %v1504, 0
        %v1517 = vand.u32 %v1508, %v1227
        %1519 = vmatpush.bf16.msra.mxu0 0
        %1520 = vmatpush.bf16.msra.mxu0 0
        %1521 = vmatpush.bf16.msra.mxu0 0
        %1522 = vmatpush.bf16.msra.mxu0 0
        %1523 = vmatpush.bf16.msra.mxu0 0
        %1524 = vmatpush.bf16.msra.mxu0 0
        %1525 = vmatpush.bf16.msra.mxu0 %v1517
        %1526 = vmatpush.bf16.msra.mxu0 %v1506
        %1527 = vmatmul.bf16.gmra.mxu0 %v1511
        %v1528 = vpop.f32.mrf.mxu0
        %v1529 = vadd.f32 0.0, %v1528
        %v1530 = vpop.f32.mrf.mxu0
        %v1531 = vadd.f32 0.0, %v1530
        %1532 = vmatmul.bf16.gmra.mxu0 %v1514
        %v1533 = vpop.f32.mrf.mxu0
        %v1534 = vadd.f32 0.0, %v1533
        %v1535 = vpop.f32.mrf.mxu0
        %1536 = vdwg.mxu0
        %1537 = vrot.lane.b32.xlu0 %v1099, 104
        %v1538 = vpop.permute.xlu0 %1537
        %1539 = vrot.lane.b32.xlu0 %v1100, 104
        %v1540 = vpop.permute.xlu0 %1539
        %1541 = vrot.lane.b32.xlu0 %v1099, 72
        %v1542 = vpop.permute.xlu0 %1541
        %1543 = vrot.lane.b32.xlu0 %v1100, 72
        %v1544 = vpop.permute.xlu0 %1543
        %v1546 = vsel %vm1107, %v1538, 0
        %v1549 = vsel %vm1107, %v1540, 0
        %v1552 = vsel %vm1107, %v1542, 0
        %v1555 = vsel %vm1107, %v1544, 0
        %1557 = vmatpush.bf16.xpose.msra.mxu0 0
        %1558 = vmatpush.bf16.xpose.msra.mxu0 0
        %1559 = vmatpush.bf16.xpose.msra.mxu0 0
        %1560 = vmatpush.bf16.xpose.msra.mxu0 0
        %1561 = vmatpush.bf16.xpose.msra.mxu0 0
        %1562 = vmatpush.bf16.xpose.msra.mxu0 0
        %1563 = vmatpush.bf16.xpose.msra.mxu0 %v1555
        %1564 = vmatpush.bf16.xpose.msra.mxu0 %v1552
        %1565 = vmatmul.bf16.gmra.mxu0 %v1546
        %v1566 = vpop.f32.mrf.mxu0
        %v1567 = vadd.f32 0.0, %v1566
        %v1568 = vpop.f32.mrf.mxu0
        %v1569 = vadd.f32 0.0, %v1568
        %1570 = vmatmul.bf16.gmra.mxu0 %v1549
        %v1571 = vpop.f32.mrf.mxu0
        %v1572 = vadd.f32 0.0, %v1571
        %v1573 = vpop.f32.mrf.mxu0
        %1574 = vdwg.mxu0
        %v1575 = vsel %vm1138, %v1567, -inf
        %1576 = vmax.xlane.f32.xlu0 %v1575
        %v1577 = vpop.xlane.xlu0 %1576
        %v1578 = vsel %vm1138, %v1569, -inf
        %1579 = vmax.xlane.f32.xlu0 %v1578
        %v1580 = vpop.xlane.xlu0 %1579
        %v1581 = vsel %vm1145, %v1572, -inf
        %1582 = vmax.xlane.f32.xlu0 %v1581
        %v1583 = vpop.xlane.xlu0 %1582
        %v1584 = vsub.f32 %v1567, %v1577
        %v1585 = vsub.f32 %v1569, %v1580
        %v1586 = vsub.f32 %v1572, %v1583
        %v1587 = vmul.f32 %v1584, 1.442695
        %v1588 = vpow.pop %v1587
        %v1589 = vmul.f32 %v1585, 1.442695
        %v1590 = vpow.pop %v1589
        %v1591 = vmul.f32 %v1586, 1.442695
        %v1592 = vpow.pop %v1591
        %v1593 = vsel %vm1138, %v1588, 0.0
        %1594 = vadd.xlane.f32.xlu0 %v1593
        %v1595 = vpop.xlane.xlu0 %1594
        %v1596 = vsel %vm1138, %v1590, 0.0
        %1597 = vadd.xlane.f32.xlu0 %v1596
        %v1598 = vpop.xlane.xlu0 %1597
        %v1599 = vsel %vm1145, %v1592, 0.0
        %1600 = vadd.xlane.f32.xlu0 %v1599
        %v1601 = vpop.xlane.xlu0 %1600
        %v1602 = vrcp.pop %v1595
        %v1603 = vmul.f32 %v1595, %v1602
        %v1604 = vsub.f32 1.0, %v1603
        %v1605 = vmul.f32 %v1602, %v1604
        %v1606 = vadd.f32 %v1602, %v1605
        %vm1607 = vweird.f32 %v1595
        %vm1608 = vweird.f32 %v1602
        %vm1609 = vmor %vm1607, %vm1608
        %v1610 = vsel %vm1609, %v1602, %v1606
        %v1611 = vand.u32 2147483647, %v1595
        %vm1612 = vcmp.eq.f32.partialorder %v1611, 8.507059e+37
        %v1613 = vand.u32 %v1595, 2147483648
        %v1614 = vor.u32 1.1754944e-38, %v1613
        %v1615 = vsel %vm1612, %v1614, %v1610
        %v1616 = vmul.f32 %v1588, %v1615
        %v1617 = vrcp.pop %v1598
        %v1618 = vmul.f32 %v1598, %v1617
        %v1619 = vsub.f32 1.0, %v1618
        %v1620 = vmul.f32 %v1617, %v1619
        %v1621 = vadd.f32 %v1617, %v1620
        %vm1622 = vweird.f32 %v1598
        %vm1623 = vweird.f32 %v1617
        %vm1624 = vmor %vm1622, %vm1623
        %v1625 = vsel %vm1624, %v1617, %v1621
        %v1626 = vand.u32 2147483647, %v1598
        %vm1627 = vcmp.eq.f32.partialorder %v1626, 8.507059e+37
        %v1628 = vand.u32 %v1598, 2147483648
        %v1629 = vor.u32 1.1754944e-38, %v1628
        %v1630 = vsel %vm1627, %v1629, %v1625
        %v1631 = vmul.f32 %v1590, %v1630
        %v1632 = vrcp.pop %v1601
        %v1633 = vmul.f32 %v1601, %v1632
        %v1634 = vsub.f32 1.0, %v1633
        %v1635 = vmul.f32 %v1632, %v1634
        %v1636 = vadd.f32 %v1632, %v1635
        %vm1637 = vweird.f32 %v1601
        %vm1638 = vweird.f32 %v1632
        %vm1639 = vmor %vm1637, %vm1638
        %v1640 = vsel %vm1639, %v1632, %v1636
        %v1641 = vand.u32 2147483647, %v1601
        %vm1642 = vcmp.eq.f32.partialorder %v1641, 8.507059e+37
        %v1643 = vand.u32 %v1601, 2147483648
        %v1644 = vor.u32 1.1754944e-38, %v1643
        %v1645 = vsel %vm1642, %v1644, %v1640
        %v1646 = vmul.f32 %v1592, %v1645
        %v1647 = vpack.c.bf16 %v1631, %v1616
        %v1648 = vpack.c.bf16 %v1646, %v1646
        %1649 = vrot.lane.b32.xlu0 %v1099, 40
        %v1650 = vpop.permute.xlu0 %1649
        %1651 = vrot.lane.b32.xlu0 %v1100, 40
        %v1652 = vpop.permute.xlu0 %1651
        %v1655 = vsel %vm1138, %v1647, 0
        %v1658 = vsel %vm1138, %v1648, 0
        %v1661 = vand.u32 %v1652, %v1227
        %1663 = vmatpush.bf16.msra.mxu0 0
        %1664 = vmatpush.bf16.msra.mxu0 0
        %1665 = vmatpush.bf16.msra.mxu0 0
        %1666 = vmatpush.bf16.msra.mxu0 0
        %1667 = vmatpush.bf16.msra.mxu0 0
        %1668 = vmatpush.bf16.msra.mxu0 0
        %1669 = vmatpush.bf16.msra.mxu0 %v1661
        %1670 = vmatpush.bf16.msra.mxu0 %v1650
        %1671 = vmatmul.bf16.gmra.mxu0 %v1655
        %v1672 = vpop.f32.mrf.mxu0
        %v1673 = vadd.f32 0.0, %v1672
        %v1674 = vpop.f32.mrf.mxu0
        %v1675 = vadd.f32 0.0, %v1674
        %1676 = vmatmul.bf16.gmra.mxu0 %v1658
        %v1677 = vpop.f32.mrf.mxu0
        %v1678 = vadd.f32 0.0, %v1677
        %v1679 = vpop.f32.mrf.mxu0
        %1680 = vdwg.mxu0
        %1684 = vrot.lane.b32.xlu0 %v1385, 8
        %v1685 = vpop.permute.xlu0 %1684
        %1686 = vrot.lane.b32.xlu0 %v1387, 8
        %v1687 = vpop.permute.xlu0 %1686
        %1688 = vrot.lane.b32.xlu0 %v1390, 8
        %v1689 = vpop.permute.xlu0 %1688
        %1696 = vrot.lane.b32.xlu0 %v1529, 16
        %v1697 = vpop.permute.xlu0 %1696
        %1698 = vrot.lane.b32.xlu0 %v1531, 16
        %v1699 = vpop.permute.xlu0 %1698
        %1700 = vrot.lane.b32.xlu0 %v1534, 16
        %v1701 = vpop.permute.xlu0 %1700
        %1708 = vrot.lane.b32.xlu0 %v1673, 24
        %v1709 = vpop.permute.xlu0 %1708
        %1710 = vrot.lane.b32.xlu0 %v1675, 24
        %v1711 = vpop.permute.xlu0 %1710
        %1712 = vrot.lane.b32.xlu0 %v1678, 24
        %v1713 = vpop.permute.xlu0 %1712
        %v1717 = vsel %vm1107, %v1241, %v1685
        %v1718 = vsel %vm1107, %v1243, %v1687
        %v1719 = vsel %vm1107, %v1246, %v1689
        %vm1720 = vcmask 130048
        %v1721 = vsel %vm1720, %v1717, %v1697
        %v1722 = vsel %vm1720, %v1718, %v1699
        %v1723 = vsel %vm1720, %v1719, %v1701
        %vm1724 = vcmask 195584
        %v1725 = vsel %vm1724, %v1721, %v1709
        %v1726 = vsel %vm1724, %v1722, %v1711
        %v1727 = vsel %vm1724, %v1723, %v1713
        %v1728 = vpack.c.bf16 %v1726, %v1725
        %v1729 = vpack.c.bf16 %v1727, %v1727
        %v1730 = vld [vmem:[%s778] sm:$0xf]
        %v1731 = vld [vmem:[%s778 + $0x4] sm:$0xf]
        %v1732 = vld [vmem:[%s778 + $0x8] sm:$0xf]
        %v1733 = vld [vmem:[%s778 + $0xc] sm:$0xf]
        %v1734 = vld [vmem:[%s781] sm:$0x1]
        %v1736 = vperm.slane %v1734, 0
        %v1742 = vunpack.c.l.b16 %v1730
        %v1743 = vunpack.c.l.b16 %v1731
        %v1744 = vunpack.c.l.b16 %v1732
        %v1745 = vunpack.c.l.b16 %v1733
        %v1746 = vpack.c.b16 %v1743, %v1742
        %v1747 = vpack.c.b16 %v1745, %v1744
        %v1751 = vsel %vm966, %v1728, 0
        %v1754 = vsel %vm966, %v1729, 0
        %1756 = vmatpush.bf16.msra.mxu0 0
        %1757 = vmatpush.bf16.msra.mxu0 0
        %1758 = vmatpush.bf16.msra.mxu0 0
        %1759 = vmatpush.bf16.msra.mxu0 0
        %1760 = vmatpush.bf16.msra.mxu0 0
        %1761 = vmatpush.bf16.msra.mxu0 0
        %1762 = vmatpush.bf16.msra.mxu0 %v1747
        %1763 = vmatpush.bf16.msra.mxu0 %v1746
        %1764 = vmatmul.bf16.gmra.mxu0 %v1751
        %v1765 = vpop.f32.mrf.mxu0
        %v1766 = vadd.f32 %v1736, %v1765
        %v1767 = vpop.f32.mrf.mxu0
        %v1768 = vadd.f32 %v1736, %v1767
        %1769 = vmatmul.bf16.gmra.mxu0 %v1754
        %v1770 = vpop.f32.mrf.mxu0
        %v1771 = vadd.f32 %v1736, %v1770
        %v1772 = vpop.f32.mrf.mxu0
        %1773 = vdwg.mxu0
        %v1774 = vadd.f32 %v1766, %v961
        %v1775 = vadd.f32 %v1768, %v962
        %v1776 = vadd.f32 %v1771, %v963
        %v1777 = vsel %vm966, %v1774, 0.0
        %1778 = vadd.xlane.f32.xlu0 %v1777
        %v1779 = vpop.xlane.xlu0 %1778
        %v1780 = vsel %vm966, %v1775, 0.0
        %1781 = vadd.xlane.f32.xlu0 %v1780
        %v1782 = vpop.xlane.xlu0 %1781
        %v1783 = vsel %vm973, %v1776, 0.0
        %1784 = vadd.xlane.f32.xlu0 %v1783
        %v1785 = vpop.xlane.xlu0 %1784
        %v1786 = vmul.f32 %v1779, %v983
        %v1787 = vmul.f32 %v1782, %v983
        %v1788 = vmul.f32 %v1785, %v983
        %v1789 = vsub.f32 %v1774, %v1786
        %v1790 = vsub.f32 %v1775, %v1787
        %v1791 = vsub.f32 %v1776, %v1788
        %v1792 = vmul.f32 %v1789, %v1789
        %v1793 = vmul.f32 %v1790, %v1790
        %v1794 = vmul.f32 %v1791, %v1791
        %v1795 = vsel %vm966, %v1792, 0.0
        %1796 = vadd.xlane.f32.xlu0 %v1795
        %v1797 = vpop.xlane.xlu0 %1796
        %v1798 = vsel %vm966, %v1793, 0.0
        %1799 = vadd.xlane.f32.xlu0 %v1798
        %v1800 = vpop.xlane.xlu0 %1799
        %v1801 = vsel %vm973, %v1794, 0.0
        %1802 = vadd.xlane.f32.xlu0 %v1801
        %v1803 = vpop.xlane.xlu0 %1802
        %v1804 = vmul.f32 %v1797, %v983
        %v1805 = vmul.f32 %v1800, %v983
        %v1806 = vmul.f32 %v1803, %v983
        %v1807 = vadd.f32 %v1804, 1e-05
        %v1808 = vadd.f32 %v1805, 1e-05
        %v1809 = vadd.f32 %v1806, 1e-05
        %v1810 = vrsqrt.pop %v1807
        %v1811 = vmul.f32 %v1810, %v1807
        %v1812 = vmul.f32 %v1811, %v1810
        %v1813 = vmul.f32 0.5, %v1812
        %v1814 = vsub.f32 1.5, %v1813
        %v1815 = vmul.f32 %v1810, %v1814
        %vm1816 = vweird.f32 %v1807
        %vm1817 = vweird.f32 %v1810
        %vm1818 = vmor %vm1816, %vm1817
        %v1819 = vsel %vm1818, %v1810, %v1815
        %v1820 = vrsqrt.pop %v1808
        %v1821 = vmul.f32 %v1820, %v1808
        %v1822 = vmul.f32 %v1821, %v1820
        %v1823 = vmul.f32 0.5, %v1822
        %v1824 = vsub.f32 1.5, %v1823
        %v1825 = vmul.f32 %v1820, %v1824
        %vm1826 = vweird.f32 %v1808
        %vm1827 = vweird.f32 %v1820
        %vm1828 = vmor %vm1826, %vm1827
        %v1829 = vsel %vm1828, %v1820, %v1825
        %v1830 = vrsqrt.pop %v1809
        %v1831 = vmul.f32 %v1830, %v1809
        %v1832 = vmul.f32 %v1831, %v1830
        %v1833 = vmul.f32 0.5, %v1832
        %v1834 = vsub.f32 1.5, %v1833
        %v1835 = vmul.f32 %v1830, %v1834
        %vm1836 = vweird.f32 %v1809
        %vm1837 = vweird.f32 %v1830
        %vm1838 = vmor %vm1836, %vm1837
        %v1839 = vsel %vm1838, %v1830, %v1835
        %v1840 = vmul.f32 %v1789, %v1819
        %v1841 = vmul.f32 %v1790, %v1829
        %v1842 = vmul.f32 %v1791, %v1839
        %v1843 = vmul.f32 %v1840, %v1042
        %v1844 = vmul.f32 %v1841, %v1042
        %v1845 = vmul.f32 %v1842, %v1042
        %v1846 = vadd.f32 %v1843, %v1048
        %v1847 = vadd.f32 %v1844, %v1048
        %v1848 = vadd.f32 %v1845, %v1048
        %v1849 = vpack.c.bf16 %v1847, %v1846
        %v1850 = vpack.c.bf16 %v1848, %v1848
        %v1851 = vld [vmem:[%s786] sm:$0xff]
        %v1852 = vld [vmem:[%s786 + $0x8] sm:$0xff]
        %v1853 = vld [vmem:[%s786 + $0x40] sm:$0xff]
        %v1854 = vld [vmem:[%s786 + $0x48] sm:$0xff]
        %v1855 = vld [vmem:[%s786 + $0x80] sm:$0xff]
        %v1856 = vld [vmem:[%s786 + $0x88] sm:$0xff]
        %v1857 = vld [vmem:[%s786 + $0xc0] sm:$0xff]
        %v1858 = vld [vmem:[%s786 + $0xc8] sm:$0xff]
        %v1859 = vld [vmem:[%s790] sm:$0xf]
        %v1861 = vperm.slane %v1859, 0
        %v1862 = vperm.slane %v1859, 1
        %v1863 = vperm.slane %v1859, 2
        %v1864 = vperm.slane %v1859, 3
        %v1877 = vunpack.c.l.b16 %v1851
        %v1878 = vunpack.c.h.b16 %v1851
        %v1879 = vunpack.c.l.b16 %v1852
        %v1880 = vunpack.c.h.b16 %v1852
        %v1881 = vunpack.c.l.b16 %v1853
        %v1882 = vunpack.c.h.b16 %v1853
        %v1883 = vunpack.c.l.b16 %v1854
        %v1884 = vunpack.c.h.b16 %v1854
        %v1885 = vunpack.c.l.b16 %v1855
        %v1886 = vunpack.c.h.b16 %v1855
        %v1887 = vunpack.c.l.b16 %v1856
        %v1888 = vunpack.c.h.b16 %v1856
        %v1889 = vunpack.c.l.b16 %v1857
        %v1890 = vunpack.c.h.b16 %v1857
        %v1891 = vunpack.c.l.b16 %v1858
        %v1892 = vunpack.c.h.b16 %v1858
        %v1893 = vpack.c.b16 %v1881, %v1877
        %v1894 = vpack.c.b16 %v1882, %v1878
        %v1895 = vpack.c.b16 %v1883, %v1879
        %v1896 = vpack.c.b16 %v1884, %v1880
        %v1897 = vpack.c.b16 %v1889, %v1885
        %v1898 = vpack.c.b16 %v1890, %v1886
        %v1899 = vpack.c.b16 %v1891, %v1887
        %v1900 = vpack.c.b16 %v1892, %v1888
        %v1910 = vsel %vm966, %v1849, 0
        %v1913 = vsel %vm966, %v1850, 0
        %1915 = vmatpush.bf16.msra.mxu0 0
        %1916 = vmatpush.bf16.msra.mxu0 0
        %1917 = vmatpush.bf16.msra.mxu0 0
        %1918 = vmatpush.bf16.msra.mxu0 0
        %1919 = vmatpush.bf16.msra.mxu0 0
        %1920 = vmatpush.bf16.msra.mxu0 0
        %1921 = vmatpush.bf16.msra.mxu0 %v1897
        %1922 = vmatpush.bf16.msra.mxu0 %v1893
        %1923 = vmatmul.bf16.gmra.mxu0 %v1910
        %v1924 = vpop.f32.mrf.mxu0
        %v1925 = vadd.f32 %v1861, %v1924
        %v1926 = vpop.f32.mrf.mxu0
        %v1927 = vadd.f32 %v1861, %v1926
        %1928 = vmatmul.bf16.gmra.mxu0 %v1913
        %v1929 = vpop.f32.mrf.mxu0
        %v1930 = vadd.f32 %v1861, %v1929
        %v1931 = vpop.f32.mrf.mxu0
        %1932 = vdwg.mxu0
        %1933 = vmatpush.bf16.msra.mxu0 0
        %1934 = vmatpush.bf16.msra.mxu0 0
        %1935 = vmatpush.bf16.msra.mxu0 0
        %1936 = vmatpush.bf16.msra.mxu0 0
        %1937 = vmatpush.bf16.msra.mxu0 0
        %1938 = vmatpush.bf16.msra.mxu0 0
        %1939 = vmatpush.bf16.msra.mxu0 %v1898
        %1940 = vmatpush.bf16.msra.mxu0 %v1894
        %1941 = vmatmul.bf16.gmra.mxu0 %v1910
        %v1942 = vpop.f32.mrf.mxu0
        %v1943 = vadd.f32 %v1862, %v1942
        %v1944 = vpop.f32.mrf.mxu0
        %v1945 = vadd.f32 %v1862, %v1944
        %1946 = vmatmul.bf16.gmra.mxu0 %v1913
        %v1947 = vpop.f32.mrf.mxu0
        %v1948 = vadd.f32 %v1862, %v1947
        %v1949 = vpop.f32.mrf.mxu0
        %1950 = vdwg.mxu0
        %1951 = vmatpush.bf16.msra.mxu0 0
        %1952 = vmatpush.bf16.msra.mxu0 0
        %1953 = vmatpush.bf16.msra.mxu0 0
        %1954 = vmatpush.bf16.msra.mxu0 0
        %1955 = vmatpush.bf16.msra.mxu0 0
        %1956 = vmatpush.bf16.msra.mxu0 0
        %1957 = vmatpush.bf16.msra.mxu0 %v1899
        %1958 = vmatpush.bf16.msra.mxu0 %v1895
        %1959 = vmatmul.bf16.gmra.mxu0 %v1910
        %v1960 = vpop.f32.mrf.mxu0
        %v1961 = vadd.f32 %v1863, %v1960
        %v1962 = vpop.f32.mrf.mxu0
        %v1963 = vadd.f32 %v1863, %v1962
        %1964 = vmatmul.bf16.gmra.mxu0 %v1913
        %v1965 = vpop.f32.mrf.mxu0
        %v1966 = vadd.f32 %v1863, %v1965
        %v1967 = vpop.f32.mrf.mxu0
        %1968 = vdwg.mxu0
        %1969 = vmatpush.bf16.msra.mxu0 0
        %1970 = vmatpush.bf16.msra.mxu0 0
        %1971 = vmatpush.bf16.msra.mxu0 0
        %1972 = vmatpush.bf16.msra.mxu0 0
        %1973 = vmatpush.bf16.msra.mxu0 0
        %1974 = vmatpush.bf16.msra.mxu0 0
        %1975 = vmatpush.bf16.msra.mxu0 %v1900
        %1976 = vmatpush.bf16.msra.mxu0 %v1896
        %1977 = vmatmul.bf16.gmra.mxu0 %v1910
        %v1978 = vpop.f32.mrf.mxu0
        %v1979 = vadd.f32 %v1864, %v1978
        %v1980 = vpop.f32.mrf.mxu0
        %v1981 = vadd.f32 %v1864, %v1980
        %1982 = vmatmul.bf16.gmra.mxu0 %v1913
        %v1983 = vpop.f32.mrf.mxu0
        %v1984 = vadd.f32 %v1864, %v1983
        %v1985 = vpop.f32.mrf.mxu0
        %1986 = vdwg.mxu0
        %v1987 = vmul.f32 %v1925, 0.5
        %v1988 = vmul.f32 %v1943, 0.5
        %v1989 = vmul.f32 %v1961, 0.5
        %v1990 = vmul.f32 %v1979, 0.5
        %v1991 = vmul.f32 %v1927, 0.5
        %v1992 = vmul.f32 %v1945, 0.5
        %v1993 = vmul.f32 %v1963, 0.5
        %v1994 = vmul.f32 %v1981, 0.5
        %v1995 = vmul.f32 %v1930, 0.5
        %v1996 = vmul.f32 %v1948, 0.5
        %v1997 = vmul.f32 %v1966, 0.5
        %v1998 = vmul.f32 %v1984, 0.5
        %v1999 = vmul.f32 %v1925, 0.044715
        %v2000 = vmul.f32 %v1943, 0.044715
        %v2001 = vmul.f32 %v1961, 0.044715
        %v2002 = vmul.f32 %v1979, 0.044715
        %v2003 = vmul.f32 %v1927, 0.044715
        %v2004 = vmul.f32 %v1945, 0.044715
        %v2005 = vmul.f32 %v1963, 0.044715
        %v2006 = vmul.f32 %v1981, 0.044715
        %v2007 = vmul.f32 %v1930, 0.044715
        %v2008 = vmul.f32 %v1948, 0.044715
        %v2009 = vmul.f32 %v1966, 0.044715
        %v2010 = vmul.f32 %v1984, 0.044715
        %v2011 = vmul.f32 %v1999, %v1925
        %v2012 = vmul.f32 %v2000, %v1943
        %v2013 = vmul.f32 %v2001, %v1961
        %v2014 = vmul.f32 %v2002, %v1979
        %v2015 = vmul.f32 %v2003, %v1927
        %v2016 = vmul.f32 %v2004, %v1945
        %v2017 = vmul.f32 %v2005, %v1963
        %v2018 = vmul.f32 %v2006, %v1981
        %v2019 = vmul.f32 %v2007, %v1930
        %v2020 = vmul.f32 %v2008, %v1948
        %v2021 = vmul.f32 %v2009, %v1966
        %v2022 = vmul.f32 %v2010, %v1984
        %v2023 = vmul.f32 %v2011, %v1925
        %v2024 = vmul.f32 %v2012, %v1943
        %v2025 = vmul.f32 %v2013, %v1961
        %v2026 = vmul.f32 %v2014, %v1979
        %v2027 = vmul.f32 %v2015, %v1927
        %v2028 = vmul.f32 %v2016, %v1945
        %v2029 = vmul.f32 %v2017, %v1963
        %v2030 = vmul.f32 %v2018, %v1981
        %v2031 = vmul.f32 %v2019, %v1930
        %v2032 = vmul.f32 %v2020, %v1948
        %v2033 = vmul.f32 %v2021, %v1966
        %v2034 = vmul.f32 %v2022, %v1984
        %v2035 = vadd.f32 %v1925, %v2023
        %v2036 = vadd.f32 %v1943, %v2024
        %v2037 = vadd.f32 %v1961, %v2025
        %v2038 = vadd.f32 %v1979, %v2026
        %v2039 = vadd.f32 %v1927, %v2027
        %v2040 = vadd.f32 %v1945, %v2028
        %v2041 = vadd.f32 %v1963, %v2029
        %v2042 = vadd.f32 %v1981, %v2030
        %v2043 = vadd.f32 %v1930, %v2031
        %v2044 = vadd.f32 %v1948, %v2032
        %v2045 = vadd.f32 %v1966, %v2033
        %v2046 = vadd.f32 %v1984, %v2034
        %v2047 = vmul.f32 %v2035, 0.7978846
        %v2048 = vmul.f32 %v2036, 0.7978846
        %v2049 = vmul.f32 %v2037, 0.7978846
        %v2050 = vmul.f32 %v2038, 0.7978846
        %v2051 = vmul.f32 %v2039, 0.7978846
        %v2052 = vmul.f32 %v2040, 0.7978846
        %v2053 = vmul.f32 %v2041, 0.7978846
        %v2054 = vmul.f32 %v2042, 0.7978846
        %v2055 = vmul.f32 %v2043, 0.7978846
        %v2056 = vmul.f32 %v2044, 0.7978846
        %v2057 = vmul.f32 %v2045, 0.7978846
        %v2058 = vmul.f32 %v2046, 0.7978846
        %v2059 = vtanh.pop %v2047
        %v2060 = vtanh.pop %v2048
        %v2061 = vtanh.pop %v2049
        %v2062 = vtanh.pop %v2050
        %v2063 = vtanh.pop %v2051
        %v2064 = vtanh.pop %v2052
        %v2065 = vtanh.pop %v2053
        %v2066 = vtanh.pop %v2054
        %v2067 = vtanh.pop %v2055
        %v2068 = vtanh.pop %v2056
        %v2069 = vtanh.pop %v2057
        %v2070 = vtanh.pop %v2058
        %v2071 = vadd.f32 %v2059, 1.0
        %v2072 = vadd.f32 %v2060, 1.0
        %v2073 = vadd.f32 %v2061, 1.0
        %v2074 = vadd.f32 %v2062, 1.0
        %v2075 = vadd.f32 %v2063, 1.0
        %v2076 = vadd.f32 %v2064, 1.0
        %v2077 = vadd.f32 %v2065, 1.0
        %v2078 = vadd.f32 %v2066, 1.0
        %v2079 = vadd.f32 %v2067, 1.0
        %v2080 = vadd.f32 %v2068, 1.0
        %v2081 = vadd.f32 %v2069, 1.0
        %v2082 = vadd.f32 %v2070, 1.0
        %v2083 = vmul.f32 %v1987, %v2071
        %v2084 = vmul.f32 %v1988, %v2072
        %v2085 = vmul.f32 %v1989, %v2073
        %v2086 = vmul.f32 %v1990, %v2074
        %v2087 = vmul.f32 %v1991, %v2075
        %v2088 = vmul.f32 %v1992, %v2076
        %v2089 = vmul.f32 %v1993, %v2077
        %v2090 = vmul.f32 %v1994, %v2078
        %v2091 = vmul.f32 %v1995, %v2079
        %v2092 = vmul.f32 %v1996, %v2080
        %v2093 = vmul.f32 %v1997, %v2081
        %v2094 = vmul.f32 %v1998, %v2082
        %v2095 = vpack.c.bf16 %v2087, %v2083
        %v2096 = vpack.c.bf16 %v2088, %v2084
        %v2097 = vpack.c.bf16 %v2089, %v2085
        %v2098 = vpack.c.bf16 %v2090, %v2086
        %v2099 = vpack.c.bf16 %v2091, %v2091
        %v2100 = vpack.c.bf16 %v2092, %v2092
        %v2101 = vpack.c.bf16 %v2093, %v2093
        %v2102 = vpack.c.bf16 %v2094, %v2094
        %v2103 = vld [vmem:[%s795] sm:$0xf]
        %v2104 = vld [vmem:[%s795 + $0x4] sm:$0xf]
        %v2105 = vld [vmem:[%s795 + $0x8] sm:$0xf]
        %v2106 = vld [vmem:[%s795 + $0xc] sm:$0xf]
        %v2107 = vld [vmem:[%s795 + $0x10] sm:$0xf]
        %v2108 = vld [vmem:[%s795 + $0x14] sm:$0xf]
        %v2109 = vld [vmem:[%s795 + $0x18] sm:$0xf]
        %v2110 = vld [vmem:[%s795 + $0x1c] sm:$0xf]
        %v2111 = vld [vmem:[%s795 + $0x20] sm:$0xf]
        %v2112 = vld [vmem:[%s795 + $0x24] sm:$0xf]
        %v2113 = vld [vmem:[%s795 + $0x28] sm:$0xf]
        %v2114 = vld [vmem:[%s795 + $0x2c] sm:$0xf]
        %v2115 = vld [vmem:[%s795 + $0x30] sm:$0xf]
        %v2116 = vld [vmem:[%s795 + $0x34] sm:$0xf]
        %v2117 = vld [vmem:[%s795 + $0x38] sm:$0xf]
        %v2118 = vld [vmem:[%s795 + $0x3c] sm:$0xf]
        %v2119 = vld [vmem:[%s795 + $0x40] sm:$0xf]
        %v2120 = vld [vmem:[%s795 + $0x44] sm:$0xf]
        %v2121 = vld [vmem:[%s795 + $0x48] sm:$0xf]
        %v2122 = vld [vmem:[%s795 + $0x4c] sm:$0xf]
        %v2123 = vld [vmem:[%s795 + $0x50] sm:$0xf]
        %v2124 = vld [vmem:[%s795 + $0x54] sm:$0xf]
        %v2125 = vld [vmem:[%s795 + $0x58] sm:$0xf]
        %v2126 = vld [vmem:[%s795 + $0x5c] sm:$0xf]
        %v2127 = vld [vmem:[%s795 + $0x60] sm:$0xf]
        %v2128 = vld [vmem:[%s795 + $0x64] sm:$0xf]
        %v2129 = vld [vmem:[%s795 + $0x68] sm:$0xf]
        %v2130 = vld [vmem:[%s795 + $0x6c] sm:$0xf]
        %v2131 = vld [vmem:[%s795 + $0x70] sm:$0xf]
        %v2132 = vld [vmem:[%s795 + $0x74] sm:$0xf]
        %v2133 = vld [vmem:[%s795 + $0x78] sm:$0xf]
        %v2134 = vld [vmem:[%s795 + $0x7c] sm:$0xf]
        %v2135 = vld [vmem:[%s795 + $0x80] sm:$0xf]
        %v2136 = vld [vmem:[%s795 + $0x84] sm:$0xf]
        %v2137 = vld [vmem:[%s795 + $0x88] sm:$0xf]
        %v2138 = vld [vmem:[%s795 + $0x8c] sm:$0xf]
        %v2139 = vld [vmem:[%s795 + $0x90] sm:$0xf]
        %v2140 = vld [vmem:[%s795 + $0x94] sm:$0xf]
        %v2141 = vld [vmem:[%s795 + $0x98] sm:$0xf]
        %v2142 = vld [vmem:[%s795 + $0x9c] sm:$0xf]
        %v2143 = vld [vmem:[%s795 + $0xa0] sm:$0xf]
        %v2144 = vld [vmem:[%s795 + $0xa4] sm:$0xf]
        %v2145 = vld [vmem:[%s795 + $0xa8] sm:$0xf]
        %v2146 = vld [vmem:[%s795 + $0xac] sm:$0xf]
        %v2147 = vld [vmem:[%s795 + $0xb0] sm:$0xf]
        %v2148 = vld [vmem:[%s795 + $0xb4] sm:$0xf]
        %v2149 = vld [vmem:[%s795 + $0xb8] sm:$0xf]
        %v2150 = vld [vmem:[%s795 + $0xbc] sm:$0xf]
        %v2151 = vld [vmem:[%s795 + $0xc0] sm:$0xf]
        %v2152 = vld [vmem:[%s795 + $0xc4] sm:$0xf]
        %v2153 = vld [vmem:[%s795 + $0xc8] sm:$0xf]
        %v2154 = vld [vmem:[%s795 + $0xcc] sm:$0xf]
        %v2155 = vld [vmem:[%s795 + $0xd0] sm:$0xf]
        %v2156 = vld [vmem:[%s795 + $0xd4] sm:$0xf]
        %v2157 = vld [vmem:[%s795 + $0xd8] sm:$0xf]
        %v2158 = vld [vmem:[%s795 + $0xdc] sm:$0xf]
        %v2159 = vld [vmem:[%s795 + $0xe0] sm:$0xf]
        %v2160 = vld [vmem:[%s795 + $0xe4] sm:$0xf]
        %v2161 = vld [vmem:[%s795 + $0xe8] sm:$0xf]
        %v2162 = vld [vmem:[%s795 + $0xec] sm:$0xf]
        %v2163 = vld [vmem:[%s795 + $0xf0] sm:$0xf]
        %v2164 = vld [vmem:[%s795 + $0xf4] sm:$0xf]
        %v2165 = vld [vmem:[%s795 + $0xf8] sm:$0xf]
        %v2166 = vld [vmem:[%s795 + $0xfc] sm:$0xf]
        %v2167 = vld [vmem:[%s786 + $0x10] sm:$0xff]
        %v2168 = vld [vmem:[%s786 + $0x18] sm:$0xff]
        %v2169 = vld [vmem:[%s786 + $0x50] sm:$0xff]
        %v2170 = vld [vmem:[%s786 + $0x58] sm:$0xff]
        %v2171 = vld [vmem:[%s786 + $0x90] sm:$0xff]
        %v2172 = vld [vmem:[%s786 + $0x98] sm:$0xff]
        %v2173 = vld [vmem:[%s786 + $0xd0] sm:$0xff]
        %v2174 = vld [vmem:[%s786 + $0xd8] sm:$0xff]
        %v2175 = vld [vmem:[%s790 + $0x4] sm:$0xf]
        %v2177 = vperm.slane %v2175, 0
        %v2178 = vperm.slane %v2175, 1
        %v2179 = vperm.slane %v2175, 2
        %v2180 = vperm.slane %v2175, 3
        %v2193 = vunpack.c.l.b16 %v2167
        %v2194 = vunpack.c.h.b16 %v2167
        %v2195 = vunpack.c.l.b16 %v2168
        %v2196 = vunpack.c.h.b16 %v2168
        %v2197 = vunpack.c.l.b16 %v2169
        %v2198 = vunpack.c.h.b16 %v2169
        %v2199 = vunpack.c.l.b16 %v2170
        %v2200 = vunpack.c.h.b16 %v2170
        %v2201 = vunpack.c.l.b16 %v2171
        %v2202 = vunpack.c.h.b16 %v2171
        %v2203 = vunpack.c.l.b16 %v2172
        %v2204 = vunpack.c.h.b16 %v2172
        %v2205 = vunpack.c.l.b16 %v2173
        %v2206 = vunpack.c.h.b16 %v2173
        %v2207 = vunpack.c.l.b16 %v2174
        %v2208 = vunpack.c.h.b16 %v2174
        %v2209 = vpack.c.b16 %v2197, %v2193
        %v2210 = vpack.c.b16 %v2198, %v2194
        %v2211 = vpack.c.b16 %v2199, %v2195
        %v2212 = vpack.c.b16 %v2200, %v2196
        %v2213 = vpack.c.b16 %v2205, %v2201
        %v2214 = vpack.c.b16 %v2206, %v2202
        %v2215 = vpack.c.b16 %v2207, %v2203
        %v2216 = vpack.c.b16 %v2208, %v2204
        %2225 = vmatpush.bf16.msra.mxu0 0
        %2226 = vmatpush.bf16.msra.mxu0 0
        %2227 = vmatpush.bf16.msra.mxu0 0
        %2228 = vmatpush.bf16.msra.mxu0 0
        %2229 = vmatpush.bf16.msra.mxu0 0
        %2230 = vmatpush.bf16.msra.mxu0 0
        %2231 = vmatpush.bf16.msra.mxu0 %v2213
        %2232 = vmatpush.bf16.msra.mxu0 %v2209
        %2233 = vmatmul.bf16.gmra.mxu0 %v1910
        %v2234 = vpop.f32.mrf.mxu0
        %v2235 = vadd.f32 %v2177, %v2234
        %v2236 = vpop.f32.mrf.mxu0
        %v2237 = vadd.f32 %v2177, %v2236
        %2238 = vmatmul.bf16.gmra.mxu0 %v1913
        %v2239 = vpop.f32.mrf.mxu0
        %v2240 = vadd.f32 %v2177, %v2239
        %v2241 = vpop.f32.mrf.mxu0
        %2242 = vdwg.mxu0
        %2243 = vmatpush.bf16.msra.mxu0 0
        %2244 = vmatpush.bf16.msra.mxu0 0
        %2245 = vmatpush.bf16.msra.mxu0 0
        %2246 = vmatpush.bf16.msra.mxu0 0
        %2247 = vmatpush.bf16.msra.mxu0 0
        %2248 = vmatpush.bf16.msra.mxu0 0
        %2249 = vmatpush.bf16.msra.mxu0 %v2214
        %2250 = vmatpush.bf16.msra.mxu0 %v2210
        %2251 = vmatmul.bf16.gmra.mxu0 %v1910
        %v2252 = vpop.f32.mrf.mxu0
        %v2253 = vadd.f32 %v2178, %v2252
        %v2254 = vpop.f32.mrf.mxu0
        %v2255 = vadd.f32 %v2178, %v2254
        %2256 = vmatmul.bf16.gmra.mxu0 %v1913
        %v2257 = vpop.f32.mrf.mxu0
        %v2258 = vadd.f32 %v2178, %v2257
        %v2259 = vpop.f32.mrf.mxu0
        %2260 = vdwg.mxu0
        %2261 = vmatpush.bf16.msra.mxu0 0
        %2262 = vmatpush.bf16.msra.mxu0 0
        %2263 = vmatpush.bf16.msra.mxu0 0
        %2264 = vmatpush.bf16.msra.mxu0 0
        %2265 = vmatpush.bf16.msra.mxu0 0
        %2266 = vmatpush.bf16.msra.mxu0 0
        %2267 = vmatpush.bf16.msra.mxu0 %v2215
        %2268 = vmatpush.bf16.msra.mxu0 %v2211
        %2269 = vmatmul.bf16.gmra.mxu0 %v1910
        %v2270 = vpop.f32.mrf.mxu0
        %v2271 = vadd.f32 %v2179, %v2270
        %v2272 = vpop.f32.mrf.mxu0
        %v2273 = vadd.f32 %v2179, %v2272
        %2274 = vmatmul.bf16.gmra.mxu0 %v1913
        %v2275 = vpop.f32.mrf.mxu0
        %v2276 = vadd.f32 %v2179, %v2275
        %v2277 = vpop.f32.mrf.mxu0
        %2278 = vdwg.mxu0
        %2279 = vmatpush.bf16.msra.mxu0 0
        %2280 = vmatpush.bf16.msra.mxu0 0
        %2281 = vmatpush.bf16.msra.mxu0 0
        %2282 = vmatpush.bf16.msra.mxu0 0
        %2283 = vmatpush.bf16.msra.mxu0 0
        %2284 = vmatpush.bf16.msra.mxu0 0
        %2285 = vmatpush.bf16.msra.mxu0 %v2216
        %2286 = vmatpush.bf16.msra.mxu0 %v2212
        %2287 = vmatmul.bf16.gmra.mxu0 %v1910
        %v2288 = vpop.f32.mrf.mxu0
        %v2289 = vadd.f32 %v2180, %v2288
        %v2290 = vpop.f32.mrf.mxu0
        %v2291 = vadd.f32 %v2180, %v2290
        %2292 = vmatmul.bf16.gmra.mxu0 %v1913
        %v2293 = vpop.f32.mrf.mxu0
        %v2294 = vadd.f32 %v2180, %v2293
        %v2295 = vpop.f32.mrf.mxu0
        %2296 = vdwg.mxu0
        %v2297 = vmul.f32 %v2235, 0.5
        %v2298 = vmul.f32 %v2253, 0.5
        %v2299 = vmul.f32 %v2271, 0.5
        %v2300 = vmul.f32 %v2289, 0.5
        %v2301 = vmul.f32 %v2237, 0.5
        %v2302 = vmul.f32 %v2255, 0.5
        %v2303 = vmul.f32 %v2273, 0.5
        %v2304 = vmul.f32 %v2291, 0.5
        %v2305 = vmul.f32 %v2240, 0.5
        %v2306 = vmul.f32 %v2258, 0.5
        %v2307 = vmul.f32 %v2276, 0.5
        %v2308 = vmul.f32 %v2294, 0.5
        %v2309 = vmul.f32 %v2235, 0.044715
        %v2310 = vmul.f32 %v2253, 0.044715
        %v2311 = vmul.f32 %v2271, 0.044715
        %v2312 = vmul.f32 %v2289, 0.044715
        %v2313 = vmul.f32 %v2237, 0.044715
        %v2314 = vmul.f32 %v2255, 0.044715
        %v2315 = vmul.f32 %v2273, 0.044715
        %v2316 = vmul.f32 %v2291, 0.044715
        %v2317 = vmul.f32 %v2240, 0.044715
        %v2318 = vmul.f32 %v2258, 0.044715
        %v2319 = vmul.f32 %v2276, 0.044715
        %v2320 = vmul.f32 %v2294, 0.044715
        %v2321 = vmul.f32 %v2309, %v2235
        %v2322 = vmul.f32 %v2310, %v2253
        %v2323 = vmul.f32 %v2311, %v2271
        %v2324 = vmul.f32 %v2312, %v2289
        %v2325 = vmul.f32 %v2313, %v2237
        %v2326 = vmul.f32 %v2314, %v2255
        %v2327 = vmul.f32 %v2315, %v2273
        %v2328 = vmul.f32 %v2316, %v2291
        %v2329 = vmul.f32 %v2317, %v2240
        %v2330 = vmul.f32 %v2318, %v2258
        %v2331 = vmul.f32 %v2319, %v2276
        %v2332 = vmul.f32 %v2320, %v2294
        %v2333 = vmul.f32 %v2321, %v2235
        %v2334 = vmul.f32 %v2322, %v2253
        %v2335 = vmul.f32 %v2323, %v2271
        %v2336 = vmul.f32 %v2324, %v2289
        %v2337 = vmul.f32 %v2325, %v2237
        %v2338 = vmul.f32 %v2326, %v2255
        %v2339 = vmul.f32 %v2327, %v2273
        %v2340 = vmul.f32 %v2328, %v2291
        %v2341 = vmul.f32 %v2329, %v2240
        %v2342 = vmul.f32 %v2330, %v2258
        %v2343 = vmul.f32 %v2331, %v2276
        %v2344 = vmul.f32 %v2332, %v2294
        %v2345 = vadd.f32 %v2235, %v2333
        %v2346 = vadd.f32 %v2253, %v2334
        %v2347 = vadd.f32 %v2271, %v2335
        %v2348 = vadd.f32 %v2289, %v2336
        %v2349 = vadd.f32 %v2237, %v2337
        %v2350 = vadd.f32 %v2255, %v2338
        %v2351 = vadd.f32 %v2273, %v2339
        %v2352 = vadd.f32 %v2291, %v2340
        %v2353 = vadd.f32 %v2240, %v2341
        %v2354 = vadd.f32 %v2258, %v2342
        %v2355 = vadd.f32 %v2276, %v2343
        %v2356 = vadd.f32 %v2294, %v2344
        %v2357 = vmul.f32 %v2345, 0.7978846
        %v2358 = vmul.f32 %v2346, 0.7978846
        %v2359 = vmul.f32 %v2347, 0.7978846
        %v2360 = vmul.f32 %v2348, 0.7978846
        %v2361 = vmul.f32 %v2349, 0.7978846
        %v2362 = vmul.f32 %v2350, 0.7978846
        %v2363 = vmul.f32 %v2351, 0.7978846
        %v2364 = vmul.f32 %v2352, 0.7978846
        %v2365 = vmul.f32 %v2353, 0.7978846
        %v2366 = vmul.f32 %v2354, 0.7978846
        %v2367 = vmul.f32 %v2355, 0.7978846
        %v2368 = vmul.f32 %v2356, 0.7978846
        %v2369 = vtanh.pop %v2357
        %v2370 = vtanh.pop %v2358
        %v2371 = vtanh.pop %v2359
        %v2372 = vtanh.pop %v2360
        %v2373 = vtanh.pop %v2361
        %v2374 = vtanh.pop %v2362
        %v2375 = vtanh.pop %v2363
        %v2376 = vtanh.pop %v2364
        %v2377 = vtanh.pop %v2365
        %v2378 = vtanh.pop %v2366
        %v2379 = vtanh.pop %v2367
        %v2380 = vtanh.pop %v2368
        %v2381 = vadd.f32 %v2369, 1.0
        %v2382 = vadd.f32 %v2370, 1.0
        %v2383 = vadd.f32 %v2371, 1.0
        %v2384 = vadd.f32 %v2372, 1.0
        %v2385 = vadd.f32 %v2373, 1.0
        %v2386 = vadd.f32 %v2374, 1.0
        %v2387 = vadd.f32 %v2375, 1.0
        %v2388 = vadd.f32 %v2376, 1.0
        %v2389 = vadd.f32 %v2377, 1.0
        %v2390 = vadd.f32 %v2378, 1.0
        %v2391 = vadd.f32 %v2379, 1.0
        %v2392 = vadd.f32 %v2380, 1.0
        %v2393 = vmul.f32 %v2297, %v2381
        %v2394 = vmul.f32 %v2298, %v2382
        %v2395 = vmul.f32 %v2299, %v2383
        %v2396 = vmul.f32 %v2300, %v2384
        %v2397 = vmul.f32 %v2301, %v2385
        %v2398 = vmul.f32 %v2302, %v2386
        %v2399 = vmul.f32 %v2303, %v2387
        %v2400 = vmul.f32 %v2304, %v2388
        %v2401 = vmul.f32 %v2305, %v2389
        %v2402 = vmul.f32 %v2306, %v2390
        %v2403 = vmul.f32 %v2307, %v2391
        %v2404 = vmul.f32 %v2308, %v2392
        %v2405 = vpack.c.bf16 %v2397, %v2393
        %v2406 = vpack.c.bf16 %v2398, %v2394
        %v2407 = vpack.c.bf16 %v2399, %v2395
        %v2408 = vpack.c.bf16 %v2400, %v2396
        %v2409 = vpack.c.bf16 %v2401, %v2401
        %v2410 = vpack.c.bf16 %v2402, %v2402
        %v2411 = vpack.c.bf16 %v2403, %v2403
        %v2412 = vpack.c.bf16 %v2404, %v2404
        %v2413 = vld [vmem:[%s795 + $0x100] sm:$0xf]
        %v2414 = vld [vmem:[%s795 + $0x104] sm:$0xf]
        %v2415 = vld [vmem:[%s795 + $0x108] sm:$0xf]
        %v2416 = vld [vmem:[%s795 + $0x10c] sm:$0xf]
        %v2417 = vld [vmem:[%s795 + $0x110] sm:$0xf]
        %v2418 = vld [vmem:[%s795 + $0x114] sm:$0xf]
        %v2419 = vld [vmem:[%s795 + $0x118] sm:$0xf]
        %v2420 = vld [vmem:[%s795 + $0x11c] sm:$0xf]
        %v2421 = vld [vmem:[%s795 + $0x120] sm:$0xf]
        %v2422 = vld [vmem:[%s795 + $0x124] sm:$0xf]
        %v2423 = vld [vmem:[%s795 + $0x128] sm:$0xf]
        %v2424 = vld [vmem:[%s795 + $0x12c] sm:$0xf]
        %v2425 = vld [vmem:[%s795 + $0x130] sm:$0xf]
        %v2426 = vld [vmem:[%s795 + $0x134] sm:$0xf]
        %v2427 = vld [vmem:[%s795 + $0x138] sm:$0xf]
        %v2428 = vld [vmem:[%s795 + $0x13c] sm:$0xf]
        %v2429 = vld [vmem:[%s795 + $0x140] sm:$0xf]
        %v2430 = vld [vmem:[%s795 + $0x144] sm:$0xf]
        %v2431 = vld [vmem:[%s795 + $0x148] sm:$0xf]
        %v2432 = vld [vmem:[%s795 + $0x14c] sm:$0xf]
        %v2433 = vld [vmem:[%s795 + $0x150] sm:$0xf]
        %v2434 = vld [vmem:[%s795 + $0x154] sm:$0xf]
        %v2435 = vld [vmem:[%s795 + $0x158] sm:$0xf]
        %v2436 = vld [vmem:[%s795 + $0x15c] sm:$0xf]
        %v2437 = vld [vmem:[%s795 + $0x160] sm:$0xf]
        %v2438 = vld [vmem:[%s795 + $0x164] sm:$0xf]
        %v2439 = vld [vmem:[%s795 + $0x168] sm:$0xf]
        %v2440 = vld [vmem:[%s795 + $0x16c] sm:$0xf]
        %v2441 = vld [vmem:[%s795 + $0x170] sm:$0xf]
        %v2442 = vld [vmem:[%s795 + $0x174] sm:$0xf]
        %v2443 = vld [vmem:[%s795 + $0x178] sm:$0xf]
        %v2444 = vld [vmem:[%s795 + $0x17c] sm:$0xf]
        %v2445 = vld [vmem:[%s795 + $0x180] sm:$0xf]
        %v2446 = vld [vmem:[%s795 + $0x184] sm:$0xf]
        %v2447 = vld [vmem:[%s795 + $0x188] sm:$0xf]
        %v2448 = vld [vmem:[%s795 + $0x18c] sm:$0xf]
        %v2449 = vld [vmem:[%s795 + $0x190] sm:$0xf]
        %v2450 = vld [vmem:[%s795 + $0x194] sm:$0xf]
        %v2451 = vld [vmem:[%s795 + $0x198] sm:$0xf]
        %v2452 = vld [vmem:[%s795 + $0x19c] sm:$0xf]
        %v2453 = vld [vmem:[%s795 + $0x1a0] sm:$0xf]
        %v2454 = vld [vmem:[%s795 + $0x1a4] sm:$0xf]
        %v2455 = vld [vmem:[%s795 + $0x1a8] sm:$0xf]
        %v2456 = vld [vmem:[%s795 + $0x1ac] sm:$0xf]
        %v2457 = vld [vmem:[%s795 + $0x1b0] sm:$0xf]
        %v2458 = vld [vmem:[%s795 + $0x1b4] sm:$0xf]
        %v2459 = vld [vmem:[%s795 + $0x1b8] sm:$0xf]
        %v2460 = vld [vmem:[%s795 + $0x1bc] sm:$0xf]
        %v2461 = vld [vmem:[%s795 + $0x1c0] sm:$0xf]
        %v2462 = vld [vmem:[%s795 + $0x1c4] sm:$0xf]
        %v2463 = vld [vmem:[%s795 + $0x1c8] sm:$0xf]
        %v2464 = vld [vmem:[%s795 + $0x1cc] sm:$0xf]
        %v2465 = vld [vmem:[%s795 + $0x1d0] sm:$0xf]
        %v2466 = vld [vmem:[%s795 + $0x1d4] sm:$0xf]
        %v2467 = vld [vmem:[%s795 + $0x1d8] sm:$0xf]
        %v2468 = vld [vmem:[%s795 + $0x1dc] sm:$0xf]
        %v2469 = vld [vmem:[%s795 + $0x1e0] sm:$0xf]
        %v2470 = vld [vmem:[%s795 + $0x1e4] sm:$0xf]
        %v2471 = vld [vmem:[%s795 + $0x1e8] sm:$0xf]
        %v2472 = vld [vmem:[%s795 + $0x1ec] sm:$0xf]
        %v2473 = vld [vmem:[%s795 + $0x1f0] sm:$0xf]
        %v2474 = vld [vmem:[%s795 + $0x1f4] sm:$0xf]
        %v2475 = vld [vmem:[%s795 + $0x1f8] sm:$0xf]
        %v2476 = vld [vmem:[%s795 + $0x1fc] sm:$0xf]
        %v2541 = vunpack.c.l.b16 %v2413
        %v2542 = vunpack.c.l.b16 %v2414
        %v2543 = vunpack.c.l.b16 %v2415
        %v2544 = vunpack.c.l.b16 %v2416
        %v2545 = vunpack.c.l.b16 %v2417
        %v2546 = vunpack.c.l.b16 %v2418
        %v2547 = vunpack.c.l.b16 %v2419
        %v2548 = vunpack.c.l.b16 %v2420
        %v2549 = vunpack.c.l.b16 %v2421
        %v2550 = vunpack.c.l.b16 %v2422
        %v2551 = vunpack.c.l.b16 %v2423
        %v2552 = vunpack.c.l.b16 %v2424
        %v2553 = vunpack.c.l.b16 %v2425
        %v2554 = vunpack.c.l.b16 %v2426
        %v2555 = vunpack.c.l.b16 %v2427
        %v2556 = vunpack.c.l.b16 %v2428
        %v2557 = vunpack.c.l.b16 %v2429
        %v2558 = vunpack.c.l.b16 %v2430
        %v2559 = vunpack.c.l.b16 %v2431
        %v2560 = vunpack.c.l.b16 %v2432
        %v2561 = vunpack.c.l.b16 %v2433
        %v2562 = vunpack.c.l.b16 %v2434
        %v2563 = vunpack.c.l.b16 %v2435
        %v2564 = vunpack.c.l.b16 %v2436
        %v2565 = vunpack.c.l.b16 %v2437
        %v2566 = vunpack.c.l.b16 %v2438
        %v2567 = vunpack.c.l.b16 %v2439
        %v2568 = vunpack.c.l.b16 %v2440
        %v2569 = vunpack.c.l.b16 %v2441
        %v2570 = vunpack.c.l.b16 %v2442
        %v2571 = vunpack.c.l.b16 %v2443
        %v2572 = vunpack.c.l.b16 %v2444
        %v2573 = vunpack.c.l.b16 %v2445
        %v2574 = vunpack.c.l.b16 %v2446
        %v2575 = vunpack.c.l.b16 %v2447
        %v2576 = vunpack.c.l.b16 %v2448
        %v2577 = vunpack.c.l.b16 %v2449
        %v2578 = vunpack.c.l.b16 %v2450
        %v2579 = vunpack.c.l.b16 %v2451
        %v2580 = vunpack.c.l.b16 %v2452
        %v2581 = vunpack.c.l.b16 %v2453
        %v2582 = vunpack.c.l.b16 %v2454
        %v2583 = vunpack.c.l.b16 %v2455
        %v2584 = vunpack.c.l.b16 %v2456
        %v2585 = vunpack.c.l.b16 %v2457
        %v2586 = vunpack.c.l.b16 %v2458
        %v2587 = vunpack.c.l.b16 %v2459
        %v2588 = vunpack.c.l.b16 %v2460
        %v2589 = vunpack.c.l.b16 %v2461
        %v2590 = vunpack.c.l.b16 %v2462
        %v2591 = vunpack.c.l.b16 %v2463
        %v2592 = vunpack.c.l.b16 %v2464
        %v2593 = vunpack.c.l.b16 %v2465
        %v2594 = vunpack.c.l.b16 %v2466
        %v2595 = vunpack.c.l.b16 %v2467
        %v2596 = vunpack.c.l.b16 %v2468
        %v2597 = vunpack.c.l.b16 %v2469
        %v2598 = vunpack.c.l.b16 %v2470
        %v2599 = vunpack.c.l.b16 %v2471
        %v2600 = vunpack.c.l.b16 %v2472
        %v2601 = vunpack.c.l.b16 %v2473
        %v2602 = vunpack.c.l.b16 %v2474
        %v2603 = vunpack.c.l.b16 %v2475
        %v2604 = vunpack.c.l.b16 %v2476
        %v2605 = vpack.c.b16 %v2542, %v2541
        %v2606 = vpack.c.b16 %v2544, %v2543
        %v2607 = vpack.c.b16 %v2546, %v2545
        %v2608 = vpack.c.b16 %v2548, %v2547
        %v2609 = vpack.c.b16 %v2550, %v2549
        %v2610 = vpack.c.b16 %v2552, %v2551
        %v2611 = vpack.c.b16 %v2554, %v2553
        %v2612 = vpack.c.b16 %v2556, %v2555
        %v2613 = vpack.c.b16 %v2558, %v2557
        %v2614 = vpack.c.b16 %v2560, %v2559
        %v2615 = vpack.c.b16 %v2562, %v2561
        %v2616 = vpack.c.b16 %v2564, %v2563
        %v2617 = vpack.c.b16 %v2566, %v2565
        %v2618 = vpack.c.b16 %v2568, %v2567
        %v2619 = vpack.c.b16 %v2570, %v2569
        %v2620 = vpack.c.b16 %v2572, %v2571
        %v2621 = vpack.c.b16 %v2574, %v2573
        %v2622 = vpack.c.b16 %v2576, %v2575
        %v2623 = vpack.c.b16 %v2578, %v2577
        %v2624 = vpack.c.b16 %v2580, %v2579
        %v2625 = vpack.c.b16 %v2582, %v2581
        %v2626 = vpack.c.b16 %v2584, %v2583
        %v2627 = vpack.c.b16 %v2586, %v2585
        %v2628 = vpack.c.b16 %v2588, %v2587
        %v2629 = vpack.c.b16 %v2590, %v2589
        %v2630 = vpack.c.b16 %v2592, %v2591
        %v2631 = vpack.c.b16 %v2594, %v2593
        %v2632 = vpack.c.b16 %v2596, %v2595
        %v2633 = vpack.c.b16 %v2598, %v2597
        %v2634 = vpack.c.b16 %v2600, %v2599
        %v2635 = vpack.c.b16 %v2602, %v2601
        %v2636 = vpack.c.b16 %v2604, %v2603
        %2669 = vmatpush.bf16.msra.mxu0 %v2612
        %2670 = vmatpush.bf16.msra.mxu0 %v2611
        %2671 = vmatpush.bf16.msra.mxu0 %v2610
        %2672 = vmatpush.bf16.msra.mxu0 %v2609
        %2673 = vmatpush.bf16.msra.mxu0 %v2608
        %2674 = vmatpush.bf16.msra.mxu0 %v2607
        %2675 = vmatpush.bf16.msra.mxu0 %v2606
        %2676 = vmatpush.bf16.msra.mxu0 %v2605
        %2677 = vmatmul.bf16.gmra.mxu0 %v2405
        %v2678 = vpop.f32.mrf.mxu0
        %v2679 = vadd.f32 0.0, %v2678
        %v2680 = vpop.f32.mrf.mxu0
        %v2681 = vadd.f32 0.0, %v2680
        %2682 = vmatmul.bf16.gmra.mxu0 %v2409
        %v2683 = vpop.f32.mrf.mxu0
        %v2684 = vadd.f32 0.0, %v2683
        %v2685 = vpop.f32.mrf.mxu0
        %2686 = vdwg.mxu0
        %2687 = vmatpush.bf16.msra.mxu0 %v2620
        %2688 = vmatpush.bf16.msra.mxu0 %v2619
        %2689 = vmatpush.bf16.msra.mxu0 %v2618
        %2690 = vmatpush.bf16.msra.mxu0 %v2617
        %2691 = vmatpush.bf16.msra.mxu0 %v2616
        %2692 = vmatpush.bf16.msra.mxu0 %v2615
        %2693 = vmatpush.bf16.msra.mxu0 %v2614
        %2694 = vmatpush.bf16.msra.mxu0 %v2613
        %2695 = vmatmul.bf16.gmra.mxu0 %v2406
        %v2696 = vpop.f32.mrf.mxu0
        %v2697 = vadd.f32 %v2679, %v2696
        %v2698 = vpop.f32.mrf.mxu0
        %v2699 = vadd.f32 %v2681, %v2698
        %2700 = vmatmul.bf16.gmra.mxu0 %v2410
        %v2701 = vpop.f32.mrf.mxu0
        %v2702 = vadd.f32 %v2684, %v2701
        %v2703 = vpop.f32.mrf.mxu0
        %2704 = vdwg.mxu0
        %2705 = vmatpush.bf16.msra.mxu0 %v2628
        %2706 = vmatpush.bf16.msra.mxu0 %v2627
        %2707 = vmatpush.bf16.msra.mxu0 %v2626
        %2708 = vmatpush.bf16.msra.mxu0 %v2625
        %2709 = vmatpush.bf16.msra.mxu0 %v2624
        %2710 = vmatpush.bf16.msra.mxu0 %v2623
        %2711 = vmatpush.bf16.msra.mxu0 %v2622
        %2712 = vmatpush.bf16.msra.mxu0 %v2621
        %2713 = vmatmul.bf16.gmra.mxu0 %v2407
        %v2714 = vpop.f32.mrf.mxu0
        %v2715 = vadd.f32 %v2697, %v2714
        %v2716 = vpop.f32.mrf.mxu0
        %v2717 = vadd.f32 %v2699, %v2716
        %2718 = vmatmul.bf16.gmra.mxu0 %v2411
        %v2719 = vpop.f32.mrf.mxu0
        %v2720 = vadd.f32 %v2702, %v2719
        %v2721 = vpop.f32.mrf.mxu0
        %2722 = vdwg.mxu0
        %2723 = vmatpush.bf16.msra.mxu0 %v2636
        %2724 = vmatpush.bf16.msra.mxu0 %v2635
        %2725 = vmatpush.bf16.msra.mxu0 %v2634
        %2726 = vmatpush.bf16.msra.mxu0 %v2633
        %2727 = vmatpush.bf16.msra.mxu0 %v2632
        %2728 = vmatpush.bf16.msra.mxu0 %v2631
        %2729 = vmatpush.bf16.msra.mxu0 %v2630
        %2730 = vmatpush.bf16.msra.mxu0 %v2629
        %2731 = vmatmul.bf16.gmra.mxu0 %v2408
        %v2732 = vpop.f32.mrf.mxu0
        %v2733 = vadd.f32 %v2715, %v2732
        %v2734 = vpop.f32.mrf.mxu0
        %v2735 = vadd.f32 %v2717, %v2734
        %2736 = vmatmul.bf16.gmra.mxu0 %v2412
        %v2737 = vpop.f32.mrf.mxu0
        %v2738 = vadd.f32 %v2720, %v2737
        %v2739 = vpop.f32.mrf.mxu0
        %2740 = vdwg.mxu0
        %v2805 = vunpack.c.l.b16 %v2103
        %v2806 = vunpack.c.l.b16 %v2104
        %v2807 = vunpack.c.l.b16 %v2105
        %v2808 = vunpack.c.l.b16 %v2106
        %v2809 = vunpack.c.l.b16 %v2107
        %v2810 = vunpack.c.l.b16 %v2108
        %v2811 = vunpack.c.l.b16 %v2109
        %v2812 = vunpack.c.l.b16 %v2110
        %v2813 = vunpack.c.l.b16 %v2111
        %v2814 = vunpack.c.l.b16 %v2112
        %v2815 = vunpack.c.l.b16 %v2113
        %v2816 = vunpack.c.l.b16 %v2114
        %v2817 = vunpack.c.l.b16 %v2115
        %v2818 = vunpack.c.l.b16 %v2116
        %v2819 = vunpack.c.l.b16 %v2117
        %v2820 = vunpack.c.l.b16 %v2118
        %v2821 = vunpack.c.l.b16 %v2119
        %v2822 = vunpack.c.l.b16 %v2120
        %v2823 = vunpack.c.l.b16 %v2121
        %v2824 = vunpack.c.l.b16 %v2122
        %v2825 = vunpack.c.l.b16 %v2123
        %v2826 = vunpack.c.l.b16 %v2124
        %v2827 = vunpack.c.l.b16 %v2125
        %v2828 = vunpack.c.l.b16 %v2126
        %v2829 = vunpack.c.l.b16 %v2127
        %v2830 = vunpack.c.l.b16 %v2128
        %v2831 = vunpack.c.l.b16 %v2129
        %v2832 = vunpack.c.l.b16 %v2130
        %v2833 = vunpack.c.l.b16 %v2131
        %v2834 = vunpack.c.l.b16 %v2132
        %v2835 = vunpack.c.l.b16 %v2133
        %v2836 = vunpack.c.l.b16 %v2134
        %v2837 = vunpack.c.l.b16 %v2135
        %v2838 = vunpack.c.l.b16 %v2136
        %v2839 = vunpack.c.l.b16 %v2137
        %v2840 = vunpack.c.l.b16 %v2138
        %v2841 = vunpack.c.l.b16 %v2139
        %v2842 = vunpack.c.l.b16 %v2140
        %v2843 = vunpack.c.l.b16 %v2141
        %v2844 = vunpack.c.l.b16 %v2142
        %v2845 = vunpack.c.l.b16 %v2143
        %v2846 = vunpack.c.l.b16 %v2144
        %v2847 = vunpack.c.l.b16 %v2145
        %v2848 = vunpack.c.l.b16 %v2146
        %v2849 = vunpack.c.l.b16 %v2147
        %v2850 = vunpack.c.l.b16 %v2148
        %v2851 = vunpack.c.l.b16 %v2149
        %v2852 = vunpack.c.l.b16 %v2150
        %v2853 = vunpack.c.l.b16 %v2151
        %v2854 = vunpack.c.l.b16 %v2152
        %v2855 = vunpack.c.l.b16 %v2153
        %v2856 = vunpack.c.l.b16 %v2154
        %v2857 = vunpack.c.l.b16 %v2155
        %v2858 = vunpack.c.l.b16 %v2156
        %v2859 = vunpack.c.l.b16 %v2157
        %v2860 = vunpack.c.l.b16 %v2158
        %v2861 = vunpack.c.l.b16 %v2159
        %v2862 = vunpack.c.l.b16 %v2160
        %v2863 = vunpack.c.l.b16 %v2161
        %v2864 = vunpack.c.l.b16 %v2162
        %v2865 = vunpack.c.l.b16 %v2163
        %v2866 = vunpack.c.l.b16 %v2164
        %v2867 = vunpack.c.l.b16 %v2165
        %v2868 = vunpack.c.l.b16 %v2166
        %v2869 = vpack.c.b16 %v2806, %v2805
        %v2870 = vpack.c.b16 %v2808, %v2807
        %v2871 = vpack.c.b16 %v2810, %v2809
        %v2872 = vpack.c.b16 %v2812, %v2811
        %v2873 = vpack.c.b16 %v2814, %v2813
        %v2874 = vpack.c.b16 %v2816, %v2815
        %v2875 = vpack.c.b16 %v2818, %v2817
        %v2876 = vpack.c.b16 %v2820, %v2819
        %v2877 = vpack.c.b16 %v2822, %v2821
        %v2878 = vpack.c.b16 %v2824, %v2823
        %v2879 = vpack.c.b16 %v2826, %v2825
        %v2880 = vpack.c.b16 %v2828, %v2827
        %v2881 = vpack.c.b16 %v2830, %v2829
        %v2882 = vpack.c.b16 %v2832, %v2831
        %v2883 = vpack.c.b16 %v2834, %v2833
        %v2884 = vpack.c.b16 %v2836, %v2835
        %v2885 = vpack.c.b16 %v2838, %v2837
        %v2886 = vpack.c.b16 %v2840, %v2839
        %v2887 = vpack.c.b16 %v2842, %v2841
        %v2888 = vpack.c.b16 %v2844, %v2843
        %v2889 = vpack.c.b16 %v2846, %v2845
        %v2890 = vpack.c.b16 %v2848, %v2847
        %v2891 = vpack.c.b16 %v2850, %v2849
        %v2892 = vpack.c.b16 %v2852, %v2851
        %v2893 = vpack.c.b16 %v2854, %v2853
        %v2894 = vpack.c.b16 %v2856, %v2855
        %v2895 = vpack.c.b16 %v2858, %v2857
        %v2896 = vpack.c.b16 %v2860, %v2859
        %v2897 = vpack.c.b16 %v2862, %v2861
        %v2898 = vpack.c.b16 %v2864, %v2863
        %v2899 = vpack.c.b16 %v2866, %v2865
        %v2900 = vpack.c.b16 %v2868, %v2867
        %2933 = vmatpush.bf16.msra.mxu0 %v2876
        %2934 = vmatpush.bf16.msra.mxu0 %v2875
        %2935 = vmatpush.bf16.msra.mxu0 %v2874
        %2936 = vmatpush.bf16.msra.mxu0 %v2873
        %2937 = vmatpush.bf16.msra.mxu0 %v2872
        %2938 = vmatpush.bf16.msra.mxu0 %v2871
        %2939 = vmatpush.bf16.msra.mxu0 %v2870
        %2940 = vmatpush.bf16.msra.mxu0 %v2869
        %2941 = vmatmul.bf16.gmra.mxu0 %v2095
        %v2942 = vpop.f32.mrf.mxu0
        %v2943 = vadd.f32 %v2733, %v2942
        %v2944 = vpop.f32.mrf.mxu0
        %v2945 = vadd.f32 %v2735, %v2944
        %2946 = vmatmul.bf16.gmra.mxu0 %v2099
        %v2947 = vpop.f32.mrf.mxu0
        %v2948 = vadd.f32 %v2738, %v2947
        %v2949 = vpop.f32.mrf.mxu0
        %2950 = vdwg.mxu0
        %2951 = vmatpush.bf16.msra.mxu0 %v2884
        %2952 = vmatpush.bf16.msra.mxu0 %v2883
        %2953 = vmatpush.bf16.msra.mxu0 %v2882
        %2954 = vmatpush.bf16.msra.mxu0 %v2881
        %2955 = vmatpush.bf16.msra.mxu0 %v2880
        %2956 = vmatpush.bf16.msra.mxu0 %v2879
        %2957 = vmatpush.bf16.msra.mxu0 %v2878
        %2958 = vmatpush.bf16.msra.mxu0 %v2877
        %2959 = vmatmul.bf16.gmra.mxu0 %v2096
        %v2960 = vpop.f32.mrf.mxu0
        %v2961 = vadd.f32 %v2943, %v2960
        %v2962 = vpop.f32.mrf.mxu0
        %v2963 = vadd.f32 %v2945, %v2962
        %2964 = vmatmul.bf16.gmra.mxu0 %v2100
        %v2965 = vpop.f32.mrf.mxu0
        %v2966 = vadd.f32 %v2948, %v2965
        %v2967 = vpop.f32.mrf.mxu0
        %2968 = vdwg.mxu0
        %2969 = vmatpush.bf16.msra.mxu0 %v2892
        %2970 = vmatpush.bf16.msra.mxu0 %v2891
        %2971 = vmatpush.bf16.msra.mxu0 %v2890
        %2972 = vmatpush.bf16.msra.mxu0 %v2889
        %2973 = vmatpush.bf16.msra.mxu0 %v2888
        %2974 = vmatpush.bf16.msra.mxu0 %v2887
        %2975 = vmatpush.bf16.msra.mxu0 %v2886
        %2976 = vmatpush.bf16.msra.mxu0 %v2885
        %2977 = vmatmul.bf16.gmra.mxu0 %v2097
        %v2978 = vpop.f32.mrf.mxu0
        %v2979 = vadd.f32 %v2961, %v2978
        %v2980 = vpop.f32.mrf.mxu0
        %v2981 = vadd.f32 %v2963, %v2980
        %2982 = vmatmul.bf16.gmra.mxu0 %v2101
        %v2983 = vpop.f32.mrf.mxu0
        %v2984 = vadd.f32 %v2966, %v2983
        %v2985 = vpop.f32.mrf.mxu0
        %2986 = vdwg.mxu0
        %2987 = vmatpush.bf16.msra.mxu0 %v2900
        %2988 = vmatpush.bf16.msra.mxu0 %v2899
        %2989 = vmatpush.bf16.msra.mxu0 %v2898
        %2990 = vmatpush.bf16.msra.mxu0 %v2897
        %2991 = vmatpush.bf16.msra.mxu0 %v2896
        %2992 = vmatpush.bf16.msra.mxu0 %v2895
        %2993 = vmatpush.bf16.msra.mxu0 %v2894
        %2994 = vmatpush.bf16.msra.mxu0 %v2893
        %2995 = vmatmul.bf16.gmra.mxu0 %v2098
        %v2996 = vpop.f32.mrf.mxu0
        %v2997 = vadd.f32 %v2979, %v2996
        %v2998 = vpop.f32.mrf.mxu0
        %v2999 = vadd.f32 %v2981, %v2998
        %3000 = vmatmul.bf16.gmra.mxu0 %v2102
        %v3001 = vpop.f32.mrf.mxu0
        %v3002 = vadd.f32 %v2984, %v3001
        %v3003 = vpop.f32.mrf.mxu0
        %3004 = vdwg.mxu0
        %v3005 = vld [vmem:[%s786 + $0x20] sm:$0xff]
        %v3006 = vld [vmem:[%s786 + $0x28] sm:$0xff]
        %v3007 = vld [vmem:[%s786 + $0x60] sm:$0xff]
        %v3008 = vld [vmem:[%s786 + $0x68] sm:$0xff]
        %v3009 = vld [vmem:[%s786 + $0xa0] sm:$0xff]
        %v3010 = vld [vmem:[%s786 + $0xa8] sm:$0xff]
        %v3011 = vld [vmem:[%s786 + $0xe0] sm:$0xff]
        %v3012 = vld [vmem:[%s786 + $0xe8] sm:$0xff]
        %v3013 = vld [vmem:[%s790 + $0x8] sm:$0xf]
        %v3015 = vperm.slane %v3013, 0
        %v3016 = vperm.slane %v3013, 1
        %v3017 = vperm.slane %v3013, 2
        %v3018 = vperm.slane %v3013, 3
        %v3031 = vunpack.c.l.b16 %v3005
        %v3032 = vunpack.c.h.b16 %v3005
        %v3033 = vunpack.c.l.b16 %v3006
        %v3034 = vunpack.c.h.b16 %v3006
        %v3035 = vunpack.c.l.b16 %v3007
        %v3036 = vunpack.c.h.b16 %v3007
        %v3037 = vunpack.c.l.b16 %v3008
        %v3038 = vunpack.c.h.b16 %v3008
        %v3039 = vunpack.c.l.b16 %v3009
        %v3040 = vunpack.c.h.b16 %v3009
        %v3041 = vunpack.c.l.b16 %v3010
        %v3042 = vunpack.c.h.b16 %v3010
        %v3043 = vunpack.c.l.b16 %v3011
        %v3044 = vunpack.c.h.b16 %v3011
        %v3045 = vunpack.c.l.b16 %v3012
        %v3046 = vunpack.c.h.b16 %v3012
        %v3047 = vpack.c.b16 %v3035, %v3031
        %v3048 = vpack.c.b16 %v3036, %v3032
        %v3049 = vpack.c.b16 %v3037, %v3033
        %v3050 = vpack.c.b16 %v3038, %v3034
        %v3051 = vpack.c.b16 %v3043, %v3039
        %v3052 = vpack.c.b16 %v3044, %v3040
        %v3053 = vpack.c.b16 %v3045, %v3041
        %v3054 = vpack.c.b16 %v3046, %v3042
        %3063 = vmatpush.bf16.msra.mxu0 0
        %3064 = vmatpush.bf16.msra.mxu0 0
        %3065 = vmatpush.bf16.msra.mxu0 0
        %3066 = vmatpush.bf16.msra.mxu0 0
        %3067 = vmatpush.bf16.msra.mxu0 0
        %3068 = vmatpush.bf16.msra.mxu0 0
        %3069 = vmatpush.bf16.msra.mxu0 %v3051
        %3070 = vmatpush.bf16.msra.mxu0 %v3047
        %3071 = vmatmul.bf16.gmra.mxu0 %v1910
        %v3072 = vpop.f32.mrf.mxu0
        %v3073 = vadd.f32 %v3015, %v3072
        %v3074 = vpop.f32.mrf.mxu0
        %v3075 = vadd.f32 %v3015, %v3074
        %3076 = vmatmul.bf16.gmra.mxu0 %v1913
        %v3077 = vpop.f32.mrf.mxu0
        %v3078 = vadd.f32 %v3015, %v3077
        %v3079 = vpop.f32.mrf.mxu0
        %3080 = vdwg.mxu0
        %3081 = vmatpush.bf16.msra.mxu0 0
        %3082 = vmatpush.bf16.msra.mxu0 0
        %3083 = vmatpush.bf16.msra.mxu0 0
        %3084 = vmatpush.bf16.msra.mxu0 0
        %3085 = vmatpush.bf16.msra.mxu0 0
        %3086 = vmatpush.bf16.msra.mxu0 0
        %3087 = vmatpush.bf16.msra.mxu0 %v3052
        %3088 = vmatpush.bf16.msra.mxu0 %v3048
        %3089 = vmatmul.bf16.gmra.mxu0 %v1910
        %v3090 = vpop.f32.mrf.mxu0
        %v3091 = vadd.f32 %v3016, %v3090
        %v3092 = vpop.f32.mrf.mxu0
        %v3093 = vadd.f32 %v3016, %v3092
        %3094 = vmatmul.bf16.gmra.mxu0 %v1913
        %v3095 = vpop.f32.mrf.mxu0
        %v3096 = vadd.f32 %v3016, %v3095
        %v3097 = vpop.f32.mrf.mxu0
        %3098 = vdwg.mxu0
        %3099 = vmatpush.bf16.msra.mxu0 0
        %3100 = vmatpush.bf16.msra.mxu0 0
        %3101 = vmatpush.bf16.msra.mxu0 0
        %3102 = vmatpush.bf16.msra.mxu0 0
        %3103 = vmatpush.bf16.msra.mxu0 0
        %3104 = vmatpush.bf16.msra.mxu0 0
        %3105 = vmatpush.bf16.msra.mxu0 %v3053
        %3106 = vmatpush.bf16.msra.mxu0 %v3049
        %3107 = vmatmul.bf16.gmra.mxu0 %v1910
        %v3108 = vpop.f32.mrf.mxu0
        %v3109 = vadd.f32 %v3017, %v3108
        %v3110 = vpop.f32.mrf.mxu0
        %v3111 = vadd.f32 %v3017, %v3110
        %3112 = vmatmul.bf16.gmra.mxu0 %v1913
        %v3113 = vpop.f32.mrf.mxu0
        %v3114 = vadd.f32 %v3017, %v3113
        %v3115 = vpop.f32.mrf.mxu0
        %3116 = vdwg.mxu0
        %3117 = vmatpush.bf16.msra.mxu0 0
        %3118 = vmatpush.bf16.msra.mxu0 0
        %3119 = vmatpush.bf16.msra.mxu0 0
        %3120 = vmatpush.bf16.msra.mxu0 0
        %3121 = vmatpush.bf16.msra.mxu0 0
        %3122 = vmatpush.bf16.msra.mxu0 0
        %3123 = vmatpush.bf16.msra.mxu0 %v3054
        %3124 = vmatpush.bf16.msra.mxu0 %v3050
        %3125 = vmatmul.bf16.gmra.mxu0 %v1910
        %v3126 = vpop.f32.mrf.mxu0
        %v3127 = vadd.f32 %v3018, %v3126
        %v3128 = vpop.f32.mrf.mxu0
        %v3129 = vadd.f32 %v3018, %v3128
        %3130 = vmatmul.bf16.gmra.mxu0 %v1913
        %v3131 = vpop.f32.mrf.mxu0
        %v3132 = vadd.f32 %v3018, %v3131
        %v3133 = vpop.f32.mrf.mxu0
        %3134 = vdwg.mxu0
        %v3135 = vmul.f32 %v3073, 0.5
        %v3136 = vmul.f32 %v3091, 0.5
        %v3137 = vmul.f32 %v3109, 0.5
        %v3138 = vmul.f32 %v3127, 0.5
        %v3139 = vmul.f32 %v3075, 0.5
        %v3140 = vmul.f32 %v3093, 0.5
        %v3141 = vmul.f32 %v3111, 0.5
        %v3142 = vmul.f32 %v3129, 0.5
        %v3143 = vmul.f32 %v3078, 0.5
        %v3144 = vmul.f32 %v3096, 0.5
        %v3145 = vmul.f32 %v3114, 0.5
        %v3146 = vmul.f32 %v3132, 0.5
        %v3147 = vmul.f32 %v3073, 0.044715
        %v3148 = vmul.f32 %v3091, 0.044715
        %v3149 = vmul.f32 %v3109, 0.044715
        %v3150 = vmul.f32 %v3127, 0.044715
        %v3151 = vmul.f32 %v3075, 0.044715
        %v3152 = vmul.f32 %v3093, 0.044715
        %v3153 = vmul.f32 %v3111, 0.044715
        %v3154 = vmul.f32 %v3129, 0.044715
        %v3155 = vmul.f32 %v3078, 0.044715
        %v3156 = vmul.f32 %v3096, 0.044715
        %v3157 = vmul.f32 %v3114, 0.044715
        %v3158 = vmul.f32 %v3132, 0.044715
        %v3159 = vmul.f32 %v3147, %v3073
        %v3160 = vmul.f32 %v3148, %v3091
        %v3161 = vmul.f32 %v3149, %v3109
        %v3162 = vmul.f32 %v3150, %v3127
        %v3163 = vmul.f32 %v3151, %v3075
        %v3164 = vmul.f32 %v3152, %v3093
        %v3165 = vmul.f32 %v3153, %v3111
        %v3166 = vmul.f32 %v3154, %v3129
        %v3167 = vmul.f32 %v3155, %v3078
        %v3168 = vmul.f32 %v3156, %v3096
        %v3169 = vmul.f32 %v3157, %v3114
        %v3170 = vmul.f32 %v3158, %v3132
        %v3171 = vmul.f32 %v3159, %v3073
        %v3172 = vmul.f32 %v3160, %v3091
        %v3173 = vmul.f32 %v3161, %v3109
        %v3174 = vmul.f32 %v3162, %v3127
        %v3175 = vmul.f32 %v3163, %v3075
        %v3176 = vmul.f32 %v3164, %v3093
        %v3177 = vmul.f32 %v3165, %v3111
        %v3178 = vmul.f32 %v3166, %v3129
        %v3179 = vmul.f32 %v3167, %v3078
        %v3180 = vmul.f32 %v3168, %v3096
        %v3181 = vmul.f32 %v3169, %v3114
        %v3182 = vmul.f32 %v3170, %v3132
        %v3183 = vadd.f32 %v3073, %v3171
        %v3184 = vadd.f32 %v3091, %v3172
        %v3185 = vadd.f32 %v3109, %v3173
        %v3186 = vadd.f32 %v3127, %v3174
        %v3187 = vadd.f32 %v3075, %v3175
        %v3188 = vadd.f32 %v3093, %v3176
        %v3189 = vadd.f32 %v3111, %v3177
        %v3190 = vadd.f32 %v3129, %v3178
        %v3191 = vadd.f32 %v3078, %v3179
        %v3192 = vadd.f32 %v3096, %v3180
        %v3193 = vadd.f32 %v3114, %v3181
        %v3194 = vadd.f32 %v3132, %v3182
        %v3195 = vmul.f32 %v3183, 0.7978846
        %v3196 = vmul.f32 %v3184, 0.7978846
        %v3197 = vmul.f32 %v3185, 0.7978846
        %v3198 = vmul.f32 %v3186, 0.7978846
        %v3199 = vmul.f32 %v3187, 0.7978846
        %v3200 = vmul.f32 %v3188, 0.7978846
        %v3201 = vmul.f32 %v3189, 0.7978846
        %v3202 = vmul.f32 %v3190, 0.7978846
        %v3203 = vmul.f32 %v3191, 0.7978846
        %v3204 = vmul.f32 %v3192, 0.7978846
        %v3205 = vmul.f32 %v3193, 0.7978846
        %v3206 = vmul.f32 %v3194, 0.7978846
        %v3207 = vtanh.pop %v3195
        %v3208 = vtanh.pop %v3196
        %v3209 = vtanh.pop %v3197
        %v3210 = vtanh.pop %v3198
        %v3211 = vtanh.pop %v3199
        %v3212 = vtanh.pop %v3200
        %v3213 = vtanh.pop %v3201
        %v3214 = vtanh.pop %v3202
        %v3215 = vtanh.pop %v3203
        %v3216 = vtanh.pop %v3204
        %v3217 = vtanh.pop %v3205
        %v3218 = vtanh.pop %v3206
        %v3219 = vadd.f32 %v3207, 1.0
        %v3220 = vadd.f32 %v3208, 1.0
        %v3221 = vadd.f32 %v3209, 1.0
        %v3222 = vadd.f32 %v3210, 1.0
        %v3223 = vadd.f32 %v3211, 1.0
        %v3224 = vadd.f32 %v3212, 1.0
        %v3225 = vadd.f32 %v3213, 1.0
        %v3226 = vadd.f32 %v3214, 1.0
        %v3227 = vadd.f32 %v3215, 1.0
        %v3228 = vadd.f32 %v3216, 1.0
        %v3229 = vadd.f32 %v3217, 1.0
        %v3230 = vadd.f32 %v3218, 1.0
        %v3231 = vmul.f32 %v3135, %v3219
        %v3232 = vmul.f32 %v3136, %v3220
        %v3233 = vmul.f32 %v3137, %v3221
        %v3234 = vmul.f32 %v3138, %v3222
        %v3235 = vmul.f32 %v3139, %v3223
        %v3236 = vmul.f32 %v3140, %v3224
        %v3237 = vmul.f32 %v3141, %v3225
        %v3238 = vmul.f32 %v3142, %v3226
        %v3239 = vmul.f32 %v3143, %v3227
        %v3240 = vmul.f32 %v3144, %v3228
        %v3241 = vmul.f32 %v3145, %v3229
        %v3242 = vmul.f32 %v3146, %v3230
        %v3243 = vpack.c.bf16 %v3235, %v3231
        %v3244 = vpack.c.bf16 %v3236, %v3232
        %v3245 = vpack.c.bf16 %v3237, %v3233
        %v3246 = vpack.c.bf16 %v3238, %v3234
        %v3247 = vpack.c.bf16 %v3239, %v3239
        %v3248 = vpack.c.bf16 %v3240, %v3240
        %v3249 = vpack.c.bf16 %v3241, %v3241
        %v3250 = vpack.c.bf16 %v3242, %v3242
        %v3251 = vld [vmem:[%s795 + $0x200] sm:$0xf]
        %v3252 = vld [vmem:[%s795 + $0x204] sm:$0xf]
        %v3253 = vld [vmem:[%s795 + $0x208] sm:$0xf]
        %v3254 = vld [vmem:[%s795 + $0x20c] sm:$0xf]
        %v3255 = vld [vmem:[%s795 + $0x210] sm:$0xf]
        %v3256 = vld [vmem:[%s795 + $0x214] sm:$0xf]
        %v3257 = vld [vmem:[%s795 + $0x218] sm:$0xf]
        %v3258 = vld [vmem:[%s795 + $0x21c] sm:$0xf]
        %v3259 = vld [vmem:[%s795 + $0x220] sm:$0xf]
        %v3260 = vld [vmem:[%s795 + $0x224] sm:$0xf]
        %v3261 = vld [vmem:[%s795 + $0x228] sm:$0xf]
        %v3262 = vld [vmem:[%s795 + $0x22c] sm:$0xf]
        %v3263 = vld [vmem:[%s795 + $0x230] sm:$0xf]
        %v3264 = vld [vmem:[%s795 + $0x234] sm:$0xf]
        %v3265 = vld [vmem:[%s795 + $0x238] sm:$0xf]
        %v3266 = vld [vmem:[%s795 + $0x23c] sm:$0xf]
        %v3267 = vld [vmem:[%s795 + $0x240] sm:$0xf]
        %v3268 = vld [vmem:[%s795 + $0x244] sm:$0xf]
        %v3269 = vld [vmem:[%s795 + $0x248] sm:$0xf]
        %v3270 = vld [vmem:[%s795 + $0x24c] sm:$0xf]
        %v3271 = vld [vmem:[%s795 + $0x250] sm:$0xf]
        %v3272 = vld [vmem:[%s795 + $0x254] sm:$0xf]
        %v3273 = vld [vmem:[%s795 + $0x258] sm:$0xf]
        %v3274 = vld [vmem:[%s795 + $0x25c] sm:$0xf]
        %v3275 = vld [vmem:[%s795 + $0x260] sm:$0xf]
        %v3276 = vld [vmem:[%s795 + $0x264] sm:$0xf]
        %v3277 = vld [vmem:[%s795 + $0x268] sm:$0xf]
        %v3278 = vld [vmem:[%s795 + $0x26c] sm:$0xf]
        %v3279 = vld [vmem:[%s795 + $0x270] sm:$0xf]
        %v3280 = vld [vmem:[%s795 + $0x274] sm:$0xf]
        %v3281 = vld [vmem:[%s795 + $0x278] sm:$0xf]
        %v3282 = vld [vmem:[%s795 + $0x27c] sm:$0xf]
        %v3283 = vld [vmem:[%s795 + $0x280] sm:$0xf]
        %v3284 = vld [vmem:[%s795 + $0x284] sm:$0xf]
        %v3285 = vld [vmem:[%s795 + $0x288] sm:$0xf]
        %v3286 = vld [vmem:[%s795 + $0x28c] sm:$0xf]
        %v3287 = vld [vmem:[%s795 + $0x290] sm:$0xf]
        %v3288 = vld [vmem:[%s795 + $0x294] sm:$0xf]
        %v3289 = vld [vmem:[%s795 + $0x298] sm:$0xf]
        %v3290 = vld [vmem:[%s795 + $0x29c] sm:$0xf]
        %v3291 = vld [vmem:[%s795 + $0x2a0] sm:$0xf]
        %v3292 = vld [vmem:[%s795 + $0x2a4] sm:$0xf]
        %v3293 = vld [vmem:[%s795 + $0x2a8] sm:$0xf]
        %v3294 = vld [vmem:[%s795 + $0x2ac] sm:$0xf]
        %v3295 = vld [vmem:[%s795 + $0x2b0] sm:$0xf]
        %v3296 = vld [vmem:[%s795 + $0x2b4] sm:$0xf]
        %v3297 = vld [vmem:[%s795 + $0x2b8] sm:$0xf]
        %v3298 = vld [vmem:[%s795 + $0x2bc] sm:$0xf]
        %v3299 = vld [vmem:[%s795 + $0x2c0] sm:$0xf]
        %v3300 = vld [vmem:[%s795 + $0x2c4] sm:$0xf]
        %v3301 = vld [vmem:[%s795 + $0x2c8] sm:$0xf]
        %v3302 = vld [vmem:[%s795 + $0x2cc] sm:$0xf]
        %v3303 = vld [vmem:[%s795 + $0x2d0] sm:$0xf]
        %v3304 = vld [vmem:[%s795 + $0x2d4] sm:$0xf]
        %v3305 = vld [vmem:[%s795 + $0x2d8] sm:$0xf]
        %v3306 = vld [vmem:[%s795 + $0x2dc] sm:$0xf]
        %v3307 = vld [vmem:[%s795 + $0x2e0] sm:$0xf]
        %v3308 = vld [vmem:[%s795 + $0x2e4] sm:$0xf]
        %v3309 = vld [vmem:[%s795 + $0x2e8] sm:$0xf]
        %v3310 = vld [vmem:[%s795 + $0x2ec] sm:$0xf]
        %v3311 = vld [vmem:[%s795 + $0x2f0] sm:$0xf]
        %v3312 = vld [vmem:[%s795 + $0x2f4] sm:$0xf]
        %v3313 = vld [vmem:[%s795 + $0x2f8] sm:$0xf]
        %v3314 = vld [vmem:[%s795 + $0x2fc] sm:$0xf]
        %v3379 = vunpack.c.l.b16 %v3251
        %v3380 = vunpack.c.l.b16 %v3252
        %v3381 = vunpack.c.l.b16 %v3253
        %v3382 = vunpack.c.l.b16 %v3254
        %v3383 = vunpack.c.l.b16 %v3255
        %v3384 = vunpack.c.l.b16 %v3256
        %v3385 = vunpack.c.l.b16 %v3257
        %v3386 = vunpack.c.l.b16 %v3258
        %v3387 = vunpack.c.l.b16 %v3259
        %v3388 = vunpack.c.l.b16 %v3260
        %v3389 = vunpack.c.l.b16 %v3261
        %v3390 = vunpack.c.l.b16 %v3262
        %v3391 = vunpack.c.l.b16 %v3263
        %v3392 = vunpack.c.l.b16 %v3264
        %v3393 = vunpack.c.l.b16 %v3265
        %v3394 = vunpack.c.l.b16 %v3266
        %v3395 = vunpack.c.l.b16 %v3267
        %v3396 = vunpack.c.l.b16 %v3268
        %v3397 = vunpack.c.l.b16 %v3269
        %v3398 = vunpack.c.l.b16 %v3270
        %v3399 = vunpack.c.l.b16 %v3271
        %v3400 = vunpack.c.l.b16 %v3272
        %v3401 = vunpack.c.l.b16 %v3273
        %v3402 = vunpack.c.l.b16 %v3274
        %v3403 = vunpack.c.l.b16 %v3275
        %v3404 = vunpack.c.l.b16 %v3276
        %v3405 = vunpack.c.l.b16 %v3277
        %v3406 = vunpack.c.l.b16 %v3278
        %v3407 = vunpack.c.l.b16 %v3279
        %v3408 = vunpack.c.l.b16 %v3280
        %v3409 = vunpack.c.l.b16 %v3281
        %v3410 = vunpack.c.l.b16 %v3282
        %v3411 = vunpack.c.l.b16 %v3283
        %v3412 = vunpack.c.l.b16 %v3284
        %v3413 = vunpack.c.l.b16 %v3285
        %v3414 = vunpack.c.l.b16 %v3286
        %v3415 = vunpack.c.l.b16 %v3287
        %v3416 = vunpack.c.l.b16 %v3288
        %v3417 = vunpack.c.l.b16 %v3289
        %v3418 = vunpack.c.l.b16 %v3290
        %v3419 = vunpack.c.l.b16 %v3291
        %v3420 = vunpack.c.l.b16 %v3292
        %v3421 = vunpack.c.l.b16 %v3293
        %v3422 = vunpack.c.l.b16 %v3294
        %v3423 = vunpack.c.l.b16 %v3295
        %v3424 = vunpack.c.l.b16 %v3296
        %v3425 = vunpack.c.l.b16 %v3297
        %v3426 = vunpack.c.l.b16 %v3298
        %v3427 = vunpack.c.l.b16 %v3299
        %v3428 = vunpack.c.l.b16 %v3300
        %v3429 = vunpack.c.l.b16 %v3301
        %v3430 = vunpack.c.l.b16 %v3302
        %v3431 = vunpack.c.l.b16 %v3303
        %v3432 = vunpack.c.l.b16 %v3304
        %v3433 = vunpack.c.l.b16 %v3305
        %v3434 = vunpack.c.l.b16 %v3306
        %v3435 = vunpack.c.l.b16 %v3307
        %v3436 = vunpack.c.l.b16 %v3308
        %v3437 = vunpack.c.l.b16 %v3309
        %v3438 = vunpack.c.l.b16 %v3310
        %v3439 = vunpack.c.l.b16 %v3311
        %v3440 = vunpack.c.l.b16 %v3312
        %v3441 = vunpack.c.l.b16 %v3313
        %v3442 = vunpack.c.l.b16 %v3314
        %v3443 = vpack.c.b16 %v3380, %v3379
        %v3444 = vpack.c.b16 %v3382, %v3381
        %v3445 = vpack.c.b16 %v3384, %v3383
        %v3446 = vpack.c.b16 %v3386, %v3385
        %v3447 = vpack.c.b16 %v3388, %v3387
        %v3448 = vpack.c.b16 %v3390, %v3389
        %v3449 = vpack.c.b16 %v3392, %v3391
        %v3450 = vpack.c.b16 %v3394, %v3393
        %v3451 = vpack.c.b16 %v3396, %v3395
        %v3452 = vpack.c.b16 %v3398, %v3397
        %v3453 = vpack.c.b16 %v3400, %v3399
        %v3454 = vpack.c.b16 %v3402, %v3401
        %v3455 = vpack.c.b16 %v3404, %v3403
        %v3456 = vpack.c.b16 %v3406, %v3405
        %v3457 = vpack.c.b16 %v3408, %v3407
        %v3458 = vpack.c.b16 %v3410, %v3409
        %v3459 = vpack.c.b16 %v3412, %v3411
        %v3460 = vpack.c.b16 %v3414, %v3413
        %v3461 = vpack.c.b16 %v3416, %v3415
        %v3462 = vpack.c.b16 %v3418, %v3417
        %v3463 = vpack.c.b16 %v3420, %v3419
        %v3464 = vpack.c.b16 %v3422, %v3421
        %v3465 = vpack.c.b16 %v3424, %v3423
        %v3466 = vpack.c.b16 %v3426, %v3425
        %v3467 = vpack.c.b16 %v3428, %v3427
        %v3468 = vpack.c.b16 %v3430, %v3429
        %v3469 = vpack.c.b16 %v3432, %v3431
        %v3470 = vpack.c.b16 %v3434, %v3433
        %v3471 = vpack.c.b16 %v3436, %v3435
        %v3472 = vpack.c.b16 %v3438, %v3437
        %v3473 = vpack.c.b16 %v3440, %v3439
        %v3474 = vpack.c.b16 %v3442, %v3441
        %3507 = vmatpush.bf16.msra.mxu0 %v3450
        %3508 = vmatpush.bf16.msra.mxu0 %v3449
        %3509 = vmatpush.bf16.msra.mxu0 %v3448
        %3510 = vmatpush.bf16.msra.mxu0 %v3447
        %3511 = vmatpush.bf16.msra.mxu0 %v3446
        %3512 = vmatpush.bf16.msra.mxu0 %v3445
        %3513 = vmatpush.bf16.msra.mxu0 %v3444
        %3514 = vmatpush.bf16.msra.mxu0 %v3443
        %3515 = vmatmul.bf16.gmra.mxu0 %v3243
        %v3516 = vpop.f32.mrf.mxu0
        %v3517 = vadd.f32 0.0, %v3516
        %v3518 = vpop.f32.mrf.mxu0
        %v3519 = vadd.f32 0.0, %v3518
        %3520 = vmatmul.bf16.gmra.mxu0 %v3247
        %v3521 = vpop.f32.mrf.mxu0
        %v3522 = vadd.f32 0.0, %v3521
        %v3523 = vpop.f32.mrf.mxu0
        %3524 = vdwg.mxu0
        %3525 = vmatpush.bf16.msra.mxu0 %v3458
        %3526 = vmatpush.bf16.msra.mxu0 %v3457
        %3527 = vmatpush.bf16.msra.mxu0 %v3456
        %3528 = vmatpush.bf16.msra.mxu0 %v3455
        %3529 = vmatpush.bf16.msra.mxu0 %v3454
        %3530 = vmatpush.bf16.msra.mxu0 %v3453
        %3531 = vmatpush.bf16.msra.mxu0 %v3452
        %3532 = vmatpush.bf16.msra.mxu0 %v3451
        %3533 = vmatmul.bf16.gmra.mxu0 %v3244
        %v3534 = vpop.f32.mrf.mxu0
        %v3535 = vadd.f32 %v3517, %v3534
        %v3536 = vpop.f32.mrf.mxu0
        %v3537 = vadd.f32 %v3519, %v3536
        %3538 = vmatmul.bf16.gmra.mxu0 %v3248
        %v3539 = vpop.f32.mrf.mxu0
        %v3540 = vadd.f32 %v3522, %v3539
        %v3541 = vpop.f32.mrf.mxu0
        %3542 = vdwg.mxu0
        %3543 = vmatpush.bf16.msra.mxu0 %v3466
        %3544 = vmatpush.bf16.msra.mxu0 %v3465
        %3545 = vmatpush.bf16.msra.mxu0 %v3464
        %3546 = vmatpush.bf16.msra.mxu0 %v3463
        %3547 = vmatpush.bf16.msra.mxu0 %v3462
        %3548 = vmatpush.bf16.msra.mxu0 %v3461
        %3549 = vmatpush.bf16.msra.mxu0 %v3460
        %3550 = vmatpush.bf16.msra.mxu0 %v3459
        %3551 = vmatmul.bf16.gmra.mxu0 %v3245
        %v3552 = vpop.f32.mrf.mxu0
        %v3553 = vadd.f32 %v3535, %v3552
        %v3554 = vpop.f32.mrf.mxu0
        %v3555 = vadd.f32 %v3537, %v3554
        %3556 = vmatmul.bf16.gmra.mxu0 %v3249
        %v3557 = vpop.f32.mrf.mxu0
        %v3558 = vadd.f32 %v3540, %v3557
        %v3559 = vpop.f32.mrf.mxu0
        %3560 = vdwg.mxu0
        %3561 = vmatpush.bf16.msra.mxu0 %v3474
        %3562 = vmatpush.bf16.msra.mxu0 %v3473
        %3563 = vmatpush.bf16.msra.mxu0 %v3472
        %3564 = vmatpush.bf16.msra.mxu0 %v3471
        %3565 = vmatpush.bf16.msra.mxu0 %v3470
        %3566 = vmatpush.bf16.msra.mxu0 %v3469
        %3567 = vmatpush.bf16.msra.mxu0 %v3468
        %3568 = vmatpush.bf16.msra.mxu0 %v3467
        %3569 = vmatmul.bf16.gmra.mxu0 %v3246
        %v3570 = vpop.f32.mrf.mxu0
        %v3571 = vadd.f32 %v3553, %v3570
        %v3572 = vpop.f32.mrf.mxu0
        %v3573 = vadd.f32 %v3555, %v3572
        %3574 = vmatmul.bf16.gmra.mxu0 %v3250
        %v3575 = vpop.f32.mrf.mxu0
        %v3576 = vadd.f32 %v3558, %v3575
        %v3577 = vpop.f32.mrf.mxu0
        %3578 = vdwg.mxu0
        %v3579 = vadd.f32 %v2997, %v3571
        %v3580 = vadd.f32 %v2999, %v3573
        %v3581 = vadd.f32 %v3002, %v3576
        %v3582 = vld [vmem:[%s786 + $0x30] sm:$0xff]
        %v3583 = vld [vmem:[%s786 + $0x38] sm:$0xff]
        %v3584 = vld [vmem:[%s786 + $0x70] sm:$0xff]
        %v3585 = vld [vmem:[%s786 + $0x78] sm:$0xff]
        %v3586 = vld [vmem:[%s786 + $0xb0] sm:$0xff]
        %v3587 = vld [vmem:[%s786 + $0xb8] sm:$0xff]
        %v3588 = vld [vmem:[%s786 + $0xf0] sm:$0xff]
        %v3589 = vld [vmem:[%s786 + $0xf8] sm:$0xff]
        %v3590 = vld [vmem:[%s790 + $0xc] sm:$0xf]
        %v3592 = vperm.slane %v3590, 0
        %v3593 = vperm.slane %v3590, 1
        %v3594 = vperm.slane %v3590, 2
        %v3595 = vperm.slane %v3590, 3
        %v3608 = vunpack.c.l.b16 %v3582
        %v3609 = vunpack.c.h.b16 %v3582
        %v3610 = vunpack.c.l.b16 %v3583
        %v3611 = vunpack.c.h.b16 %v3583
        %v3612 = vunpack.c.l.b16 %v3584
        %v3613 = vunpack.c.h.b16 %v3584
        %v3614 = vunpack.c.l.b16 %v3585
        %v3615 = vunpack.c.h.b16 %v3585
        %v3616 = vunpack.c.l.b16 %v3586
        %v3617 = vunpack.c.h.b16 %v3586
        %v3618 = vunpack.c.l.b16 %v3587
        %v3619 = vunpack.c.h.b16 %v3587
        %v3620 = vunpack.c.l.b16 %v3588
        %v3621 = vunpack.c.h.b16 %v3588
        %v3622 = vunpack.c.l.b16 %v3589
        %v3623 = vunpack.c.h.b16 %v3589
        %v3624 = vpack.c.b16 %v3612, %v3608
        %v3625 = vpack.c.b16 %v3613, %v3609
        %v3626 = vpack.c.b16 %v3614, %v3610
        %v3627 = vpack.c.b16 %v3615, %v3611
        %v3628 = vpack.c.b16 %v3620, %v3616
        %v3629 = vpack.c.b16 %v3621, %v3617
        %v3630 = vpack.c.b16 %v3622, %v3618
        %v3631 = vpack.c.b16 %v3623, %v3619
        %3640 = vmatpush.bf16.msra.mxu0 0
        %3641 = vmatpush.bf16.msra.mxu0 0
        %3642 = vmatpush.bf16.msra.mxu0 0
        %3643 = vmatpush.bf16.msra.mxu0 0
        %3644 = vmatpush.bf16.msra.mxu0 0
        %3645 = vmatpush.bf16.msra.mxu0 0
        %3646 = vmatpush.bf16.msra.mxu0 %v3628
        %3647 = vmatpush.bf16.msra.mxu0 %v3624
        %3648 = vmatmul.bf16.gmra.mxu0 %v1910
        %v3649 = vpop.f32.mrf.mxu0
        %v3650 = vadd.f32 %v3592, %v3649
        %v3651 = vpop.f32.mrf.mxu0
        %v3652 = vadd.f32 %v3592, %v3651
        %3653 = vmatmul.bf16.gmra.mxu0 %v1913
        %v3654 = vpop.f32.mrf.mxu0
        %v3655 = vadd.f32 %v3592, %v3654
        %v3656 = vpop.f32.mrf.mxu0
        %3657 = vdwg.mxu0
        %3658 = vmatpush.bf16.msra.mxu0 0
        %3659 = vmatpush.bf16.msra.mxu0 0
        %3660 = vmatpush.bf16.msra.mxu0 0
        %3661 = vmatpush.bf16.msra.mxu0 0
        %3662 = vmatpush.bf16.msra.mxu0 0
        %3663 = vmatpush.bf16.msra.mxu0 0
        %3664 = vmatpush.bf16.msra.mxu0 %v3629
        %3665 = vmatpush.bf16.msra.mxu0 %v3625
        %3666 = vmatmul.bf16.gmra.mxu0 %v1910
        %v3667 = vpop.f32.mrf.mxu0
        %v3668 = vadd.f32 %v3593, %v3667
        %v3669 = vpop.f32.mrf.mxu0
        %v3670 = vadd.f32 %v3593, %v3669
        %3671 = vmatmul.bf16.gmra.mxu0 %v1913
        %v3672 = vpop.f32.mrf.mxu0
        %v3673 = vadd.f32 %v3593, %v3672
        %v3674 = vpop.f32.mrf.mxu0
        %3675 = vdwg.mxu0
        %3676 = vmatpush.bf16.msra.mxu0 0
        %3677 = vmatpush.bf16.msra.mxu0 0
        %3678 = vmatpush.bf16.msra.mxu0 0
        %3679 = vmatpush.bf16.msra.mxu0 0
        %3680 = vmatpush.bf16.msra.mxu0 0
        %3681 = vmatpush.bf16.msra.mxu0 0
        %3682 = vmatpush.bf16.msra.mxu0 %v3630
        %3683 = vmatpush.bf16.msra.mxu0 %v3626
        %3684 = vmatmul.bf16.gmra.mxu0 %v1910
        %v3685 = vpop.f32.mrf.mxu0
        %v3686 = vadd.f32 %v3594, %v3685
        %v3687 = vpop.f32.mrf.mxu0
        %v3688 = vadd.f32 %v3594, %v3687
        %3689 = vmatmul.bf16.gmra.mxu0 %v1913
        %v3690 = vpop.f32.mrf.mxu0
        %v3691 = vadd.f32 %v3594, %v3690
        %v3692 = vpop.f32.mrf.mxu0
        %3693 = vdwg.mxu0
        %3694 = vmatpush.bf16.msra.mxu0 0
        %3695 = vmatpush.bf16.msra.mxu0 0
        %3696 = vmatpush.bf16.msra.mxu0 0
        %3697 = vmatpush.bf16.msra.mxu0 0
        %3698 = vmatpush.bf16.msra.mxu0 0
        %3699 = vmatpush.bf16.msra.mxu0 0
        %3700 = vmatpush.bf16.msra.mxu0 %v3631
        %3701 = vmatpush.bf16.msra.mxu0 %v3627
        %3702 = vmatmul.bf16.gmra.mxu0 %v1910
        %v3703 = vpop.f32.mrf.mxu0
        %v3704 = vadd.f32 %v3595, %v3703
        %v3705 = vpop.f32.mrf.mxu0
        %v3706 = vadd.f32 %v3595, %v3705
        %3707 = vmatmul.bf16.gmra.mxu0 %v1913
        %v3708 = vpop.f32.mrf.mxu0
        %v3709 = vadd.f32 %v3595, %v3708
        %v3710 = vpop.f32.mrf.mxu0
        %3711 = vdwg.mxu0
        %v3712 = vmul.f32 %v3650, 0.5
        %v3713 = vmul.f32 %v3668, 0.5
        %v3714 = vmul.f32 %v3686, 0.5
        %v3715 = vmul.f32 %v3704, 0.5
        %v3716 = vmul.f32 %v3652, 0.5
        %v3717 = vmul.f32 %v3670, 0.5
        %v3718 = vmul.f32 %v3688, 0.5
        %v3719 = vmul.f32 %v3706, 0.5
        %v3720 = vmul.f32 %v3655, 0.5
        %v3721 = vmul.f32 %v3673, 0.5
        %v3722 = vmul.f32 %v3691, 0.5
        %v3723 = vmul.f32 %v3709, 0.5
        %v3724 = vmul.f32 %v3650, 0.044715
        %v3725 = vmul.f32 %v3668, 0.044715
        %v3726 = vmul.f32 %v3686, 0.044715
        %v3727 = vmul.f32 %v3704, 0.044715
        %v3728 = vmul.f32 %v3652, 0.044715
        %v3729 = vmul.f32 %v3670, 0.044715
        %v3730 = vmul.f32 %v3688, 0.044715
        %v3731 = vmul.f32 %v3706, 0.044715
        %v3732 = vmul.f32 %v3655, 0.044715
        %v3733 = vmul.f32 %v3673, 0.044715
        %v3734 = vmul.f32 %v3691, 0.044715
        %v3735 = vmul.f32 %v3709, 0.044715
        %v3736 = vmul.f32 %v3724, %v3650
        %v3737 = vmul.f32 %v3725, %v3668
        %v3738 = vmul.f32 %v3726, %v3686
        %v3739 = vmul.f32 %v3727, %v3704
        %v3740 = vmul.f32 %v3728, %v3652
        %v3741 = vmul.f32 %v3729, %v3670
        %v3742 = vmul.f32 %v3730, %v3688
        %v3743 = vmul.f32 %v3731, %v3706
        %v3744 = vmul.f32 %v3732, %v3655
        %v3745 = vmul.f32 %v3733, %v3673
        %v3746 = vmul.f32 %v3734, %v3691
        %v3747 = vmul.f32 %v3735, %v3709
        %v3748 = vmul.f32 %v3736, %v3650
        %v3749 = vmul.f32 %v3737, %v3668
        %v3750 = vmul.f32 %v3738, %v3686
        %v3751 = vmul.f32 %v3739, %v3704
        %v3752 = vmul.f32 %v3740, %v3652
        %v3753 = vmul.f32 %v3741, %v3670
        %v3754 = vmul.f32 %v3742, %v3688
        %v3755 = vmul.f32 %v3743, %v3706
        %v3756 = vmul.f32 %v3744, %v3655
        %v3757 = vmul.f32 %v3745, %v3673
        %v3758 = vmul.f32 %v3746, %v3691
        %v3759 = vmul.f32 %v3747, %v3709
        %v3760 = vadd.f32 %v3650, %v3748
        %v3761 = vadd.f32 %v3668, %v3749
        %v3762 = vadd.f32 %v3686, %v3750
        %v3763 = vadd.f32 %v3704, %v3751
        %v3764 = vadd.f32 %v3652, %v3752
        %v3765 = vadd.f32 %v3670, %v3753
        %v3766 = vadd.f32 %v3688, %v3754
        %v3767 = vadd.f32 %v3706, %v3755
        %v3768 = vadd.f32 %v3655, %v3756
        %v3769 = vadd.f32 %v3673, %v3757
        %v3770 = vadd.f32 %v3691, %v3758
        %v3771 = vadd.f32 %v3709, %v3759
        %v3772 = vmul.f32 %v3760, 0.7978846
        %v3773 = vmul.f32 %v3761, 0.7978846
        %v3774 = vmul.f32 %v3762, 0.7978846
        %v3775 = vmul.f32 %v3763, 0.7978846
        %v3776 = vmul.f32 %v3764, 0.7978846
        %v3777 = vmul.f32 %v3765, 0.7978846
        %v3778 = vmul.f32 %v3766, 0.7978846
        %v3779 = vmul.f32 %v3767, 0.7978846
        %v3780 = vmul.f32 %v3768, 0.7978846
        %v3781 = vmul.f32 %v3769, 0.7978846
        %v3782 = vmul.f32 %v3770, 0.7978846
        %v3783 = vmul.f32 %v3771, 0.7978846
        %v3784 = vtanh.pop %v3772
        %v3785 = vtanh.pop %v3773
        %v3786 = vtanh.pop %v3774
        %v3787 = vtanh.pop %v3775
        %v3788 = vtanh.pop %v3776
        %v3789 = vtanh.pop %v3777
        %v3790 = vtanh.pop %v3778
        %v3791 = vtanh.pop %v3779
        %v3792 = vtanh.pop %v3780
        %v3793 = vtanh.pop %v3781
        %v3794 = vtanh.pop %v3782
        %v3795 = vtanh.pop %v3783
        %v3796 = vadd.f32 %v3784, 1.0
        %v3797 = vadd.f32 %v3785, 1.0
        %v3798 = vadd.f32 %v3786, 1.0
        %v3799 = vadd.f32 %v3787, 1.0
        %v3800 = vadd.f32 %v3788, 1.0
        %v3801 = vadd.f32 %v3789, 1.0
        %v3802 = vadd.f32 %v3790, 1.0
        %v3803 = vadd.f32 %v3791, 1.0
        %v3804 = vadd.f32 %v3792, 1.0
        %v3805 = vadd.f32 %v3793, 1.0
        %v3806 = vadd.f32 %v3794, 1.0
        %v3807 = vadd.f32 %v3795, 1.0
        %v3808 = vmul.f32 %v3712, %v3796
        %v3809 = vmul.f32 %v3713, %v3797
        %v3810 = vmul.f32 %v3714, %v3798
        %v3811 = vmul.f32 %v3715, %v3799
        %v3812 = vmul.f32 %v3716, %v3800
        %v3813 = vmul.f32 %v3717, %v3801
        %v3814 = vmul.f32 %v3718, %v3802
        %v3815 = vmul.f32 %v3719, %v3803
        %v3816 = vmul.f32 %v3720, %v3804
        %v3817 = vmul.f32 %v3721, %v3805
        %v3818 = vmul.f32 %v3722, %v3806
        %v3819 = vmul.f32 %v3723, %v3807
        %v3820 = vpack.c.bf16 %v3812, %v3808
        %v3821 = vpack.c.bf16 %v3813, %v3809
        %v3822 = vpack.c.bf16 %v3814, %v3810
        %v3823 = vpack.c.bf16 %v3815, %v3811
        %v3824 = vpack.c.bf16 %v3816, %v3816
        %v3825 = vpack.c.bf16 %v3817, %v3817
        %v3826 = vpack.c.bf16 %v3818, %v3818
        %v3827 = vpack.c.bf16 %v3819, %v3819
        %v3828 = vld [vmem:[%s795 + $0x300] sm:$0xf]
        %v3829 = vld [vmem:[%s795 + $0x304] sm:$0xf]
        %v3830 = vld [vmem:[%s795 + $0x308] sm:$0xf]
        %v3831 = vld [vmem:[%s795 + $0x30c] sm:$0xf]
        %v3832 = vld [vmem:[%s795 + $0x310] sm:$0xf]
        %v3833 = vld [vmem:[%s795 + $0x314] sm:$0xf]
        %v3834 = vld [vmem:[%s795 + $0x318] sm:$0xf]
        %v3835 = vld [vmem:[%s795 + $0x31c] sm:$0xf]
        %v3836 = vld [vmem:[%s795 + $0x320] sm:$0xf]
        %v3837 = vld [vmem:[%s795 + $0x324] sm:$0xf]
        %v3838 = vld [vmem:[%s795 + $0x328] sm:$0xf]
        %v3839 = vld [vmem:[%s795 + $0x32c] sm:$0xf]
        %v3840 = vld [vmem:[%s795 + $0x330] sm:$0xf]
        %v3841 = vld [vmem:[%s795 + $0x334] sm:$0xf]
        %v3842 = vld [vmem:[%s795 + $0x338] sm:$0xf]
        %v3843 = vld [vmem:[%s795 + $0x33c] sm:$0xf]
        %v3844 = vld [vmem:[%s795 + $0x340] sm:$0xf]
        %v3845 = vld [vmem:[%s795 + $0x344] sm:$0xf]
        %v3846 = vld [vmem:[%s795 + $0x348] sm:$0xf]
        %v3847 = vld [vmem:[%s795 + $0x34c] sm:$0xf]
        %v3848 = vld [vmem:[%s795 + $0x350] sm:$0xf]
        %v3849 = vld [vmem:[%s795 + $0x354] sm:$0xf]
        %v3850 = vld [vmem:[%s795 + $0x358] sm:$0xf]
        %v3851 = vld [vmem:[%s795 + $0x35c] sm:$0xf]
        %v3852 = vld [vmem:[%s795 + $0x360] sm:$0xf]
        %v3853 = vld [vmem:[%s795 + $0x364] sm:$0xf]
        %v3854 = vld [vmem:[%s795 + $0x368] sm:$0xf]
        %v3855 = vld [vmem:[%s795 + $0x36c] sm:$0xf]
        %v3856 = vld [vmem:[%s795 + $0x370] sm:$0xf]
        %v3857 = vld [vmem:[%s795 + $0x374] sm:$0xf]
        %v3858 = vld [vmem:[%s795 + $0x378] sm:$0xf]
        %v3859 = vld [vmem:[%s795 + $0x37c] sm:$0xf]
        %v3860 = vld [vmem:[%s795 + $0x380] sm:$0xf]
        %v3861 = vld [vmem:[%s795 + $0x384] sm:$0xf]
        %v3862 = vld [vmem:[%s795 + $0x388] sm:$0xf]
        %v3863 = vld [vmem:[%s795 + $0x38c] sm:$0xf]
        %v3864 = vld [vmem:[%s795 + $0x390] sm:$0xf]
        %v3865 = vld [vmem:[%s795 + $0x394] sm:$0xf]
        %v3866 = vld [vmem:[%s795 + $0x398] sm:$0xf]
        %v3867 = vld [vmem:[%s795 + $0x39c] sm:$0xf]
        %v3868 = vld [vmem:[%s795 + $0x3a0] sm:$0xf]
        %v3869 = vld [vmem:[%s795 + $0x3a4] sm:$0xf]
        %v3870 = vld [vmem:[%s795 + $0x3a8] sm:$0xf]
        %v3871 = vld [vmem:[%s795 + $0x3ac] sm:$0xf]
        %v3872 = vld [vmem:[%s795 + $0x3b0] sm:$0xf]
        %v3873 = vld [vmem:[%s795 + $0x3b4] sm:$0xf]
        %v3874 = vld [vmem:[%s795 + $0x3b8] sm:$0xf]
        %v3875 = vld [vmem:[%s795 + $0x3bc] sm:$0xf]
        %v3876 = vld [vmem:[%s795 + $0x3c0] sm:$0xf]
        %v3877 = vld [vmem:[%s795 + $0x3c4] sm:$0xf]
        %v3878 = vld [vmem:[%s795 + $0x3c8] sm:$0xf]
        %v3879 = vld [vmem:[%s795 + $0x3cc] sm:$0xf]
        %v3880 = vld [vmem:[%s795 + $0x3d0] sm:$0xf]
        %v3881 = vld [vmem:[%s795 + $0x3d4] sm:$0xf]
        %v3882 = vld [vmem:[%s795 + $0x3d8] sm:$0xf]
        %v3883 = vld [vmem:[%s795 + $0x3dc] sm:$0xf]
        %v3884 = vld [vmem:[%s795 + $0x3e0] sm:$0xf]
        %v3885 = vld [vmem:[%s795 + $0x3e4] sm:$0xf]
        %v3886 = vld [vmem:[%s795 + $0x3e8] sm:$0xf]
        %v3887 = vld [vmem:[%s795 + $0x3ec] sm:$0xf]
        %v3888 = vld [vmem:[%s795 + $0x3f0] sm:$0xf]
        %v3889 = vld [vmem:[%s795 + $0x3f4] sm:$0xf]
        %v3890 = vld [vmem:[%s795 + $0x3f8] sm:$0xf]
        %v3891 = vld [vmem:[%s795 + $0x3fc] sm:$0xf]
        %v3956 = vunpack.c.l.b16 %v3828
        %v3957 = vunpack.c.l.b16 %v3829
        %v3958 = vunpack.c.l.b16 %v3830
        %v3959 = vunpack.c.l.b16 %v3831
        %v3960 = vunpack.c.l.b16 %v3832
        %v3961 = vunpack.c.l.b16 %v3833
        %v3962 = vunpack.c.l.b16 %v3834
        %v3963 = vunpack.c.l.b16 %v3835
        %v3964 = vunpack.c.l.b16 %v3836
        %v3965 = vunpack.c.l.b16 %v3837
        %v3966 = vunpack.c.l.b16 %v3838
        %v3967 = vunpack.c.l.b16 %v3839
        %v3968 = vunpack.c.l.b16 %v3840
        %v3969 = vunpack.c.l.b16 %v3841
        %v3970 = vunpack.c.l.b16 %v3842
        %v3971 = vunpack.c.l.b16 %v3843
        %v3972 = vunpack.c.l.b16 %v3844
        %v3973 = vunpack.c.l.b16 %v3845
        %v3974 = vunpack.c.l.b16 %v3846
        %v3975 = vunpack.c.l.b16 %v3847
        %v3976 = vunpack.c.l.b16 %v3848
        %v3977 = vunpack.c.l.b16 %v3849
        %v3978 = vunpack.c.l.b16 %v3850
        %v3979 = vunpack.c.l.b16 %v3851
        %v3980 = vunpack.c.l.b16 %v3852
        %v3981 = vunpack.c.l.b16 %v3853
        %v3982 = vunpack.c.l.b16 %v3854
        %v3983 = vunpack.c.l.b16 %v3855
        %v3984 = vunpack.c.l.b16 %v3856
        %v3985 = vunpack.c.l.b16 %v3857
        %v3986 = vunpack.c.l.b16 %v3858
        %v3987 = vunpack.c.l.b16 %v3859
        %v3988 = vunpack.c.l.b16 %v3860
        %v3989 = vunpack.c.l.b16 %v3861
        %v3990 = vunpack.c.l.b16 %v3862
        %v3991 = vunpack.c.l.b16 %v3863
        %v3992 = vunpack.c.l.b16 %v3864
        %v3993 = vunpack.c.l.b16 %v3865
        %v3994 = vunpack.c.l.b16 %v3866
        %v3995 = vunpack.c.l.b16 %v3867
        %v3996 = vunpack.c.l.b16 %v3868
        %v3997 = vunpack.c.l.b16 %v3869
        %v3998 = vunpack.c.l.b16 %v3870
        %v3999 = vunpack.c.l.b16 %v3871
        %v4000 = vunpack.c.l.b16 %v3872
        %v4001 = vunpack.c.l.b16 %v3873
        %v4002 = vunpack.c.l.b16 %v3874
        %v4003 = vunpack.c.l.b16 %v3875
        %v4004 = vunpack.c.l.b16 %v3876
        %v4005 = vunpack.c.l.b16 %v3877
        %v4006 = vunpack.c.l.b16 %v3878
        %v4007 = vunpack.c.l.b16 %v3879
        %v4008 = vunpack.c.l.b16 %v3880
        %v4009 = vunpack.c.l.b16 %v3881
        %v4010 = vunpack.c.l.b16 %v3882
        %v4011 = vunpack.c.l.b16 %v3883
        %v4012 = vunpack.c.l.b16 %v3884
        %v4013 = vunpack.c.l.b16 %v3885
        %v4014 = vunpack.c.l.b16 %v3886
        %v4015 = vunpack.c.l.b16 %v3887
        %v4016 = vunpack.c.l.b16 %v3888
        %v4017 = vunpack.c.l.b16 %v3889
        %v4018 = vunpack.c.l.b16 %v3890
        %v4019 = vunpack.c.l.b16 %v3891
        %v4020 = vpack.c.b16 %v3957, %v3956
        %v4021 = vpack.c.b16 %v3959, %v3958
        %v4022 = vpack.c.b16 %v3961, %v3960
        %v4023 = vpack.c.b16 %v3963, %v3962
        %v4024 = vpack.c.b16 %v3965, %v3964
        %v4025 = vpack.c.b16 %v3967, %v3966
        %v4026 = vpack.c.b16 %v3969, %v3968
        %v4027 = vpack.c.b16 %v3971, %v3970
        %v4028 = vpack.c.b16 %v3973, %v3972
        %v4029 = vpack.c.b16 %v3975, %v3974
        %v4030 = vpack.c.b16 %v3977, %v3976
        %v4031 = vpack.c.b16 %v3979, %v3978
        %v4032 = vpack.c.b16 %v3981, %v3980
        %v4033 = vpack.c.b16 %v3983, %v3982
        %v4034 = vpack.c.b16 %v3985, %v3984
        %v4035 = vpack.c.b16 %v3987, %v3986
        %v4036 = vpack.c.b16 %v3989, %v3988
        %v4037 = vpack.c.b16 %v3991, %v3990
        %v4038 = vpack.c.b16 %v3993, %v3992
        %v4039 = vpack.c.b16 %v3995, %v3994
        %v4040 = vpack.c.b16 %v3997, %v3996
        %v4041 = vpack.c.b16 %v3999, %v3998
        %v4042 = vpack.c.b16 %v4001, %v4000
        %v4043 = vpack.c.b16 %v4003, %v4002
        %v4044 = vpack.c.b16 %v4005, %v4004
        %v4045 = vpack.c.b16 %v4007, %v4006
        %v4046 = vpack.c.b16 %v4009, %v4008
        %v4047 = vpack.c.b16 %v4011, %v4010
        %v4048 = vpack.c.b16 %v4013, %v4012
        %v4049 = vpack.c.b16 %v4015, %v4014
        %v4050 = vpack.c.b16 %v4017, %v4016
        %v4051 = vpack.c.b16 %v4019, %v4018
        %4084 = vmatpush.bf16.msra.mxu0 %v4027
        %4085 = vmatpush.bf16.msra.mxu0 %v4026
        %4086 = vmatpush.bf16.msra.mxu0 %v4025
        %4087 = vmatpush.bf16.msra.mxu0 %v4024
        %4088 = vmatpush.bf16.msra.mxu0 %v4023
        %4089 = vmatpush.bf16.msra.mxu0 %v4022
        %4090 = vmatpush.bf16.msra.mxu0 %v4021
        %4091 = vmatpush.bf16.msra.mxu0 %v4020
        %4092 = vmatmul.bf16.gmra.mxu0 %v3820
        %v4093 = vpop.f32.mrf.mxu0
        %v4094 = vadd.f32 0.0, %v4093
        %v4095 = vpop.f32.mrf.mxu0
        %v4096 = vadd.f32 0.0, %v4095
        %4097 = vmatmul.bf16.gmra.mxu0 %v3824
        %v4098 = vpop.f32.mrf.mxu0
        %v4099 = vadd.f32 0.0, %v4098
        %v4100 = vpop.f32.mrf.mxu0
        %4101 = vdwg.mxu0
        %4102 = vmatpush.bf16.msra.mxu0 %v4035
        %4103 = vmatpush.bf16.msra.mxu0 %v4034
        %4104 = vmatpush.bf16.msra.mxu0 %v4033
        %4105 = vmatpush.bf16.msra.mxu0 %v4032
        %4106 = vmatpush.bf16.msra.mxu0 %v4031
        %4107 = vmatpush.bf16.msra.mxu0 %v4030
        %4108 = vmatpush.bf16.msra.mxu0 %v4029
        %4109 = vmatpush.bf16.msra.mxu0 %v4028
        %4110 = vmatmul.bf16.gmra.mxu0 %v3821
        %v4111 = vpop.f32.mrf.mxu0
        %v4112 = vadd.f32 %v4094, %v4111
        %v4113 = vpop.f32.mrf.mxu0
        %v4114 = vadd.f32 %v4096, %v4113
        %4115 = vmatmul.bf16.gmra.mxu0 %v3825
        %v4116 = vpop.f32.mrf.mxu0
        %v4117 = vadd.f32 %v4099, %v4116
        %v4118 = vpop.f32.mrf.mxu0
        %4119 = vdwg.mxu0
        %4120 = vmatpush.bf16.msra.mxu0 %v4043
        %4121 = vmatpush.bf16.msra.mxu0 %v4042
        %4122 = vmatpush.bf16.msra.mxu0 %v4041
        %4123 = vmatpush.bf16.msra.mxu0 %v4040
        %4124 = vmatpush.bf16.msra.mxu0 %v4039
        %4125 = vmatpush.bf16.msra.mxu0 %v4038
        %4126 = vmatpush.bf16.msra.mxu0 %v4037
        %4127 = vmatpush.bf16.msra.mxu0 %v4036
        %4128 = vmatmul.bf16.gmra.mxu0 %v3822
        %v4129 = vpop.f32.mrf.mxu0
        %v4130 = vadd.f32 %v4112, %v4129
        %v4131 = vpop.f32.mrf.mxu0
        %v4132 = vadd.f32 %v4114, %v4131
        %4133 = vmatmul.bf16.gmra.mxu0 %v3826
        %v4134 = vpop.f32.mrf.mxu0
        %v4135 = vadd.f32 %v4117, %v4134
        %v4136 = vpop.f32.mrf.mxu0
        %4137 = vdwg.mxu0
        %4138 = vmatpush.bf16.msra.mxu0 %v4051
        %4139 = vmatpush.bf16.msra.mxu0 %v4050
        %4140 = vmatpush.bf16.msra.mxu0 %v4049
        %4141 = vmatpush.bf16.msra.mxu0 %v4048
        %4142 = vmatpush.bf16.msra.mxu0 %v4047
        %4143 = vmatpush.bf16.msra.mxu0 %v4046
        %4144 = vmatpush.bf16.msra.mxu0 %v4045
        %4145 = vmatpush.bf16.msra.mxu0 %v4044
        %4146 = vmatmul.bf16.gmra.mxu0 %v3823
        %v4147 = vpop.f32.mrf.mxu0
        %v4148 = vadd.f32 %v4130, %v4147
        %v4149 = vpop.f32.mrf.mxu0
        %v4150 = vadd.f32 %v4132, %v4149
        %4151 = vmatmul.bf16.gmra.mxu0 %v3827
        %v4152 = vpop.f32.mrf.mxu0
        %v4153 = vadd.f32 %v4135, %v4152
        %v4154 = vpop.f32.mrf.mxu0
        %4155 = vdwg.mxu0
        %v4156 = vadd.f32 %v3579, %v4148
        %v4157 = vadd.f32 %v3580, %v4150
        %v4158 = vadd.f32 %v3581, %v4153
        %v4159 = vld [vmem:[%s798] sm:$0x1]
        %v4161 = vperm.slane %v4159, 0
        %v4163 = vadd.f32 %v4156, %v4161
        %v4164 = vadd.f32 %v4157, %v4161
        %v4165 = vadd.f32 %v4158, %v4161
        %v4166 = vadd.f32 %v4163, %v1774
        %v4167 = vadd.f32 %v4164, %v1775
        %v4168 = vadd.f32 %v4165, %v1776
        %4169 = vst.msk [vmem:[#allocation2] sm:$0xff] %vm966, %v4166
        %4170 = vst.msk [vmem:[#allocation2 + $0x8] sm:$0xff] %vm966, %v4167
        %4171 = vst.msk [vmem:[#allocation2 + $0x10] sm:$0x1] %vm973, %v4168
        %p4172 = scmp.eq.s32.totalorder %s38, 1
        // Predicated region
        $region101: #{vit_forward.1} parent=95 // pred_check
          %p4173 = pneg %p4172
        $region102: #{vit_forward.1} parent=95 // pred_check_branch
          %4175 = sbr.rel (%p4173) target = $region104
        $region103: #{vit_forward.1} parent=95 // pred_region
          %v4176 = vld [vmem:[%s13] sm:$0x1]
          %v4177 = vld [vmem:[%s14] sm:$0x1]
          %v4178 = vsel %vm973, %v4166, 0.0
          %4179 = vadd.xlane.f32.xlu0 %v4178
          %v4180 = vpop.xlane.xlu0 %4179
          %v4181 = vmul.f32 %v4180, %v983
          %v4182 = vsub.f32 %v4166, %v4181
          %v4183 = vmul.f32 %v4182, %v4182
          %v4184 = vsel %vm973, %v4183, 0.0
          %4185 = vadd.xlane.f32.xlu0 %v4184
          %v4186 = vpop.xlane.xlu0 %4185
          %v4187 = vmul.f32 %v4186, %v983
          %v4188 = vadd.f32 %v4187, 1e-05
          %v4189 = vrsqrt.pop %v4188
          %v4190 = vmul.f32 %v4189, %v4188
          %v4191 = vmul.f32 %v4190, %v4189
          %v4192 = vmul.f32 0.5, %v4191
          %v4193 = vsub.f32 1.5, %v4192
          %v4194 = vmul.f32 %v4189, %v4193
          %vm4195 = vweird.f32 %v4188
          %vm4196 = vweird.f32 %v4189
          %vm4197 = vmor %vm4195, %vm4196
          %v4198 = vsel %vm4197, %v4189, %v4194
          %v4199 = vmul.f32 %v4182, %v4198
          %v4200 = vmul.f32 %v4199, %v4176
          %v4201 = vadd.f32 %v4200, %v4177
          %v4202 = vpack.c.bf16 %v4201, %v4201
          %v4203 = vld [vmem:[%s15] sm:$0xf]
          %v4204 = vld [vmem:[%s15 + $0x4] sm:$0xf]
          %v4205 = vld [vmem:[%s15 + $0x8] sm:$0xf]
          %v4206 = vld [vmem:[%s15 + $0xc] sm:$0xf]
          %v4207 = vld [vmem:[%s16] sm:$0x1]
          %v4212 = vunpack.c.l.b16 %v4203
          %v4213 = vunpack.c.l.b16 %v4204
          %v4214 = vunpack.c.l.b16 %v4205
          %v4215 = vunpack.c.l.b16 %v4206
          %v4216 = vpack.c.b16 %v4213, %v4212
          %v4217 = vpack.c.b16 %v4215, %v4214
          %v4221 = vsel %vm966, %v4202, 0
          %4223 = vmatpush.bf16.msra.mxu0 0
          %4224 = vmatpush.bf16.msra.mxu0 0
          %4225 = vmatpush.bf16.msra.mxu0 0
          %4226 = vmatpush.bf16.msra.mxu0 0
          %4227 = vmatpush.bf16.msra.mxu0 0
          %4228 = vmatpush.bf16.msra.mxu0 0
          %4229 = vmatpush.bf16.msra.mxu0 %v4217
          %4230 = vmatpush.bf16.msra.mxu0 %v4216
          %4231 = vmatmul.bf16.gmra.mxu0 %v4221
          %v4232 = vpop.f32.mrf.mxu0
          %v4233 = vadd.f32 %v4207, %v4232
          %v4234 = vpop.f32.mrf.mxu0
          %4235 = vdwg.mxu0
          %v4236 = vmul.f32 %v4233, 0.5
          %v4237 = vmul.f32 %v4233, 0.044715
          %v4238 = vmul.f32 %v4237, %v4233
          %v4239 = vmul.f32 %v4238, %v4233
          %v4240 = vadd.f32 %v4233, %v4239
          %v4241 = vmul.f32 %v4240, 0.7978846
          %v4242 = vtanh.pop %v4241
          %v4243 = vadd.f32 %v4242, 1.0
          %v4244 = vmul.f32 %v4236, %v4243
          %v4245 = vpack.c.bf16 %v4244, %v4244
          %v4246 = vld [vmem:[%s17] sm:$0xf]
          %v4247 = vld [vmem:[%s17 + $0x4] sm:$0xf]
          %v4248 = vld [vmem:[%s17 + $0x8] sm:$0xf]
          %v4249 = vld [vmem:[%s17 + $0xc] sm:$0xf]
          %v4250 = vld [vmem:[%s17 + $0x10] sm:$0xf]
          %v4251 = vld [vmem:[%s17 + $0x14] sm:$0xf]
          %v4252 = vld [vmem:[%s17 + $0x18] sm:$0xf]
          %v4253 = vld [vmem:[%s17 + $0x1c] sm:$0xf]
          %v4254 = vld [vmem:[%s18] sm:$0x1]
          %v4263 = vunpack.c.l.b16 %v4246
          %v4264 = vunpack.c.l.b16 %v4247
          %v4265 = vunpack.c.l.b16 %v4248
          %v4266 = vunpack.c.l.b16 %v4249
          %v4267 = vunpack.c.l.b16 %v4250
          %v4268 = vunpack.c.l.b16 %v4251
          %v4269 = vunpack.c.l.b16 %v4252
          %v4270 = vunpack.c.l.b16 %v4253
          %v4271 = vpack.c.b16 %v4264, %v4263
          %v4272 = vpack.c.b16 %v4266, %v4265
          %v4273 = vpack.c.b16 %v4268, %v4267
          %v4274 = vpack.c.b16 %v4270, %v4269
          %vm4279 = vcmask 523264
          %v4281 = vsel %vm4279, %v4245, 0
          %4283 = vmatpush.bf16.msra.mxu0 0
          %4284 = vmatpush.bf16.msra.mxu0 0
          %4285 = vmatpush.bf16.msra.mxu0 0
          %4286 = vmatpush.bf16.msra.mxu0 0
          %4287 = vmatpush.bf16.msra.mxu0 %v4274
          %4288 = vmatpush.bf16.msra.mxu0 %v4273
          %4289 = vmatpush.bf16.msra.mxu0 %v4272
          %4290 = vmatpush.bf16.msra.mxu0 %v4271
          %4291 = vmatmul.bf16.gmra.mxu0 %v4281
          %v4292 = vpop.f32.mrf.mxu0
          %v4293 = vadd.f32 %v4254, %v4292
          %v4294 = vpop.f32.mrf.mxu0
          %4295 = vdwg.mxu0
          %vm4296 = vcmask 73728
          %4297 = vst.msk [vmem:[%s749] sm:$0x1] %vm4296, %v4293
        $region104: #{vit_forward.1} parent=95 // pred_fallthru
          _
        %s4298 = sand.u32 %s512, 1
        %s4299 = scalar_lea.sflag [#allocation4], %s4298
        %s4300 = sand.u32 %s512, 1
        %s4301 = scalar_lea.vmem [#allocation3], %s4300
        // Predicated region
        $region105: #{vit_forward.1} parent=95 // pred_check
          %p4302 = pneg %p522
        $region106: #{vit_forward.1} parent=95 // pred_check_branch
          %4304 = sbr.rel (%p4302) target = $region108
        $region107: #{vit_forward.1} parent=95 // pred_region
          %4306 = vsyncadd %s4299, 0
          %s4307 = scalar_lea.hbm %s19, %s37
          %s4309 = sshll.u32 %s4301, 4
          %s4310 = int_to_ptr.vmem [resolvable:$true] %s4309
          %s4311 = sshll.u32 %s4307, 4
          %s4312 = int_to_ptr.hbm [resolvable:$true] %s4311
          %4314 = dma.vmem_to_hbm [thread:$0]  %s4310, 16, %s4312, %s4299
        $region108: #{vit_forward.1} parent=95 // pred_fallthru
          _
      $region96: #{vit_forward.1} parent=5 // pred_fallthru
        _
      %p4315 = scmp.le.s32.totalorder 2, %s28
      // Predicated region
      $region109: #{vit_forward.1} parent=5 // pred_check
        %p4316 = pneg %p4315
      $region110: #{vit_forward.1} parent=5 // pred_check_branch
        %4318 = sbr.rel (%p4316) target = $region112
      $region111: #{vit_forward.1} parent=5 // pred_region
        %s4319 = ssub.s32 %s28, 2
        // Predicated region
        $region113: #{vit_forward.1} parent=111 // pred_check
          %p4320 = pneg %p528
        $region114: #{vit_forward.1} parent=111 // pred_check_branch
          %4322 = sbr.rel (%p4320) target = $region116
        $region115: #{vit_forward.1} parent=111 // pred_region
          %s4323 = sand.u32 %s513, 1
          %s4324 = scalar_lea.sflag [#allocation4], %s4323
          %s4325 = sand.u32 %s513, 1
          %s4326 = scalar_lea.vmem [#allocation3], %s4325
          %4328 = dma.done %s4324, 16
        $region116: #{vit_forward.1} parent=111 // pred_fallthru
          _
      $region112: #{vit_forward.1} parent=5 // pred_fallthru
        _
    $region6: #{vit_forward.1} parent=1 // loop_footer
      %s32 = sadd.s32 1, %s28
    $region7: #{vit_forward.1} parent=1 // loop_footer_branch
      %27 = sbr.rel target = $region3
    $region8: #{vit_forward.1} parent=1 // loop_exit
      _
    %4329 = vsyncpa [#allocation4], 1
    %s4330 = scalar_lea.sflag [#allocation4], 1
    %4331 = vsyncpa %s4330, 1

</llo_original>
